<compile_context>
chip_gen: v5e
topology: v5e:2x2
jax: 0.10.0
libtpu: 0.0.40
codegen_flags: <defaults>
</compile_context>

<pallas_src>
import jax
import jax.numpy as jnp
from jax import lax
from jax.experimental import pallas as pl
from jax.experimental.pallas import tpu as pltpu

KSIZE = 5  # kernel_size of every layer in the PyTorch module


# ---------------------------------------------------------------------------
# Wrapper-side folding: each (transposed) conv layer -> one dense bf16 operator
# ---------------------------------------------------------------------------
def _conv_dense(w, l_in):
    """Conv1d(stride=2, padding=2) as a (C_in*L_in, C_out*L_out) bf16 matrix.

    w: (C_out, C_in, K).  Flattening is channel-major: row = ci*L_in + j,
    col = co*L_out + t, with out[co, t] = sum_{ci,k} w[co,ci,k] * x[ci, 2t-2+k].
    """
    c_out, c_in, k = w.shape
    l_out = l_in // 2
    j = jnp.arange(l_in)[:, None, None]
    t = jnp.arange(l_out)[None, :, None]
    kk = jnp.arange(k)[None, None, :]
    sel = (j == 2 * t - 2 + kk).astype(jnp.float32)           # (L_in, L_out, K)
    m = jnp.einsum("oik,jtk->ijot", w.astype(jnp.float32), sel)
    return m.reshape(c_in * l_in, c_out * l_out).astype(jnp.bfloat16)


def _convt_dense(w, l_in):
    """ConvTranspose1d(stride=2, padding=2, output_padding=1) as a dense matrix.

    w: (C_in, C_out, K).  out[co, u] = sum_{ci,m,k} x[ci,m] * w[ci,co,k]
    for u == 2m - 2 + k, u in [0, 2*L_in).
    """
    c_in, c_out, k = w.shape
    l_out = 2 * l_in
    m_idx = jnp.arange(l_in)[:, None, None]
    u = jnp.arange(l_out)[None, :, None]
    kk = jnp.arange(k)[None, None, :]
    sel = (u == 2 * m_idx - 2 + kk).astype(jnp.float32)        # (L_in, L_out, K)
    m = jnp.einsum("iok,muk->imou", w.astype(jnp.float32), sel)
    return m.reshape(c_in * l_in, c_out * l_out).astype(jnp.bfloat16)


def _bias_dense(b, l_out):
    # Row (1, C_out*L_out) f32, channel-major -> broadcasts over the batch sublanes.
    return jnp.repeat(b.astype(jnp.float32), l_out).reshape(1, -1)


# ---------------------------------------------------------------------------
# Kernel: 6 bf16 matmuls (f32 accumulate) + bias + ReLU/Tanh, all VMEM resident
# ---------------------------------------------------------------------------
def _ae_kernel(x_ref,
               m1, b1, m2, b2, m3, b3, m4, b4, m5, b5, m6, b6,
               o_ref):
    def dense(h, m_ref, b_ref, act):
        y = jnp.dot(h.astype(jnp.bfloat16), m_ref[...],
                    preferred_element_type=jnp.float32) + b_ref[...]
        return jnp.maximum(y, 0.0) if act == "relu" else jnp.tanh(y)

    h = x_ref[...].astype(jnp.float32)            # (B_TILE, L)
    h = dense(h, m1, b1, "relu")                  # (B_TILE, 16*L/2)
    h = dense(h, m2, b2, "relu")                  # (B_TILE, 32*L/4)
    h = dense(h, m3, b3, "relu")                  # (B_TILE, 64*L/8)
    h = dense(h, m4, b4, "relu")                  # (B_TILE, 32*L/4)
    h = dense(h, m5, b5, "relu")                  # (B_TILE, 16*L/2)
    o_ref[...] = dense(h, m6, b6, "tanh").astype(o_ref.dtype)   # (B_TILE, L)


def _pick_batch_tile(n):
    # >= 8 rows for dense sublane stores; grow while keeping >= 2 grid steps
    # (v7x megacore).  Capped at 64 rows (activation slabs stay tiny anyway).
    bt = 8
    while bt < 64 and n >= 4 * bt:
        bt *= 2
    return bt


# ---------------------------------------------------------------------------
# Wrapper: fold weights, pad batch, single fused pallas_call over batch tiles
# ---------------------------------------------------------------------------
def autoencoder_forward(params, x, *, batch_tile=None):
    n, c0, L = x.shape
    assert c0 == 1 and L % 8 == 0

    mats = [
        _conv_dense(params["enc0_w"], L),        _bias_dense(params["enc0_b"], L // 2),
        _conv_dense(params["enc1_w"], L // 2),   _bias_dense(params["enc1_b"], L // 4),
        _conv_dense(params["enc2_w"], L // 4),   _bias_dense(params["enc2_b"], L // 8),
        _convt_dense(params["dec0_w"], L // 8),  _bias_dense(params["dec0_b"], L // 4),
        _convt_dense(params["dec1_w"], L // 4),  _bias_dense(params["dec1_b"], L // 2),
        _convt_dense(params["dec2_w"], L // 2),  _bias_dense(params["dec2_b"], L),
    ]

    bt = _pick_batch_tile(n) if batch_tile is None else batch_tile
    n_pad = pl.cdiv(n, bt) * bt
    x2 = x.reshape(n, L).astype(jnp.float32)
    if n_pad != n:
        x2 = jnp.concatenate([x2, jnp.zeros((n_pad - n, L), jnp.float32)], axis=0)
    grid = (n_pad // bt,)

    def _const_spec(a):
        return pl.BlockSpec(a.shape, lambda i: (0, 0))

    in_specs = [pl.BlockSpec((bt, L), lambda i: (i, 0))]
    in_specs += [_const_spec(a) for a in mats]
    out_specs = pl.BlockSpec((bt, L), lambda i: (i, 0))

    # Advisory cost estimate for the XLA scheduler.
    flops = sum(2 * m.shape[0] * m.shape[1] for m in mats[0::2]) * n_pad
    bytes_accessed = int(2 * n_pad * L * 4
                         + sum(int(a.size) * a.dtype.itemsize for a in mats))

    out = pl.pallas_call(
        _ae_kernel,
        out_shape=jax.ShapeDtypeStruct((n_pad, L), x.dtype),
        grid=grid,
        in_specs=in_specs,
        out_specs=out_specs,
        compiler_params=pltpu.CompilerParams(dimension_semantics=("parallel",)),
        cost_estimate=pl.CostEstimate(flops=int(flops),
                                      transcendentals=int(n_pad * L),
                                      bytes_accessed=bytes_accessed),
    )(x2, *mats)

    return out[:n].reshape(n, 1, L)


# ---------------------------------------------------------------------------
# Pure-JAX reference (lax.conv_general_dilated) for a numerical self-check
# ---------------------------------------------------------------------------
def _reference_forward(params, x):
    def conv(h, w, b, act):
        out = lax.conv_general_dilated(
            h, w, window_strides=(2,), padding=[(2, 2)],
            dimension_numbers=("NCH", "OIH", "NCH"))
        out = out + b[None, :, None]
        return jnp.maximum(out, 0.0) if act == "relu" else jnp.tanh(out)

    def convt(h, w, b, act):
        w_oih = jnp.transpose(jnp.flip(w, axis=2), (1, 0, 2))
        out = lax.conv_general_dilated(
            h, w_oih, window_strides=(1,), padding=[(2, 3)],
            lhs_dilation=(2,), dimension_numbers=("NCH", "OIH", "NCH"))
        out = out + b[None, :, None]
        return jnp.maximum(out, 0.0) if act == "relu" else jnp.tanh(out)

    h = conv(x, params["enc0_w"], params["enc0_b"], "relu")
    h = conv(h, params["enc1_w"], params["enc1_b"], "relu")
    h = conv(h, params["enc2_w"], params["enc2_b"], "relu")
    h = convt(h, params["dec0_w"], params["dec0_b"], "relu")
    h = convt(h, params["dec1_w"], params["dec1_b"], "relu")
    h = convt(h, params["dec2_w"], params["dec2_b"], "tanh")
    return h


# ---------------------------------------------------------------------------
# Deterministic parameter init (PyTorch-style uniform bounds, synthetic)
# ---------------------------------------------------------------------------
def _uniform(key, shape, fan_in):
    bound = 1.0 / jnp.sqrt(jnp.float32(fan_in))
    return jax.random.uniform(key, shape, jnp.float32, -bound, bound)


def init_params(key):
    params = {}
    enc_shapes = [(16, 1), (32, 16), (64, 32)]        # Conv1d: (C_out, C_in, K)
    for i, (co, ci) in enumerate(enc_shapes):
        kw, kb = jax.random.split(jax.random.fold_in(key, i))
        params[f"enc{i}_w"] = _uniform(kw, (co, ci, KSIZE), ci * KSIZE)
        params[f"enc{i}_b"] = _uniform(kb, (co,), ci * KSIZE)
    dec_shapes = [(64, 32), (32, 16), (16, 1)]        # ConvTranspose1d: (C_in, C_out, K)
    for i, (ci, co) in enumerate(dec_shapes):
        kw, kb = jax.random.split(jax.random.fold_in(key, 100 + i))
        params[f"dec{i}_w"] = _uniform(kw, (ci, co, KSIZE), co * KSIZE)
        params[f"dec{i}_b"] = _uniform(kb, (co,), co * KSIZE)
    return params


if __name__ == "__main__":
    key = jax.random.PRNGKey(0)
    batch, seq = 16, 64                                   # sequence_length = 64
    x = jax.random.normal(jax.random.fold_in(key, 999), (batch, 1, seq), jnp.float32)

    params = init_params(key)
    y = jax.block_until_ready(jax.jit(autoencoder_forward)(params, x))

    assert y.shape == (batch, 1, seq), y.shape
    assert bool(jnp.all(jnp.isfinite(y)))
    assert bool(jnp.all(jnp.abs(y) <= 1.0))               # final Tanh

    # Numerical check against the pure-JAX reference (bf16 MXU operands -> loose tol).
    y_ref = jax.block_until_ready(jax.jit(_reference_forward)(params, x))
    max_err = float(jnp.max(jnp.abs(y - y_ref)))
    assert max_err < 5e-2, max_err

    print("KERNEL_OK")
</pallas_src>

<mosaic_0001>
module attributes {stable_mosaic.version = 11 : i64} {
  func.func @_ae_kernel(%arg0: i32, %arg1: memref<8x64xf32, #tpu.memory_space<vmem>>, %arg2: memref<64x512xbf16, #tpu.memory_space<vmem>>, %arg3: memref<1x512xf32, #tpu.memory_space<vmem>>, %arg4: memref<512x512xbf16, #tpu.memory_space<vmem>>, %arg5: memref<1x512xf32, #tpu.memory_space<vmem>>, %arg6: memref<512x512xbf16, #tpu.memory_space<vmem>>, %arg7: memref<1x512xf32, #tpu.memory_space<vmem>>, %arg8: memref<512x512xbf16, #tpu.memory_space<vmem>>, %arg9: memref<1x512xf32, #tpu.memory_space<vmem>>, %arg10: memref<512x512xbf16, #tpu.memory_space<vmem>>, %arg11: memref<1x512xf32, #tpu.memory_space<vmem>>, %arg12: memref<512x64xbf16, #tpu.memory_space<vmem>>, %arg13: memref<1x64xf32, #tpu.memory_space<vmem>>, %arg14: memref<8x64xf32, #tpu.memory_space<vmem>>) attributes {dimension_semantics = [#tpu.dimension_semantics<parallel>], iteration_bounds = array<i64: 2>, scalar_prefetch = 0 : i64, scratch_operands = 0 : i64, tpu.core_type = #tpu.core_type<tc>, window_params = [{transform_indices = @transform_0, window_bounds = array<i64: 8, 64>}, {pipeline_mode = #tpu.pipeline_mode<synchronous>, transform_indices = @transform_1, window_bounds = array<i64: 64, 512>}, {pipeline_mode = #tpu.pipeline_mode<synchronous>, transform_indices = @transform_2, window_bounds = array<i64: 1, 512>}, {pipeline_mode = #tpu.pipeline_mode<synchronous>, transform_indices = @transform_3, window_bounds = array<i64: 512, 512>}, {pipeline_mode = #tpu.pipeline_mode<synchronous>, transform_indices = @transform_4, window_bounds = array<i64: 1, 512>}, {pipeline_mode = #tpu.pipeline_mode<synchronous>, transform_indices = @transform_5, window_bounds = array<i64: 512, 512>}, {pipeline_mode = #tpu.pipeline_mode<synchronous>, transform_indices = @transform_6, window_bounds = array<i64: 1, 512>}, {pipeline_mode = #tpu.pipeline_mode<synchronous>, transform_indices = @transform_7, window_bounds = array<i64: 512, 512>}, {pipeline_mode = #tpu.pipeline_mode<synchronous>, transform_indices = @transform_8, window_bounds = array<i64: 1, 512>}, {pipeline_mode = #tpu.pipeline_mode<synchronous>, transform_indices = @transform_9, window_bounds = array<i64: 512, 512>}, {pipeline_mode = #tpu.pipeline_mode<synchronous>, transform_indices = @transform_10, window_bounds = array<i64: 1, 512>}, {pipeline_mode = #tpu.pipeline_mode<synchronous>, transform_indices = @transform_11, window_bounds = array<i64: 512, 64>}, {pipeline_mode = #tpu.pipeline_mode<synchronous>, transform_indices = @transform_12, window_bounds = array<i64: 1, 64>}, {transform_indices = @transform_13, window_bounds = array<i64: 8, 64>}]} {
    %c0 = arith.constant 0 : index
    %c0_0 = arith.constant 0 : index
    %0 = vector.load %arg1[%c0, %c0_0] : memref<8x64xf32, #tpu.memory_space<vmem>>, vector<8x64xf32>
    %1 = arith.truncf %0 : vector<8x64xf32> to vector<8x64xbf16>
    %c0_1 = arith.constant 0 : index
    %c0_2 = arith.constant 0 : index
    %2 = vector.load %arg2[%c0_1, %c0_2] : memref<64x512xbf16, #tpu.memory_space<vmem>>, vector<64x512xbf16>
    %cst = arith.constant dense<0.000000e+00> : vector<8x512xf32>
    %3 = tpu.matmul %1, %2, %cst {dimension_numbers = #tpu.dot_dimension_numbers<[1], [0], [0], [1], [0, 0, 1, 1], [], []>} : vector<8x64xbf16>, vector<64x512xbf16>, vector<8x512xf32> -> vector<8x512xf32>
    %c0_3 = arith.constant 0 : index
    %c0_4 = arith.constant 0 : index
    %4 = vector.load %arg3[%c0_3, %c0_4] : memref<1x512xf32, #tpu.memory_space<vmem>>, vector<1x512xf32>
    %5 = vector.broadcast %4 : vector<1x512xf32> to vector<8x512xf32>
    %6 = arith.addf %3, %5 : vector<8x512xf32>
    %cst_5 = arith.constant 0.000000e+00 : f32
    %7 = vector.broadcast %cst_5 : f32 to vector<8x512xf32>
    %8 = arith.maximumf %6, %7 : vector<8x512xf32>
    %9 = arith.truncf %8 : vector<8x512xf32> to vector<8x512xbf16>
    %c0_6 = arith.constant 0 : index
    %c0_7 = arith.constant 0 : index
    %10 = vector.load %arg4[%c0_6, %c0_7] : memref<512x512xbf16, #tpu.memory_space<vmem>>, vector<512x512xbf16>
    %cst_8 = arith.constant dense<0.000000e+00> : vector<8x512xf32>
    %11 = tpu.matmul %9, %10, %cst_8 {dimension_numbers = #tpu.dot_dimension_numbers<[1], [0], [0], [1], [0, 0, 1, 1], [], []>} : vector<8x512xbf16>, vector<512x512xbf16>, vector<8x512xf32> -> vector<8x512xf32>
    %c0_9 = arith.constant 0 : index
    %c0_10 = arith.constant 0 : index
    %12 = vector.load %arg5[%c0_9, %c0_10] : memref<1x512xf32, #tpu.memory_space<vmem>>, vector<1x512xf32>
    %13 = vector.broadcast %12 : vector<1x512xf32> to vector<8x512xf32>
    %14 = arith.addf %11, %13 : vector<8x512xf32>
    %cst_11 = arith.constant 0.000000e+00 : f32
    %15 = vector.broadcast %cst_11 : f32 to vector<8x512xf32>
    %16 = arith.maximumf %14, %15 : vector<8x512xf32>
    %17 = arith.truncf %16 : vector<8x512xf32> to vector<8x512xbf16>
    %c0_12 = arith.constant 0 : index
    %c0_13 = arith.constant 0 : index
    %18 = vector.load %arg6[%c0_12, %c0_13] : memref<512x512xbf16, #tpu.memory_space<vmem>>, vector<512x512xbf16>
    %cst_14 = arith.constant dense<0.000000e+00> : vector<8x512xf32>
    %19 = tpu.matmul %17, %18, %cst_14 {dimension_numbers = #tpu.dot_dimension_numbers<[1], [0], [0], [1], [0, 0, 1, 1], [], []>} : vector<8x512xbf16>, vector<512x512xbf16>, vector<8x512xf32> -> vector<8x512xf32>
    %c0_15 = arith.constant 0 : index
    %c0_16 = arith.constant 0 : index
    %20 = vector.load %arg7[%c0_15, %c0_16] : memref<1x512xf32, #tpu.memory_space<vmem>>, vector<1x512xf32>
    %21 = vector.broadcast %20 : vector<1x512xf32> to vector<8x512xf32>
    %22 = arith.addf %19, %21 : vector<8x512xf32>
    %cst_17 = arith.constant 0.000000e+00 : f32
    %23 = vector.broadcast %cst_17 : f32 to vector<8x512xf32>
    %24 = arith.maximumf %22, %23 : vector<8x512xf32>
    %25 = arith.truncf %24 : vector<8x512xf32> to vector<8x512xbf16>
    %c0_18 = arith.constant 0 : index
    %c0_19 = arith.constant 0 : index
    %26 = vector.load %arg8[%c0_18, %c0_19] : memref<512x512xbf16, #tpu.memory_space<vmem>>, vector<512x512xbf16>
    %cst_20 = arith.constant dense<0.000000e+00> : vector<8x512xf32>
    %27 = tpu.matmul %25, %26, %cst_20 {dimension_numbers = #tpu.dot_dimension_numbers<[1], [0], [0], [1], [0, 0, 1, 1], [], []>} : vector<8x512xbf16>, vector<512x512xbf16>, vector<8x512xf32> -> vector<8x512xf32>
    %c0_21 = arith.constant 0 : index
    %c0_22 = arith.constant 0 : index
    %28 = vector.load %arg9[%c0_21, %c0_22] : memref<1x512xf32, #tpu.memory_space<vmem>>, vector<1x512xf32>
    %29 = vector.broadcast %28 : vector<1x512xf32> to vector<8x512xf32>
    %30 = arith.addf %27, %29 : vector<8x512xf32>
    %cst_23 = arith.constant 0.000000e+00 : f32
    %31 = vector.broadcast %cst_23 : f32 to vector<8x512xf32>
    %32 = arith.maximumf %30, %31 : vector<8x512xf32>
    %33 = arith.truncf %32 : vector<8x512xf32> to vector<8x512xbf16>
    %c0_24 = arith.constant 0 : index
    %c0_25 = arith.constant 0 : index
    %34 = vector.load %arg10[%c0_24, %c0_25] : memref<512x512xbf16, #tpu.memory_space<vmem>>, vector<512x512xbf16>
    %cst_26 = arith.constant dense<0.000000e+00> : vector<8x512xf32>
    %35 = tpu.matmul %33, %34, %cst_26 {dimension_numbers = #tpu.dot_dimension_numbers<[1], [0], [0], [1], [0, 0, 1, 1], [], []>} : vector<8x512xbf16>, vector<512x512xbf16>, vector<8x512xf32> -> vector<8x512xf32>
    %c0_27 = arith.constant 0 : index
    %c0_28 = arith.constant 0 : index
    %36 = vector.load %arg11[%c0_27, %c0_28] : memref<1x512xf32, #tpu.memory_space<vmem>>, vector<1x512xf32>
    %37 = vector.broadcast %36 : vector<1x512xf32> to vector<8x512xf32>
    %38 = arith.addf %35, %37 : vector<8x512xf32>
    %cst_29 = arith.constant 0.000000e+00 : f32
    %39 = vector.broadcast %cst_29 : f32 to vector<8x512xf32>
    %40 = arith.maximumf %38, %39 : vector<8x512xf32>
    %41 = arith.truncf %40 : vector<8x512xf32> to vector<8x512xbf16>
    %c0_30 = arith.constant 0 : index
    %c0_31 = arith.constant 0 : index
    %42 = vector.load %arg12[%c0_30, %c0_31] : memref<512x64xbf16, #tpu.memory_space<vmem>>, vector<512x64xbf16>
    %cst_32 = arith.constant dense<0.000000e+00> : vector<8x64xf32>
    %43 = tpu.matmul %41, %42, %cst_32 {dimension_numbers = #tpu.dot_dimension_numbers<[1], [0], [0], [1], [0, 0, 1, 1], [], []>} : vector<8x512xbf16>, vector<512x64xbf16>, vector<8x64xf32> -> vector<8x64xf32>
    %c0_33 = arith.constant 0 : index
    %c0_34 = arith.constant 0 : index
    %44 = vector.load %arg13[%c0_33, %c0_34] : memref<1x64xf32, #tpu.memory_space<vmem>>, vector<1x64xf32>
    %45 = vector.broadcast %44 : vector<1x64xf32> to vector<8x64xf32>
    %46 = arith.addf %43, %45 : vector<8x64xf32>
    %47 = math.tanh %46 : vector<8x64xf32>
    %c0_35 = arith.constant 0 : index
    %c0_36 = arith.constant 0 : index
    %48 = vector.load %arg14[%c0_35, %c0_36] : memref<8x64xf32, #tpu.memory_space<vmem>>, vector<8x64xf32>
    tpu.vector_store %arg14[%c0_35, %c0_36], %47 {strides = array<i32>} : memref<8x64xf32, #tpu.memory_space<vmem>>, vector<8x64xf32>,
    return
  }
  func.func @transform_0(%arg0: i32) -> (i32, i32) {
    %c0_i32 = arith.constant 0 : i32
    %c0_i32_0 = arith.constant 0 : i32
    return %arg0, %c0_i32 : i32, i32
  }
  func.func @transform_1(%arg0: i32) -> (i32, i32) {
    %c0_i32 = arith.constant 0 : i32
    %c0_i32_0 = arith.constant 0 : i32
    %c0_i32_1 = arith.constant 0 : i32
    return %c0_i32, %c0_i32_0 : i32, i32
  }
  func.func @transform_2(%arg0: i32) -> (i32, i32) {
    %c0_i32 = arith.constant 0 : i32
    %c0_i32_0 = arith.constant 0 : i32
    %c0_i32_1 = arith.constant 0 : i32
    return %c0_i32, %c0_i32_0 : i32, i32
  }
  func.func @transform_3(%arg0: i32) -> (i32, i32) {
    %c0_i32 = arith.constant 0 : i32
    %c0_i32_0 = arith.constant 0 : i32
    %c0_i32_1 = arith.constant 0 : i32
    return %c0_i32, %c0_i32_0 : i32, i32
  }
  func.func @transform_4(%arg0: i32) -> (i32, i32) {
    %c0_i32 = arith.constant 0 : i32
    %c0_i32_0 = arith.constant 0 : i32
    %c0_i32_1 = arith.constant 0 : i32
    return %c0_i32, %c0_i32_0 : i32, i32
  }
  func.func @transform_5(%arg0: i32) -> (i32, i32) {
    %c0_i32 = arith.constant 0 : i32
    %c0_i32_0 = arith.constant 0 : i32
    %c0_i32_1 = arith.constant 0 : i32
    return %c0_i32, %c0_i32_0 : i32, i32
  }
  func.func @transform_6(%arg0: i32) -> (i32, i32) {
    %c0_i32 = arith.constant 0 : i32
    %c0_i32_0 = arith.constant 0 : i32
    %c0_i32_1 = arith.constant 0 : i32
    return %c0_i32, %c0_i32_0 : i32, i32
  }
  func.func @transform_7(%arg0: i32) -> (i32, i32) {
    %c0_i32 = arith.constant 0 : i32
    %c0_i32_0 = arith.constant 0 : i32
    %c0_i32_1 = arith.constant 0 : i32
    return %c0_i32, %c0_i32_0 : i32, i32
  }
  func.func @transform_8(%arg0: i32) -> (i32, i32) {
    %c0_i32 = arith.constant 0 : i32
    %c0_i32_0 = arith.constant 0 : i32
    %c0_i32_1 = arith.constant 0 : i32
    return %c0_i32, %c0_i32_0 : i32, i32
  }
  func.func @transform_9(%arg0: i32) -> (i32, i32) {
    %c0_i32 = arith.constant 0 : i32
    %c0_i32_0 = arith.constant 0 : i32
    %c0_i32_1 = arith.constant 0 : i32
    return %c0_i32, %c0_i32_0 : i32, i32
  }
  func.func @transform_10(%arg0: i32) -> (i32, i32) {
    %c0_i32 = arith.constant 0 : i32
    %c0_i32_0 = arith.constant 0 : i32
    %c0_i32_1 = arith.constant 0 : i32
    return %c0_i32, %c0_i32_0 : i32, i32
  }
  func.func @transform_11(%arg0: i32) -> (i32, i32) {
    %c0_i32 = arith.constant 0 : i32
    %c0_i32_0 = arith.constant 0 : i32
    %c0_i32_1 = arith.constant 0 : i32
    return %c0_i32, %c0_i32_0 : i32, i32
  }
  func.func @transform_12(%arg0: i32) -> (i32, i32) {
    %c0_i32 = arith.constant 0 : i32
    %c0_i32_0 = arith.constant 0 : i32
    %c0_i32_1 = arith.constant 0 : i32
    return %c0_i32, %c0_i32_0 : i32, i32
  }
  func.func @transform_13(%arg0: i32) -> (i32, i32) {
    %c0_i32 = arith.constant 0 : i32
    %c0_i32_0 = arith.constant 0 : i32
    return %arg0, %c0_i32 : i32, i32
  }
}

</mosaic_0001>

<llo_original>
// kernel: autoencoder_forward.1
$region0: #{autoencoder_forward.1}
  #allocation0 [shape = 'u32[]', space=smem, size = 0x4, offset = 0x4, fixed_abs, tag = 'smem constant byte address 0x4 - core index']
  #allocation1 [shape = 'u32[72,128]{1,0:T(1,128)}', space=vmem, size = 0x9000, scoped, tag = 'internal scratch']
  %s0 = inlined_call_operand.vmem [shape: f32[16,64], index: 0, kind: input, shape index: {}]
  %s1 = inlined_call_operand.vmem [shape: bf16[64,512], index: 1, kind: input, shape index: {}]
  %s2 = inlined_call_operand.vmem [shape: f32[1,512], index: 2, kind: input, shape index: {}]
  %s3 = inlined_call_operand.vmem [shape: bf16[512,512], index: 3, kind: input, shape index: {}]
  %s4 = inlined_call_operand.vmem [shape: f32[1,512], index: 4, kind: input, shape index: {}]
  %s5 = inlined_call_operand.vmem [shape: bf16[512,512], index: 5, kind: input, shape index: {}]
  %s6 = inlined_call_operand.vmem [shape: f32[1,512], index: 6, kind: input, shape index: {}]
  %s7 = inlined_call_operand.vmem [shape: bf16[512,512], index: 7, kind: input, shape index: {}]
  %s8 = inlined_call_operand.vmem [shape: f32[1,512], index: 8, kind: input, shape index: {}]
  %s9 = inlined_call_operand.vmem [shape: bf16[512,512], index: 9, kind: input, shape index: {}]
  %s10 = inlined_call_operand.vmem [shape: f32[1,512], index: 10, kind: input, shape index: {}]
  %s11 = inlined_call_operand.vmem [shape: bf16[512,64], index: 11, kind: input, shape index: {}]
  %s12 = inlined_call_operand.vmem [shape: f32[1,64], index: 12, kind: input, shape index: {}]
  %s13 = inlined_call_operand.hbm [shape: f32[16,64], index: 13, kind: output, shape index: {}]
  %s14 = sld [smem:[#allocation0]]
  $region85: #{autoencoder_forward.1} parent=0
    _
  %s16 = ssub.s32 1, %s14
  %s17 = scalar_select 0, %s16, %s14
  $region1: #{autoencoder_forward.1} parent=0
    #allocation2 [shape = 'u8[8192]{0}', space=vmem, size = 0x2000, scoped, tag = 'output window, operand 0']
    #allocation3 [shape = 's32[2]{0}', space=sflag, size = 0x8, scoped, tag = 'scoped memory for autoencoder_forward.1']
    %18 = vsyncpa [#allocation3], 0
    %s19 = scalar_lea.sflag [#allocation3], 1
    %20 = vsyncpa %s19, 0
    loop: start=0, step=1, limit=4
    $region2: #{autoencoder_forward.1} parent=1 // loop_pre_header
      _
    $region3: #{autoencoder_forward.1} parent=1 // loop_header
      %s22 = sphi 0, %s26
      %p23 = scmp.ge.s32.totalorder %s22, 4
      %s32 = sphi 0, %s34
      %s35 = sphi 0, %s32
      %s36 = sphi 0, %s35
      %s52 = sphi 0, %s36
      %s56 = sphi 0, %s56
      %s58 = sphi 0, %s56
      %s59 = sphi 0, %s58
      %s73 = sphi 0, %s59
      %s77 = sphi 0, %s77
      %s79 = sphi 0, %s77
      %s80 = sphi 0, %s79
      %s94 = sphi 0, %s80
      %s98 = sphi 0, %s98
      %s100 = sphi 0, %s98
      %s101 = sphi 0, %s100
      %s115 = sphi 0, %s101
      %s119 = sphi 0, %s119
      %s121 = sphi 0, %s119
      %s122 = sphi 0, %s121
      %s136 = sphi 0, %s122
      %s140 = sphi 0, %s140
      %s142 = sphi 0, %s140
      %s143 = sphi 0, %s142
      %s157 = sphi 0, %s143
      %s161 = sphi 0, %s161
      %s163 = sphi 0, %s161
      %s164 = sphi 0, %s163
      %s178 = sphi 0, %s164
      %s182 = sphi 0, %s182
      %s184 = sphi 0, %s182
      %s185 = sphi 0, %s184
      %s199 = sphi 0, %s185
      %s203 = sphi 0, %s203
      %s205 = sphi 0, %s203
      %s206 = sphi 0, %s205
      %s220 = sphi 0, %s206
      %s224 = sphi 0, %s224
      %s226 = sphi 0, %s224
      %s227 = sphi 0, %s226
      %s241 = sphi 0, %s227
      %s245 = sphi 0, %s245
      %s247 = sphi 0, %s245
      %s248 = sphi 0, %s247
      %s262 = sphi 0, %s248
      %s266 = sphi 0, %s266
      %s268 = sphi 0, %s266
      %s269 = sphi 0, %s268
      %s283 = sphi 0, %s269
      %s287 = sphi 0, %s287
      %s289 = sphi 0, %s287
      %s290 = sphi 0, %s289
      %s304 = sphi 0, %s290
      %s310 = sphi 0, %s312
      %s313 = sphi 0, %s310
      %s314 = sphi 0, %s313
      %s330 = sphi 0, %s314
    $region4: #{autoencoder_forward.1} parent=1 // loop_header_branch
      %25 = sbr.rel (%p23) target = $region8
    $region5: #{autoencoder_forward.1} parent=1 // loop_body
      %s27 = ssub.s32 %s22, 1
      %s28 = ssub.s32 %s22, 2
      %s29 = sadd.s32 %s22, 1
      %s30 = ssub.s32 %s22, %s29
      %p31 = scmp.eq.s32.totalorder %s30, 0
      %s33 = sadd.s32 %s32, 1
      %s34 = scalar_select %p31, %s32, %s33
      %p37 = pneg %p31
      %p38 = scmp.eq.s32.totalorder %s22, 1
      %p39 = por %p37, %p38
      %p40 = scmp.ne.s32.totalorder %s32, %s35
      %p41 = scmp.eq.s32.totalorder %s22, 0
      %p42 = por %p40, %p41
      %p43 = scmp.ne.s32.totalorder %s32, %s35
      %p44 = scmp.eq.s32.totalorder %s27, 1
      %p45 = por %p43, %p44
      %p46 = scmp.ne.s32.totalorder %s35, %s36
      %p47 = scmp.eq.s32.totalorder %s27, 0
      %p48 = por %p46, %p47
      %p49 = scmp.ne.s32.totalorder %s35, %s36
      %p50 = scmp.eq.s32.totalorder %s28, 1
      %p51 = por %p49, %p50
      %p53 = scmp.ne.s32.totalorder %s36, %s52
      %p54 = scmp.eq.s32.totalorder %s28, 0
      %p55 = por %p53, %p54
      %s57 = sadd.s32 %s56, 1
      %p60 = scmp.eq.s32.totalorder %s22, 1
      %p61 = scmp.ne.s32.totalorder %s56, %s58
      %p62 = scmp.eq.s32.totalorder %s22, 0
      %p63 = por %p61, %p62
      %p64 = scmp.ne.s32.totalorder %s56, %s58
      %p65 = scmp.eq.s32.totalorder %s27, 1
      %p66 = por %p64, %p65
      %p67 = scmp.ne.s32.totalorder %s58, %s59
      %p68 = scmp.eq.s32.totalorder %s27, 0
      %p69 = por %p67, %p68
      %p70 = scmp.ne.s32.totalorder %s58, %s59
      %p71 = scmp.eq.s32.totalorder %s28, 1
      %p72 = por %p70, %p71
      %p74 = scmp.ne.s32.totalorder %s59, %s73
      %p75 = scmp.eq.s32.totalorder %s28, 0
      %p76 = por %p74, %p75
      %s78 = sadd.s32 %s77, 1
      %p81 = scmp.eq.s32.totalorder %s22, 1
      %p82 = scmp.ne.s32.totalorder %s77, %s79
      %p83 = scmp.eq.s32.totalorder %s22, 0
      %p84 = por %p82, %p83
      %p85 = scmp.ne.s32.totalorder %s77, %s79
      %p86 = scmp.eq.s32.totalorder %s27, 1
      %p87 = por %p85, %p86
      %p88 = scmp.ne.s32.totalorder %s79, %s80
      %p89 = scmp.eq.s32.totalorder %s27, 0
      %p90 = por %p88, %p89
      %p91 = scmp.ne.s32.totalorder %s79, %s80
      %p92 = scmp.eq.s32.totalorder %s28, 1
      %p93 = por %p91, %p92
      %p95 = scmp.ne.s32.totalorder %s80, %s94
      %p96 = scmp.eq.s32.totalorder %s28, 0
      %p97 = por %p95, %p96
      %s99 = sadd.s32 %s98, 1
      %p102 = scmp.eq.s32.totalorder %s22, 1
      %p103 = scmp.ne.s32.totalorder %s98, %s100
      %p104 = scmp.eq.s32.totalorder %s22, 0
      %p105 = por %p103, %p104
      %p106 = scmp.ne.s32.totalorder %s98, %s100
      %p107 = scmp.eq.s32.totalorder %s27, 1
      %p108 = por %p106, %p107
      %p109 = scmp.ne.s32.totalorder %s100, %s101
      %p110 = scmp.eq.s32.totalorder %s27, 0
      %p111 = por %p109, %p110
      %p112 = scmp.ne.s32.totalorder %s100, %s101
      %p113 = scmp.eq.s32.totalorder %s28, 1
      %p114 = por %p112, %p113
      %p116 = scmp.ne.s32.totalorder %s101, %s115
      %p117 = scmp.eq.s32.totalorder %s28, 0
      %p118 = por %p116, %p117
      %s120 = sadd.s32 %s119, 1
      %p123 = scmp.eq.s32.totalorder %s22, 1
      %p124 = scmp.ne.s32.totalorder %s119, %s121
      %p125 = scmp.eq.s32.totalorder %s22, 0
      %p126 = por %p124, %p125
      %p127 = scmp.ne.s32.totalorder %s119, %s121
      %p128 = scmp.eq.s32.totalorder %s27, 1
      %p129 = por %p127, %p128
      %p130 = scmp.ne.s32.totalorder %s121, %s122
      %p131 = scmp.eq.s32.totalorder %s27, 0
      %p132 = por %p130, %p131
      %p133 = scmp.ne.s32.totalorder %s121, %s122
      %p134 = scmp.eq.s32.totalorder %s28, 1
      %p135 = por %p133, %p134
      %p137 = scmp.ne.s32.totalorder %s122, %s136
      %p138 = scmp.eq.s32.totalorder %s28, 0
      %p139 = por %p137, %p138
      %s141 = sadd.s32 %s140, 1
      %p144 = scmp.eq.s32.totalorder %s22, 1
      %p145 = scmp.ne.s32.totalorder %s140, %s142
      %p146 = scmp.eq.s32.totalorder %s22, 0
      %p147 = por %p145, %p146
      %p148 = scmp.ne.s32.totalorder %s140, %s142
      %p149 = scmp.eq.s32.totalorder %s27, 1
      %p150 = por %p148, %p149
      %p151 = scmp.ne.s32.totalorder %s142, %s143
      %p152 = scmp.eq.s32.totalorder %s27, 0
      %p153 = por %p151, %p152
      %p154 = scmp.ne.s32.totalorder %s142, %s143
      %p155 = scmp.eq.s32.totalorder %s28, 1
      %p156 = por %p154, %p155
      %p158 = scmp.ne.s32.totalorder %s143, %s157
      %p159 = scmp.eq.s32.totalorder %s28, 0
      %p160 = por %p158, %p159
      %s162 = sadd.s32 %s161, 1
      %p165 = scmp.eq.s32.totalorder %s22, 1
      %p166 = scmp.ne.s32.totalorder %s161, %s163
      %p167 = scmp.eq.s32.totalorder %s22, 0
      %p168 = por %p166, %p167
      %p169 = scmp.ne.s32.totalorder %s161, %s163
      %p170 = scmp.eq.s32.totalorder %s27, 1
      %p171 = por %p169, %p170
      %p172 = scmp.ne.s32.totalorder %s163, %s164
      %p173 = scmp.eq.s32.totalorder %s27, 0
      %p174 = por %p172, %p173
      %p175 = scmp.ne.s32.totalorder %s163, %s164
      %p176 = scmp.eq.s32.totalorder %s28, 1
      %p177 = por %p175, %p176
      %p179 = scmp.ne.s32.totalorder %s164, %s178
      %p180 = scmp.eq.s32.totalorder %s28, 0
      %p181 = por %p179, %p180
      %s183 = sadd.s32 %s182, 1
      %p186 = scmp.eq.s32.totalorder %s22, 1
      %p187 = scmp.ne.s32.totalorder %s182, %s184
      %p188 = scmp.eq.s32.totalorder %s22, 0
      %p189 = por %p187, %p188
      %p190 = scmp.ne.s32.totalorder %s182, %s184
      %p191 = scmp.eq.s32.totalorder %s27, 1
      %p192 = por %p190, %p191
      %p193 = scmp.ne.s32.totalorder %s184, %s185
      %p194 = scmp.eq.s32.totalorder %s27, 0
      %p195 = por %p193, %p194
      %p196 = scmp.ne.s32.totalorder %s184, %s185
      %p197 = scmp.eq.s32.totalorder %s28, 1
      %p198 = por %p196, %p197
      %p200 = scmp.ne.s32.totalorder %s185, %s199
      %p201 = scmp.eq.s32.totalorder %s28, 0
      %p202 = por %p200, %p201
      %s204 = sadd.s32 %s203, 1
      %p207 = scmp.eq.s32.totalorder %s22, 1
      %p208 = scmp.ne.s32.totalorder %s203, %s205
      %p209 = scmp.eq.s32.totalorder %s22, 0
      %p210 = por %p208, %p209
      %p211 = scmp.ne.s32.totalorder %s203, %s205
      %p212 = scmp.eq.s32.totalorder %s27, 1
      %p213 = por %p211, %p212
      %p214 = scmp.ne.s32.totalorder %s205, %s206
      %p215 = scmp.eq.s32.totalorder %s27, 0
      %p216 = por %p214, %p215
      %p217 = scmp.ne.s32.totalorder %s205, %s206
      %p218 = scmp.eq.s32.totalorder %s28, 1
      %p219 = por %p217, %p218
      %p221 = scmp.ne.s32.totalorder %s206, %s220
      %p222 = scmp.eq.s32.totalorder %s28, 0
      %p223 = por %p221, %p222
      %s225 = sadd.s32 %s224, 1
      %p228 = scmp.eq.s32.totalorder %s22, 1
      %p229 = scmp.ne.s32.totalorder %s224, %s226
      %p230 = scmp.eq.s32.totalorder %s22, 0
      %p231 = por %p229, %p230
      %p232 = scmp.ne.s32.totalorder %s224, %s226
      %p233 = scmp.eq.s32.totalorder %s27, 1
      %p234 = por %p232, %p233
      %p235 = scmp.ne.s32.totalorder %s226, %s227
      %p236 = scmp.eq.s32.totalorder %s27, 0
      %p237 = por %p235, %p236
      %p238 = scmp.ne.s32.totalorder %s226, %s227
      %p239 = scmp.eq.s32.totalorder %s28, 1
      %p240 = por %p238, %p239
      %p242 = scmp.ne.s32.totalorder %s227, %s241
      %p243 = scmp.eq.s32.totalorder %s28, 0
      %p244 = por %p242, %p243
      %s246 = sadd.s32 %s245, 1
      %p249 = scmp.eq.s32.totalorder %s22, 1
      %p250 = scmp.ne.s32.totalorder %s245, %s247
      %p251 = scmp.eq.s32.totalorder %s22, 0
      %p252 = por %p250, %p251
      %p253 = scmp.ne.s32.totalorder %s245, %s247
      %p254 = scmp.eq.s32.totalorder %s27, 1
      %p255 = por %p253, %p254
      %p256 = scmp.ne.s32.totalorder %s247, %s248
      %p257 = scmp.eq.s32.totalorder %s27, 0
      %p258 = por %p256, %p257
      %p259 = scmp.ne.s32.totalorder %s247, %s248
      %p260 = scmp.eq.s32.totalorder %s28, 1
      %p261 = por %p259, %p260
      %p263 = scmp.ne.s32.totalorder %s248, %s262
      %p264 = scmp.eq.s32.totalorder %s28, 0
      %p265 = por %p263, %p264
      %s267 = sadd.s32 %s266, 1
      %p270 = scmp.eq.s32.totalorder %s22, 1
      %p271 = scmp.ne.s32.totalorder %s266, %s268
      %p272 = scmp.eq.s32.totalorder %s22, 0
      %p273 = por %p271, %p272
      %p274 = scmp.ne.s32.totalorder %s266, %s268
      %p275 = scmp.eq.s32.totalorder %s27, 1
      %p276 = por %p274, %p275
      %p277 = scmp.ne.s32.totalorder %s268, %s269
      %p278 = scmp.eq.s32.totalorder %s27, 0
      %p279 = por %p277, %p278
      %p280 = scmp.ne.s32.totalorder %s268, %s269
      %p281 = scmp.eq.s32.totalorder %s28, 1
      %p282 = por %p280, %p281
      %p284 = scmp.ne.s32.totalorder %s269, %s283
      %p285 = scmp.eq.s32.totalorder %s28, 0
      %p286 = por %p284, %p285
      %s288 = sadd.s32 %s287, 1
      %p291 = scmp.eq.s32.totalorder %s22, 1
      %p292 = scmp.ne.s32.totalorder %s287, %s289
      %p293 = scmp.eq.s32.totalorder %s22, 0
      %p294 = por %p292, %p293
      %p295 = scmp.ne.s32.totalorder %s287, %s289
      %p296 = scmp.eq.s32.totalorder %s27, 1
      %p297 = por %p295, %p296
      %p298 = scmp.ne.s32.totalorder %s289, %s290
      %p299 = scmp.eq.s32.totalorder %s27, 0
      %p300 = por %p298, %p299
      %p301 = scmp.ne.s32.totalorder %s289, %s290
      %p302 = scmp.eq.s32.totalorder %s28, 1
      %p303 = por %p301, %p302
      %p305 = scmp.ne.s32.totalorder %s290, %s304
      %p306 = scmp.eq.s32.totalorder %s28, 0
      %p307 = por %p305, %p306
      %s308 = ssub.s32 %s22, %s29
      %p309 = scmp.eq.s32.totalorder %s308, 0
      %s311 = sadd.s32 %s310, 1
      %s312 = scalar_select %p309, %s310, %s311
      %p315 = pneg %p309
      %p316 = scmp.eq.s32.totalorder %s22, 1
      %p317 = por %p315, %p316
      %p318 = scmp.ne.s32.totalorder %s310, %s313
      %p319 = scmp.eq.s32.totalorder %s22, 0
      %p320 = por %p318, %p319
      %p321 = scmp.ne.s32.totalorder %s310, %s313
      %p322 = scmp.eq.s32.totalorder %s27, 1
      %p323 = por %p321, %p322
      %p324 = scmp.ne.s32.totalorder %s313, %s314
      %p325 = scmp.eq.s32.totalorder %s27, 0
      %p326 = por %p324, %p325
      %p327 = scmp.ne.s32.totalorder %s313, %s314
      %p328 = scmp.eq.s32.totalorder %s28, 1
      %p329 = por %p327, %p328
      %p331 = scmp.ne.s32.totalorder %s314, %s330
      %p332 = scmp.eq.s32.totalorder %s28, 0
      %p333 = por %p331, %p332
      %p334 = scmp.le.s32.totalorder 1, %s22
      %p335 = scmp.lt.s32.totalorder %s22, 3
      %p336 = pnand %p334, %p335
      %p337 = pneg %p336
      // Predicated region
      $region9: #{autoencoder_forward.1} parent=5 // pred_check
        _
      $region10: #{autoencoder_forward.1} parent=5 // pred_check_branch
        %339 = sbr.rel (%p336) target = $region12
      $region11: #{autoencoder_forward.1} parent=5 // pred_region
        %s340 = ssub.s32 %s22, 1
        // Predicated region
        $region13: #{autoencoder_forward.1} parent=11 // pred_check
          %p341 = pneg %p69
        $region14: #{autoencoder_forward.1} parent=11 // pred_check_branch
          %343 = sbr.rel (%p341) target = $region16
        $region15: #{autoencoder_forward.1} parent=11 // pred_region
          _
        $region16: #{autoencoder_forward.1} parent=11 // pred_fallthru
          _
        // Predicated region
        $region17: #{autoencoder_forward.1} parent=11 // pred_check
          %p344 = pneg %p90
        $region18: #{autoencoder_forward.1} parent=11 // pred_check_branch
          %346 = sbr.rel (%p344) target = $region20
        $region19: #{autoencoder_forward.1} parent=11 // pred_region
          _
        $region20: #{autoencoder_forward.1} parent=11 // pred_fallthru
          _
        // Predicated region
        $region21: #{autoencoder_forward.1} parent=11 // pred_check
          %p347 = pneg %p111
        $region22: #{autoencoder_forward.1} parent=11 // pred_check_branch
          %349 = sbr.rel (%p347) target = $region24
        $region23: #{autoencoder_forward.1} parent=11 // pred_region
          _
        $region24: #{autoencoder_forward.1} parent=11 // pred_fallthru
          _
        // Predicated region
        $region25: #{autoencoder_forward.1} parent=11 // pred_check
          %p350 = pneg %p132
        $region26: #{autoencoder_forward.1} parent=11 // pred_check_branch
          %352 = sbr.rel (%p350) target = $region28
        $region27: #{autoencoder_forward.1} parent=11 // pred_region
          _
        $region28: #{autoencoder_forward.1} parent=11 // pred_fallthru
          _
        // Predicated region
        $region29: #{autoencoder_forward.1} parent=11 // pred_check
          %p353 = pneg %p153
        $region30: #{autoencoder_forward.1} parent=11 // pred_check_branch
          %355 = sbr.rel (%p353) target = $region32
        $region31: #{autoencoder_forward.1} parent=11 // pred_region
          _
        $region32: #{autoencoder_forward.1} parent=11 // pred_fallthru
          _
        // Predicated region
        $region33: #{autoencoder_forward.1} parent=11 // pred_check
          %p356 = pneg %p174
        $region34: #{autoencoder_forward.1} parent=11 // pred_check_branch
          %358 = sbr.rel (%p356) target = $region36
        $region35: #{autoencoder_forward.1} parent=11 // pred_region
          _
        $region36: #{autoencoder_forward.1} parent=11 // pred_fallthru
          _
        // Predicated region
        $region37: #{autoencoder_forward.1} parent=11 // pred_check
          %p359 = pneg %p195
        $region38: #{autoencoder_forward.1} parent=11 // pred_check_branch
          %361 = sbr.rel (%p359) target = $region40
        $region39: #{autoencoder_forward.1} parent=11 // pred_region
          _
        $region40: #{autoencoder_forward.1} parent=11 // pred_fallthru
          _
        // Predicated region
        $region41: #{autoencoder_forward.1} parent=11 // pred_check
          %p362 = pneg %p216
        $region42: #{autoencoder_forward.1} parent=11 // pred_check_branch
          %364 = sbr.rel (%p362) target = $region44
        $region43: #{autoencoder_forward.1} parent=11 // pred_region
          _
        $region44: #{autoencoder_forward.1} parent=11 // pred_fallthru
          _
        // Predicated region
        $region45: #{autoencoder_forward.1} parent=11 // pred_check
          %p365 = pneg %p237
        $region46: #{autoencoder_forward.1} parent=11 // pred_check_branch
          %367 = sbr.rel (%p365) target = $region48
        $region47: #{autoencoder_forward.1} parent=11 // pred_region
          _
        $region48: #{autoencoder_forward.1} parent=11 // pred_fallthru
          _
        // Predicated region
        $region49: #{autoencoder_forward.1} parent=11 // pred_check
          %p368 = pneg %p258
        $region50: #{autoencoder_forward.1} parent=11 // pred_check_branch
          %370 = sbr.rel (%p368) target = $region52
        $region51: #{autoencoder_forward.1} parent=11 // pred_region
          _
        $region52: #{autoencoder_forward.1} parent=11 // pred_fallthru
          _
        // Predicated region
        $region53: #{autoencoder_forward.1} parent=11 // pred_check
          %p371 = pneg %p279
        $region54: #{autoencoder_forward.1} parent=11 // pred_check_branch
          %373 = sbr.rel (%p371) target = $region56
        $region55: #{autoencoder_forward.1} parent=11 // pred_region
          _
        $region56: #{autoencoder_forward.1} parent=11 // pred_fallthru
          _
        // Predicated region
        $region57: #{autoencoder_forward.1} parent=11 // pred_check
          %p374 = pneg %p300
        $region58: #{autoencoder_forward.1} parent=11 // pred_check_branch
          %376 = sbr.rel (%p374) target = $region60
        $region59: #{autoencoder_forward.1} parent=11 // pred_region
          _
        $region60: #{autoencoder_forward.1} parent=11 // pred_fallthru
          _
      $region12: #{autoencoder_forward.1} parent=5 // pred_fallthru
        _
      %p377 = scmp.lt.s32.totalorder %s22, 2
      // Predicated region
      $region61: #{autoencoder_forward.1} parent=5 // pred_check
        %p378 = pneg %p377
      $region62: #{autoencoder_forward.1} parent=5 // pred_check_branch
        %380 = sbr.rel (%p378) target = $region64
      $region63: #{autoencoder_forward.1} parent=5 // pred_region
        // Predicated region
        $region65: #{autoencoder_forward.1} parent=63 // pred_check
          %p381 = pneg %p42
        $region66: #{autoencoder_forward.1} parent=63 // pred_check_branch
          %383 = sbr.rel (%p381) target = $region68
        $region67: #{autoencoder_forward.1} parent=63 // pred_region
          %p384 = scmp.lt.s32.totalorder %s22, 1
          %s385 = scalar_select %p384, %s22, 1
          %s386 = smul.addr %s385, 8
          %s387 = scalar_lea.vmem %s0, %s386
        $region68: #{autoencoder_forward.1} parent=63 // pred_fallthru
          _
      $region64: #{autoencoder_forward.1} parent=5 // pred_fallthru
        _
      %p388 = scmp.le.s32.totalorder 1, %s22
      %p389 = scmp.lt.s32.totalorder %s22, 3
      %p390 = pnand %p388, %p389
      %p391 = pneg %p390
      // Predicated region
      $region69: #{autoencoder_forward.1} parent=5 // pred_check
        _
      $region70: #{autoencoder_forward.1} parent=5 // pred_check_branch
        %393 = sbr.rel (%p390) target = $region72
      $region71: #{autoencoder_forward.1} parent=5 // pred_region
        %s394 = ssub.s32 %s22, 1
        %p395 = scmp.lt.s32.totalorder %s27, 1
        %s396 = scalar_select %p395, %s27, 1
        %s397 = smul.addr %s396, 8
        %s398 = scalar_lea.vmem %s0, %s397
        %p399 = pneg %p48
        %p400 = pneg %p45
        %p401 = pneg %p69
        %p402 = pneg %p66
        %p403 = pneg %p90
        %p404 = pneg %p87
        %p405 = pneg %p111
        %p406 = pneg %p108
        %p407 = pneg %p132
        %p408 = pneg %p129
        %p409 = pneg %p153
        %p410 = pneg %p150
        %p411 = pneg %p174
        %p412 = pneg %p171
        %p413 = pneg %p195
        %p414 = pneg %p192
        %p415 = pneg %p216
        %p416 = pneg %p213
        %p417 = pneg %p237
        %p418 = pneg %p234
        %p419 = pneg %p258
        %p420 = pneg %p255
        %p421 = pneg %p279
        %p422 = pneg %p276
        %p423 = pneg %p300
        %p424 = pneg %p297
        %p425 = pneg %p326
        %p426 = pneg %p323
        %s427 = sand.u32 %s313, 1
        %s428 = scalar_lea.sflag [#allocation3], %s427
        %s429 = sand.u32 %s313, 1
        %s430 = smul.addr %s429, 8
        %s431 = scalar_lea.vmem [#allocation2], %s430
        %p432 = scmp.lt.s32.totalorder %s27, 1
        %s433 = scalar_select %p432, %s27, 1
        %s434 = smul.addr %s433, 8
        %s435 = scalar_lea.vmem %s0, %s434
        %v437 = vld [vmem:[%s435] sm:$0xff]
        %v438 = vpack.c.bf16 %v437, %v437
        %v439 = vld [vmem:[%s1] sm:$0xff]
        %v440 = vld [vmem:[%s1 + $0x8] sm:$0xff]
        %v441 = vld [vmem:[%s1 + $0x10] sm:$0xff]
        %v442 = vld [vmem:[%s1 + $0x18] sm:$0xff]
        %v443 = vld [vmem:[%s1 + $0x20] sm:$0xff]
        %v444 = vld [vmem:[%s1 + $0x28] sm:$0xff]
        %v445 = vld [vmem:[%s1 + $0x30] sm:$0xff]
        %v446 = vld [vmem:[%s1 + $0x38] sm:$0xff]
        %v447 = vld [vmem:[%s1 + $0x40] sm:$0xff]
        %v448 = vld [vmem:[%s1 + $0x48] sm:$0xff]
        %v449 = vld [vmem:[%s1 + $0x50] sm:$0xff]
        %v450 = vld [vmem:[%s1 + $0x58] sm:$0xff]
        %v451 = vld [vmem:[%s1 + $0x60] sm:$0xff]
        %v452 = vld [vmem:[%s1 + $0x68] sm:$0xff]
        %v453 = vld [vmem:[%s1 + $0x70] sm:$0xff]
        %v454 = vld [vmem:[%s1 + $0x78] sm:$0xff]
        %v455 = vld [vmem:[%s2] sm:$0xf]
        %v457 = vperm.slane %v455, 0
        %v458 = vperm.slane %v455, 1
        %v459 = vperm.slane %v455, 2
        %v460 = vperm.slane %v455, 3
        %v481 = vunpack.c.l.b16 %v439
        %v482 = vunpack.c.h.b16 %v439
        %v483 = vunpack.c.l.b16 %v440
        %v484 = vunpack.c.h.b16 %v440
        %v485 = vunpack.c.l.b16 %v441
        %v486 = vunpack.c.h.b16 %v441
        %v487 = vunpack.c.l.b16 %v442
        %v488 = vunpack.c.h.b16 %v442
        %v489 = vunpack.c.l.b16 %v443
        %v490 = vunpack.c.h.b16 %v443
        %v491 = vunpack.c.l.b16 %v444
        %v492 = vunpack.c.h.b16 %v444
        %v493 = vunpack.c.l.b16 %v445
        %v494 = vunpack.c.h.b16 %v445
        %v495 = vunpack.c.l.b16 %v446
        %v496 = vunpack.c.h.b16 %v446
        %v497 = vunpack.c.l.b16 %v447
        %v498 = vunpack.c.h.b16 %v447
        %v499 = vunpack.c.l.b16 %v448
        %v500 = vunpack.c.h.b16 %v448
        %v501 = vunpack.c.l.b16 %v449
        %v502 = vunpack.c.h.b16 %v449
        %v503 = vunpack.c.l.b16 %v450
        %v504 = vunpack.c.h.b16 %v450
        %v505 = vunpack.c.l.b16 %v451
        %v506 = vunpack.c.h.b16 %v451
        %v507 = vunpack.c.l.b16 %v452
        %v508 = vunpack.c.h.b16 %v452
        %v509 = vunpack.c.l.b16 %v453
        %v510 = vunpack.c.h.b16 %v453
        %v511 = vunpack.c.l.b16 %v454
        %v512 = vunpack.c.h.b16 %v454
        %v513 = vpack.c.b16 %v485, %v481
        %v514 = vpack.c.b16 %v486, %v482
        %v515 = vpack.c.b16 %v487, %v483
        %v516 = vpack.c.b16 %v488, %v484
        %v517 = vpack.c.b16 %v493, %v489
        %v518 = vpack.c.b16 %v494, %v490
        %v519 = vpack.c.b16 %v495, %v491
        %v520 = vpack.c.b16 %v496, %v492
        %v521 = vpack.c.b16 %v501, %v497
        %v522 = vpack.c.b16 %v502, %v498
        %v523 = vpack.c.b16 %v503, %v499
        %v524 = vpack.c.b16 %v504, %v500
        %v525 = vpack.c.b16 %v509, %v505
        %v526 = vpack.c.b16 %v510, %v506
        %v527 = vpack.c.b16 %v511, %v507
        %v528 = vpack.c.b16 %v512, %v508
        %vm545 = vcmask 523264
        %v547 = vsel %vm545, %v438, 0
        %549 = vmatpush.bf16.msra.mxu0 0
        %550 = vmatpush.bf16.msra.mxu0 0
        %551 = vmatpush.bf16.msra.mxu0 0
        %552 = vmatpush.bf16.msra.mxu0 0
        %553 = vmatpush.bf16.msra.mxu0 %v525
        %554 = vmatpush.bf16.msra.mxu0 %v521
        %555 = vmatpush.bf16.msra.mxu0 %v517
        %556 = vmatpush.bf16.msra.mxu0 %v513
        %557 = vmatmul.bf16.gmra.mxu0 %v547
        %v558 = vpop.f32.mrf.mxu0
        %v559 = vadd.f32 %v457, %v558
        %v560 = vpop.f32.mrf.mxu0
        %561 = vdwg.mxu0
        %562 = vmatpush.bf16.msra.mxu0 0
        %563 = vmatpush.bf16.msra.mxu0 0
        %564 = vmatpush.bf16.msra.mxu0 0
        %565 = vmatpush.bf16.msra.mxu0 0
        %566 = vmatpush.bf16.msra.mxu0 %v526
        %567 = vmatpush.bf16.msra.mxu0 %v522
        %568 = vmatpush.bf16.msra.mxu0 %v518
        %569 = vmatpush.bf16.msra.mxu0 %v514
        %570 = vmatmul.bf16.gmra.mxu0 %v547
        %v571 = vpop.f32.mrf.mxu0
        %v572 = vadd.f32 %v458, %v571
        %v573 = vpop.f32.mrf.mxu0
        %574 = vdwg.mxu0
        %575 = vmatpush.bf16.msra.mxu0 0
        %576 = vmatpush.bf16.msra.mxu0 0
        %577 = vmatpush.bf16.msra.mxu0 0
        %578 = vmatpush.bf16.msra.mxu0 0
        %579 = vmatpush.bf16.msra.mxu0 %v527
        %580 = vmatpush.bf16.msra.mxu0 %v523
        %581 = vmatpush.bf16.msra.mxu0 %v519
        %582 = vmatpush.bf16.msra.mxu0 %v515
        %583 = vmatmul.bf16.gmra.mxu0 %v547
        %v584 = vpop.f32.mrf.mxu0
        %v585 = vadd.f32 %v459, %v584
        %v586 = vpop.f32.mrf.mxu0
        %587 = vdwg.mxu0
        %588 = vmatpush.bf16.msra.mxu0 0
        %589 = vmatpush.bf16.msra.mxu0 0
        %590 = vmatpush.bf16.msra.mxu0 0
        %591 = vmatpush.bf16.msra.mxu0 0
        %592 = vmatpush.bf16.msra.mxu0 %v528
        %593 = vmatpush.bf16.msra.mxu0 %v524
        %594 = vmatpush.bf16.msra.mxu0 %v520
        %595 = vmatpush.bf16.msra.mxu0 %v516
        %596 = vmatmul.bf16.gmra.mxu0 %v547
        %v597 = vpop.f32.mrf.mxu0
        %v598 = vadd.f32 %v460, %v597
        %v599 = vpop.f32.mrf.mxu0
        %600 = vdwg.mxu0
        %v601 = vmax.f32 %v559, 0.0
        %v602 = vmax.f32 %v572, 0.0
        %v603 = vmax.f32 %v585, 0.0
        %v604 = vmax.f32 %v598, 0.0
        %v605 = vpack.c.bf16 %v601, %v601
        %v606 = vpack.c.bf16 %v602, %v602
        %v607 = vpack.c.bf16 %v603, %v603
        %v608 = vpack.c.bf16 %v604, %v604
        %v609 = vld [vmem:[%s3] sm:$0xff]
        %v610 = vld [vmem:[%s3 + $0x8] sm:$0xff]
        %v611 = vld [vmem:[%s3 + $0x10] sm:$0xff]
        %v612 = vld [vmem:[%s3 + $0x18] sm:$0xff]
        %v613 = vld [vmem:[%s3 + $0x20] sm:$0xff]
        %v614 = vld [vmem:[%s3 + $0x28] sm:$0xff]
        %v615 = vld [vmem:[%s3 + $0x30] sm:$0xff]
        %v616 = vld [vmem:[%s3 + $0x38] sm:$0xff]
        %v617 = vld [vmem:[%s3 + $0x40] sm:$0xff]
        %v618 = vld [vmem:[%s3 + $0x48] sm:$0xff]
        %v619 = vld [vmem:[%s3 + $0x50] sm:$0xff]
        %v620 = vld [vmem:[%s3 + $0x58] sm:$0xff]
        %v621 = vld [vmem:[%s3 + $0x60] sm:$0xff]
        %v622 = vld [vmem:[%s3 + $0x68] sm:$0xff]
        %v623 = vld [vmem:[%s3 + $0x70] sm:$0xff]
        %v624 = vld [vmem:[%s3 + $0x78] sm:$0xff]
        %v625 = vld [vmem:[%s3 + $0x80] sm:$0xff]
        %v626 = vld [vmem:[%s3 + $0x88] sm:$0xff]
        %v627 = vld [vmem:[%s3 + $0x90] sm:$0xff]
        %v628 = vld [vmem:[%s3 + $0x98] sm:$0xff]
        %v629 = vld [vmem:[%s3 + $0xa0] sm:$0xff]
        %v630 = vld [vmem:[%s3 + $0xa8] sm:$0xff]
        %v631 = vld [vmem:[%s3 + $0xb0] sm:$0xff]
        %v632 = vld [vmem:[%s3 + $0xb8] sm:$0xff]
        %v633 = vld [vmem:[%s3 + $0xc0] sm:$0xff]
        %v634 = vld [vmem:[%s3 + $0xc8] sm:$0xff]
        %v635 = vld [vmem:[%s3 + $0xd0] sm:$0xff]
        %v636 = vld [vmem:[%s3 + $0xd8] sm:$0xff]
        %v637 = vld [vmem:[%s3 + $0xe0] sm:$0xff]
        %v638 = vld [vmem:[%s3 + $0xe8] sm:$0xff]
        %v639 = vld [vmem:[%s3 + $0xf0] sm:$0xff]
        %v640 = vld [vmem:[%s3 + $0xf8] sm:$0xff]
        %v641 = vld [vmem:[%s3 + $0x100] sm:$0xff]
        %v642 = vld [vmem:[%s3 + $0x108] sm:$0xff]
        %v643 = vld [vmem:[%s3 + $0x110] sm:$0xff]
        %v644 = vld [vmem:[%s3 + $0x118] sm:$0xff]
        %v645 = vld [vmem:[%s3 + $0x120] sm:$0xff]
        %v646 = vld [vmem:[%s3 + $0x128] sm:$0xff]
        %v647 = vld [vmem:[%s3 + $0x130] sm:$0xff]
        %v648 = vld [vmem:[%s3 + $0x138] sm:$0xff]
        %v649 = vld [vmem:[%s3 + $0x140] sm:$0xff]
        %v650 = vld [vmem:[%s3 + $0x148] sm:$0xff]
        %v651 = vld [vmem:[%s3 + $0x150] sm:$0xff]
        %v652 = vld [vmem:[%s3 + $0x158] sm:$0xff]
        %v653 = vld [vmem:[%s3 + $0x160] sm:$0xff]
        %v654 = vld [vmem:[%s3 + $0x168] sm:$0xff]
        %v655 = vld [vmem:[%s3 + $0x170] sm:$0xff]
        %v656 = vld [vmem:[%s3 + $0x178] sm:$0xff]
        %v657 = vld [vmem:[%s3 + $0x180] sm:$0xff]
        %v658 = vld [vmem:[%s3 + $0x188] sm:$0xff]
        %v659 = vld [vmem:[%s3 + $0x190] sm:$0xff]
        %v660 = vld [vmem:[%s3 + $0x198] sm:$0xff]
        %v661 = vld [vmem:[%s3 + $0x1a0] sm:$0xff]
        %v662 = vld [vmem:[%s3 + $0x1a8] sm:$0xff]
        %v663 = vld [vmem:[%s3 + $0x1b0] sm:$0xff]
        %v664 = vld [vmem:[%s3 + $0x1b8] sm:$0xff]
        %v665 = vld [vmem:[%s3 + $0x1c0] sm:$0xff]
        %v666 = vld [vmem:[%s3 + $0x1c8] sm:$0xff]
        %v667 = vld [vmem:[%s3 + $0x1d0] sm:$0xff]
        %v668 = vld [vmem:[%s3 + $0x1d8] sm:$0xff]
        %v669 = vld [vmem:[%s3 + $0x1e0] sm:$0xff]
        %v670 = vld [vmem:[%s3 + $0x1e8] sm:$0xff]
        %v671 = vld [vmem:[%s3 + $0x1f0] sm:$0xff]
        %v672 = vld [vmem:[%s3 + $0x1f8] sm:$0xff]
        %v673 = vld [vmem:[%s3 + $0x200] sm:$0xff]
        %v674 = vld [vmem:[%s3 + $0x208] sm:$0xff]
        %v675 = vld [vmem:[%s3 + $0x210] sm:$0xff]
        %v676 = vld [vmem:[%s3 + $0x218] sm:$0xff]
        %v677 = vld [vmem:[%s3 + $0x220] sm:$0xff]
        %v678 = vld [vmem:[%s3 + $0x228] sm:$0xff]
        %v679 = vld [vmem:[%s3 + $0x230] sm:$0xff]
        %v680 = vld [vmem:[%s3 + $0x238] sm:$0xff]
        %v681 = vld [vmem:[%s3 + $0x240] sm:$0xff]
        %v682 = vld [vmem:[%s3 + $0x248] sm:$0xff]
        %v683 = vld [vmem:[%s3 + $0x250] sm:$0xff]
        %v684 = vld [vmem:[%s3 + $0x258] sm:$0xff]
        %v685 = vld [vmem:[%s3 + $0x260] sm:$0xff]
        %v686 = vld [vmem:[%s3 + $0x268] sm:$0xff]
        %v687 = vld [vmem:[%s3 + $0x270] sm:$0xff]
        %v688 = vld [vmem:[%s3 + $0x278] sm:$0xff]
        %v689 = vld [vmem:[%s3 + $0x280] sm:$0xff]
        %v690 = vld [vmem:[%s3 + $0x288] sm:$0xff]
        %v691 = vld [vmem:[%s3 + $0x290] sm:$0xff]
        %v692 = vld [vmem:[%s3 + $0x298] sm:$0xff]
        %v693 = vld [vmem:[%s3 + $0x2a0] sm:$0xff]
        %v694 = vld [vmem:[%s3 + $0x2a8] sm:$0xff]
        %v695 = vld [vmem:[%s3 + $0x2b0] sm:$0xff]
        %v696 = vld [vmem:[%s3 + $0x2b8] sm:$0xff]
        %v697 = vld [vmem:[%s3 + $0x2c0] sm:$0xff]
        %v698 = vld [vmem:[%s3 + $0x2c8] sm:$0xff]
        %v699 = vld [vmem:[%s3 + $0x2d0] sm:$0xff]
        %v700 = vld [vmem:[%s3 + $0x2d8] sm:$0xff]
        %v701 = vld [vmem:[%s3 + $0x2e0] sm:$0xff]
        %v702 = vld [vmem:[%s3 + $0x2e8] sm:$0xff]
        %v703 = vld [vmem:[%s3 + $0x2f0] sm:$0xff]
        %v704 = vld [vmem:[%s3 + $0x2f8] sm:$0xff]
        %v705 = vld [vmem:[%s3 + $0x300] sm:$0xff]
        %v706 = vld [vmem:[%s3 + $0x308] sm:$0xff]
        %v707 = vld [vmem:[%s3 + $0x310] sm:$0xff]
        %v708 = vld [vmem:[%s3 + $0x318] sm:$0xff]
        %v709 = vld [vmem:[%s3 + $0x320] sm:$0xff]
        %v710 = vld [vmem:[%s3 + $0x328] sm:$0xff]
        %v711 = vld [vmem:[%s3 + $0x330] sm:$0xff]
        %v712 = vld [vmem:[%s3 + $0x338] sm:$0xff]
        %v713 = vld [vmem:[%s3 + $0x340] sm:$0xff]
        %v714 = vld [vmem:[%s3 + $0x348] sm:$0xff]
        %v715 = vld [vmem:[%s3 + $0x350] sm:$0xff]
        %v716 = vld [vmem:[%s3 + $0x358] sm:$0xff]
        %v717 = vld [vmem:[%s3 + $0x360] sm:$0xff]
        %v718 = vld [vmem:[%s3 + $0x368] sm:$0xff]
        %v719 = vld [vmem:[%s3 + $0x370] sm:$0xff]
        %v720 = vld [vmem:[%s3 + $0x378] sm:$0xff]
        %v721 = vld [vmem:[%s3 + $0x380] sm:$0xff]
        %v722 = vld [vmem:[%s3 + $0x388] sm:$0xff]
        %v723 = vld [vmem:[%s3 + $0x390] sm:$0xff]
        %v724 = vld [vmem:[%s3 + $0x398] sm:$0xff]
        %v725 = vld [vmem:[%s3 + $0x3a0] sm:$0xff]
        %v726 = vld [vmem:[%s3 + $0x3a8] sm:$0xff]
        %v727 = vld [vmem:[%s3 + $0x3b0] sm:$0xff]
        %v728 = vld [vmem:[%s3 + $0x3b8] sm:$0xff]
        %v729 = vld [vmem:[%s3 + $0x3c0] sm:$0xff]
        %v730 = vld [vmem:[%s3 + $0x3c8] sm:$0xff]
        %v731 = vld [vmem:[%s3 + $0x3d0] sm:$0xff]
        %v732 = vld [vmem:[%s3 + $0x3d8] sm:$0xff]
        %v733 = vld [vmem:[%s3 + $0x3e0] sm:$0xff]
        %v734 = vld [vmem:[%s3 + $0x3e8] sm:$0xff]
        %v735 = vld [vmem:[%s3 + $0x3f0] sm:$0xff]
        %v736 = vld [vmem:[%s3 + $0x3f8] sm:$0xff]
        %v737 = vld [vmem:[%s4] sm:$0xf]
        %v739 = vperm.slane %v737, 0
        %v740 = vperm.slane %v737, 1
        %v741 = vperm.slane %v737, 2
        %v742 = vperm.slane %v737, 3
        %v875 = vunpack.c.l.b16 %v609
        %v876 = vunpack.c.h.b16 %v609
        %v877 = vunpack.c.l.b16 %v610
        %v878 = vunpack.c.h.b16 %v610
        %v879 = vunpack.c.l.b16 %v611
        %v880 = vunpack.c.h.b16 %v611
        %v881 = vunpack.c.l.b16 %v612
        %v882 = vunpack.c.h.b16 %v612
        %v883 = vunpack.c.l.b16 %v613
        %v884 = vunpack.c.h.b16 %v613
        %v885 = vunpack.c.l.b16 %v614
        %v886 = vunpack.c.h.b16 %v614
        %v887 = vunpack.c.l.b16 %v615
        %v888 = vunpack.c.h.b16 %v615
        %v889 = vunpack.c.l.b16 %v616
        %v890 = vunpack.c.h.b16 %v616
        %v891 = vunpack.c.l.b16 %v617
        %v892 = vunpack.c.h.b16 %v617
        %v893 = vunpack.c.l.b16 %v618
        %v894 = vunpack.c.h.b16 %v618
        %v895 = vunpack.c.l.b16 %v619
        %v896 = vunpack.c.h.b16 %v619
        %v897 = vunpack.c.l.b16 %v620
        %v898 = vunpack.c.h.b16 %v620
        %v899 = vunpack.c.l.b16 %v621
        %v900 = vunpack.c.h.b16 %v621
        %v901 = vunpack.c.l.b16 %v622
        %v902 = vunpack.c.h.b16 %v622
        %v903 = vunpack.c.l.b16 %v623
        %v904 = vunpack.c.h.b16 %v623
        %v905 = vunpack.c.l.b16 %v624
        %v906 = vunpack.c.h.b16 %v624
        %v907 = vunpack.c.l.b16 %v625
        %v908 = vunpack.c.h.b16 %v625
        %v909 = vunpack.c.l.b16 %v626
        %v910 = vunpack.c.h.b16 %v626
        %v911 = vunpack.c.l.b16 %v627
        %v912 = vunpack.c.h.b16 %v627
        %v913 = vunpack.c.l.b16 %v628
        %v914 = vunpack.c.h.b16 %v628
        %v915 = vunpack.c.l.b16 %v629
        %v916 = vunpack.c.h.b16 %v629
        %v917 = vunpack.c.l.b16 %v630
        %v918 = vunpack.c.h.b16 %v630
        %v919 = vunpack.c.l.b16 %v631
        %v920 = vunpack.c.h.b16 %v631
        %v921 = vunpack.c.l.b16 %v632
        %v922 = vunpack.c.h.b16 %v632
        %v923 = vunpack.c.l.b16 %v633
        %v924 = vunpack.c.h.b16 %v633
        %v925 = vunpack.c.l.b16 %v634
        %v926 = vunpack.c.h.b16 %v634
        %v927 = vunpack.c.l.b16 %v635
        %v928 = vunpack.c.h.b16 %v635
        %v929 = vunpack.c.l.b16 %v636
        %v930 = vunpack.c.h.b16 %v636
        %v931 = vunpack.c.l.b16 %v637
        %v932 = vunpack.c.h.b16 %v637
        %v933 = vunpack.c.l.b16 %v638
        %v934 = vunpack.c.h.b16 %v638
        %v935 = vunpack.c.l.b16 %v639
        %v936 = vunpack.c.h.b16 %v639
        %v937 = vunpack.c.l.b16 %v640
        %v938 = vunpack.c.h.b16 %v640
        %v939 = vunpack.c.l.b16 %v641
        %v940 = vunpack.c.h.b16 %v641
        %v941 = vunpack.c.l.b16 %v642
        %v942 = vunpack.c.h.b16 %v642
        %v943 = vunpack.c.l.b16 %v643
        %v944 = vunpack.c.h.b16 %v643
        %v945 = vunpack.c.l.b16 %v644
        %v946 = vunpack.c.h.b16 %v644
        %v947 = vunpack.c.l.b16 %v645
        %v948 = vunpack.c.h.b16 %v645
        %v949 = vunpack.c.l.b16 %v646
        %v950 = vunpack.c.h.b16 %v646
        %v951 = vunpack.c.l.b16 %v647
        %v952 = vunpack.c.h.b16 %v647
        %v953 = vunpack.c.l.b16 %v648
        %v954 = vunpack.c.h.b16 %v648
        %v955 = vunpack.c.l.b16 %v649
        %v956 = vunpack.c.h.b16 %v649
        %v957 = vunpack.c.l.b16 %v650
        %v958 = vunpack.c.h.b16 %v650
        %v959 = vunpack.c.l.b16 %v651
        %v960 = vunpack.c.h.b16 %v651
        %v961 = vunpack.c.l.b16 %v652
        %v962 = vunpack.c.h.b16 %v652
        %v963 = vunpack.c.l.b16 %v653
        %v964 = vunpack.c.h.b16 %v653
        %v965 = vunpack.c.l.b16 %v654
        %v966 = vunpack.c.h.b16 %v654
        %v967 = vunpack.c.l.b16 %v655
        %v968 = vunpack.c.h.b16 %v655
        %v969 = vunpack.c.l.b16 %v656
        %v970 = vunpack.c.h.b16 %v656
        %v971 = vunpack.c.l.b16 %v657
        %v972 = vunpack.c.h.b16 %v657
        %v973 = vunpack.c.l.b16 %v658
        %v974 = vunpack.c.h.b16 %v658
        %v975 = vunpack.c.l.b16 %v659
        %v976 = vunpack.c.h.b16 %v659
        %v977 = vunpack.c.l.b16 %v660
        %v978 = vunpack.c.h.b16 %v660
        %v979 = vunpack.c.l.b16 %v661
        %v980 = vunpack.c.h.b16 %v661
        %v981 = vunpack.c.l.b16 %v662
        %v982 = vunpack.c.h.b16 %v662
        %v983 = vunpack.c.l.b16 %v663
        %v984 = vunpack.c.h.b16 %v663
        %v985 = vunpack.c.l.b16 %v664
        %v986 = vunpack.c.h.b16 %v664
        %v987 = vunpack.c.l.b16 %v665
        %v988 = vunpack.c.h.b16 %v665
        %v989 = vunpack.c.l.b16 %v666
        %v990 = vunpack.c.h.b16 %v666
        %v991 = vunpack.c.l.b16 %v667
        %v992 = vunpack.c.h.b16 %v667
        %v993 = vunpack.c.l.b16 %v668
        %v994 = vunpack.c.h.b16 %v668
        %v995 = vunpack.c.l.b16 %v669
        %v996 = vunpack.c.h.b16 %v669
        %v997 = vunpack.c.l.b16 %v670
        %v998 = vunpack.c.h.b16 %v670
        %v999 = vunpack.c.l.b16 %v671
        %v1000 = vunpack.c.h.b16 %v671
        %v1001 = vunpack.c.l.b16 %v672
        %v1002 = vunpack.c.h.b16 %v672
        %v1003 = vunpack.c.l.b16 %v673
        %v1004 = vunpack.c.h.b16 %v673
        %v1005 = vunpack.c.l.b16 %v674
        %v1006 = vunpack.c.h.b16 %v674
        %v1007 = vunpack.c.l.b16 %v675
        %v1008 = vunpack.c.h.b16 %v675
        %v1009 = vunpack.c.l.b16 %v676
        %v1010 = vunpack.c.h.b16 %v676
        %v1011 = vunpack.c.l.b16 %v677
        %v1012 = vunpack.c.h.b16 %v677
        %v1013 = vunpack.c.l.b16 %v678
        %v1014 = vunpack.c.h.b16 %v678
        %v1015 = vunpack.c.l.b16 %v679
        %v1016 = vunpack.c.h.b16 %v679
        %v1017 = vunpack.c.l.b16 %v680
        %v1018 = vunpack.c.h.b16 %v680
        %v1019 = vunpack.c.l.b16 %v681
        %v1020 = vunpack.c.h.b16 %v681
        %v1021 = vunpack.c.l.b16 %v682
        %v1022 = vunpack.c.h.b16 %v682
        %v1023 = vunpack.c.l.b16 %v683
        %v1024 = vunpack.c.h.b16 %v683
        %v1025 = vunpack.c.l.b16 %v684
        %v1026 = vunpack.c.h.b16 %v684
        %v1027 = vunpack.c.l.b16 %v685
        %v1028 = vunpack.c.h.b16 %v685
        %v1029 = vunpack.c.l.b16 %v686
        %v1030 = vunpack.c.h.b16 %v686
        %v1031 = vunpack.c.l.b16 %v687
        %v1032 = vunpack.c.h.b16 %v687
        %v1033 = vunpack.c.l.b16 %v688
        %v1034 = vunpack.c.h.b16 %v688
        %v1035 = vunpack.c.l.b16 %v689
        %v1036 = vunpack.c.h.b16 %v689
        %v1037 = vunpack.c.l.b16 %v690
        %v1038 = vunpack.c.h.b16 %v690
        %v1039 = vunpack.c.l.b16 %v691
        %v1040 = vunpack.c.h.b16 %v691
        %v1041 = vunpack.c.l.b16 %v692
        %v1042 = vunpack.c.h.b16 %v692
        %v1043 = vunpack.c.l.b16 %v693
        %v1044 = vunpack.c.h.b16 %v693
        %v1045 = vunpack.c.l.b16 %v694
        %v1046 = vunpack.c.h.b16 %v694
        %v1047 = vunpack.c.l.b16 %v695
        %v1048 = vunpack.c.h.b16 %v695
        %v1049 = vunpack.c.l.b16 %v696
        %v1050 = vunpack.c.h.b16 %v696
        %v1051 = vunpack.c.l.b16 %v697
        %v1052 = vunpack.c.h.b16 %v697
        %v1053 = vunpack.c.l.b16 %v698
        %v1054 = vunpack.c.h.b16 %v698
        %v1055 = vunpack.c.l.b16 %v699
        %v1056 = vunpack.c.h.b16 %v699
        %v1057 = vunpack.c.l.b16 %v700
        %v1058 = vunpack.c.h.b16 %v700
        %v1059 = vunpack.c.l.b16 %v701
        %v1060 = vunpack.c.h.b16 %v701
        %v1061 = vunpack.c.l.b16 %v702
        %v1062 = vunpack.c.h.b16 %v702
        %v1063 = vunpack.c.l.b16 %v703
        %v1064 = vunpack.c.h.b16 %v703
        %v1065 = vunpack.c.l.b16 %v704
        %v1066 = vunpack.c.h.b16 %v704
        %v1067 = vunpack.c.l.b16 %v705
        %v1068 = vunpack.c.h.b16 %v705
        %v1069 = vunpack.c.l.b16 %v706
        %v1070 = vunpack.c.h.b16 %v706
        %v1071 = vunpack.c.l.b16 %v707
        %v1072 = vunpack.c.h.b16 %v707
        %v1073 = vunpack.c.l.b16 %v708
        %v1074 = vunpack.c.h.b16 %v708
        %v1075 = vunpack.c.l.b16 %v709
        %v1076 = vunpack.c.h.b16 %v709
        %v1077 = vunpack.c.l.b16 %v710
        %v1078 = vunpack.c.h.b16 %v710
        %v1079 = vunpack.c.l.b16 %v711
        %v1080 = vunpack.c.h.b16 %v711
        %v1081 = vunpack.c.l.b16 %v712
        %v1082 = vunpack.c.h.b16 %v712
        %v1083 = vunpack.c.l.b16 %v713
        %v1084 = vunpack.c.h.b16 %v713
        %v1085 = vunpack.c.l.b16 %v714
        %v1086 = vunpack.c.h.b16 %v714
        %v1087 = vunpack.c.l.b16 %v715
        %v1088 = vunpack.c.h.b16 %v715
        %v1089 = vunpack.c.l.b16 %v716
        %v1090 = vunpack.c.h.b16 %v716
        %v1091 = vunpack.c.l.b16 %v717
        %v1092 = vunpack.c.h.b16 %v717
        %v1093 = vunpack.c.l.b16 %v718
        %v1094 = vunpack.c.h.b16 %v718
        %v1095 = vunpack.c.l.b16 %v719
        %v1096 = vunpack.c.h.b16 %v719
        %v1097 = vunpack.c.l.b16 %v720
        %v1098 = vunpack.c.h.b16 %v720
        %v1099 = vunpack.c.l.b16 %v721
        %v1100 = vunpack.c.h.b16 %v721
        %v1101 = vunpack.c.l.b16 %v722
        %v1102 = vunpack.c.h.b16 %v722
        %v1103 = vunpack.c.l.b16 %v723
        %v1104 = vunpack.c.h.b16 %v723
        %v1105 = vunpack.c.l.b16 %v724
        %v1106 = vunpack.c.h.b16 %v724
        %v1107 = vunpack.c.l.b16 %v725
        %v1108 = vunpack.c.h.b16 %v725
        %v1109 = vunpack.c.l.b16 %v726
        %v1110 = vunpack.c.h.b16 %v726
        %v1111 = vunpack.c.l.b16 %v727
        %v1112 = vunpack.c.h.b16 %v727
        %v1113 = vunpack.c.l.b16 %v728
        %v1114 = vunpack.c.h.b16 %v728
        %v1115 = vunpack.c.l.b16 %v729
        %v1116 = vunpack.c.h.b16 %v729
        %v1117 = vunpack.c.l.b16 %v730
        %v1118 = vunpack.c.h.b16 %v730
        %v1119 = vunpack.c.l.b16 %v731
        %v1120 = vunpack.c.h.b16 %v731
        %v1121 = vunpack.c.l.b16 %v732
        %v1122 = vunpack.c.h.b16 %v732
        %v1123 = vunpack.c.l.b16 %v733
        %v1124 = vunpack.c.h.b16 %v733
        %v1125 = vunpack.c.l.b16 %v734
        %v1126 = vunpack.c.h.b16 %v734
        %v1127 = vunpack.c.l.b16 %v735
        %v1128 = vunpack.c.h.b16 %v735
        %v1129 = vunpack.c.l.b16 %v736
        %v1130 = vunpack.c.h.b16 %v736
        %v1131 = vpack.c.b16 %v879, %v875
        %v1132 = vpack.c.b16 %v880, %v876
        %v1133 = vpack.c.b16 %v881, %v877
        %v1134 = vpack.c.b16 %v882, %v878
        %v1135 = vpack.c.b16 %v887, %v883
        %v1136 = vpack.c.b16 %v888, %v884
        %v1137 = vpack.c.b16 %v889, %v885
        %v1138 = vpack.c.b16 %v890, %v886
        %v1139 = vpack.c.b16 %v895, %v891
        %v1140 = vpack.c.b16 %v896, %v892
        %v1141 = vpack.c.b16 %v897, %v893
        %v1142 = vpack.c.b16 %v898, %v894
        %v1143 = vpack.c.b16 %v903, %v899
        %v1144 = vpack.c.b16 %v904, %v900
        %v1145 = vpack.c.b16 %v905, %v901
        %v1146 = vpack.c.b16 %v906, %v902
        %v1147 = vpack.c.b16 %v911, %v907
        %v1148 = vpack.c.b16 %v912, %v908
        %v1149 = vpack.c.b16 %v913, %v909
        %v1150 = vpack.c.b16 %v914, %v910
        %v1151 = vpack.c.b16 %v919, %v915
        %v1152 = vpack.c.b16 %v920, %v916
        %v1153 = vpack.c.b16 %v921, %v917
        %v1154 = vpack.c.b16 %v922, %v918
        %v1155 = vpack.c.b16 %v927, %v923
        %v1156 = vpack.c.b16 %v928, %v924
        %v1157 = vpack.c.b16 %v929, %v925
        %v1158 = vpack.c.b16 %v930, %v926
        %v1159 = vpack.c.b16 %v935, %v931
        %v1160 = vpack.c.b16 %v936, %v932
        %v1161 = vpack.c.b16 %v937, %v933
        %v1162 = vpack.c.b16 %v938, %v934
        %v1163 = vpack.c.b16 %v943, %v939
        %v1164 = vpack.c.b16 %v944, %v940
        %v1165 = vpack.c.b16 %v945, %v941
        %v1166 = vpack.c.b16 %v946, %v942
        %v1167 = vpack.c.b16 %v951, %v947
        %v1168 = vpack.c.b16 %v952, %v948
        %v1169 = vpack.c.b16 %v953, %v949
        %v1170 = vpack.c.b16 %v954, %v950
        %v1171 = vpack.c.b16 %v959, %v955
        %v1172 = vpack.c.b16 %v960, %v956
        %v1173 = vpack.c.b16 %v961, %v957
        %v1174 = vpack.c.b16 %v962, %v958
        %v1175 = vpack.c.b16 %v967, %v963
        %v1176 = vpack.c.b16 %v968, %v964
        %v1177 = vpack.c.b16 %v969, %v965
        %v1178 = vpack.c.b16 %v970, %v966
        %v1179 = vpack.c.b16 %v975, %v971
        %v1180 = vpack.c.b16 %v976, %v972
        %v1181 = vpack.c.b16 %v977, %v973
        %v1182 = vpack.c.b16 %v978, %v974
        %v1183 = vpack.c.b16 %v983, %v979
        %v1184 = vpack.c.b16 %v984, %v980
        %v1185 = vpack.c.b16 %v985, %v981
        %v1186 = vpack.c.b16 %v986, %v982
        %v1187 = vpack.c.b16 %v991, %v987
        %v1188 = vpack.c.b16 %v992, %v988
        %v1189 = vpack.c.b16 %v993, %v989
        %v1190 = vpack.c.b16 %v994, %v990
        %v1191 = vpack.c.b16 %v999, %v995
        %v1192 = vpack.c.b16 %v1000, %v996
        %v1193 = vpack.c.b16 %v1001, %v997
        %v1194 = vpack.c.b16 %v1002, %v998
        %v1195 = vpack.c.b16 %v1007, %v1003
        %v1196 = vpack.c.b16 %v1008, %v1004
        %v1197 = vpack.c.b16 %v1009, %v1005
        %v1198 = vpack.c.b16 %v1010, %v1006
        %v1199 = vpack.c.b16 %v1015, %v1011
        %v1200 = vpack.c.b16 %v1016, %v1012
        %v1201 = vpack.c.b16 %v1017, %v1013
        %v1202 = vpack.c.b16 %v1018, %v1014
        %v1203 = vpack.c.b16 %v1023, %v1019
        %v1204 = vpack.c.b16 %v1024, %v1020
        %v1205 = vpack.c.b16 %v1025, %v1021
        %v1206 = vpack.c.b16 %v1026, %v1022
        %v1207 = vpack.c.b16 %v1031, %v1027
        %v1208 = vpack.c.b16 %v1032, %v1028
        %v1209 = vpack.c.b16 %v1033, %v1029
        %v1210 = vpack.c.b16 %v1034, %v1030
        %v1211 = vpack.c.b16 %v1039, %v1035
        %v1212 = vpack.c.b16 %v1040, %v1036
        %v1213 = vpack.c.b16 %v1041, %v1037
        %v1214 = vpack.c.b16 %v1042, %v1038
        %v1215 = vpack.c.b16 %v1047, %v1043
        %v1216 = vpack.c.b16 %v1048, %v1044
        %v1217 = vpack.c.b16 %v1049, %v1045
        %v1218 = vpack.c.b16 %v1050, %v1046
        %v1219 = vpack.c.b16 %v1055, %v1051
        %v1220 = vpack.c.b16 %v1056, %v1052
        %v1221 = vpack.c.b16 %v1057, %v1053
        %v1222 = vpack.c.b16 %v1058, %v1054
        %v1223 = vpack.c.b16 %v1063, %v1059
        %v1224 = vpack.c.b16 %v1064, %v1060
        %v1225 = vpack.c.b16 %v1065, %v1061
        %v1226 = vpack.c.b16 %v1066, %v1062
        %v1227 = vpack.c.b16 %v1071, %v1067
        %v1228 = vpack.c.b16 %v1072, %v1068
        %v1229 = vpack.c.b16 %v1073, %v1069
        %v1230 = vpack.c.b16 %v1074, %v1070
        %v1231 = vpack.c.b16 %v1079, %v1075
        %v1232 = vpack.c.b16 %v1080, %v1076
        %v1233 = vpack.c.b16 %v1081, %v1077
        %v1234 = vpack.c.b16 %v1082, %v1078
        %v1235 = vpack.c.b16 %v1087, %v1083
        %v1236 = vpack.c.b16 %v1088, %v1084
        %v1237 = vpack.c.b16 %v1089, %v1085
        %v1238 = vpack.c.b16 %v1090, %v1086
        %v1239 = vpack.c.b16 %v1095, %v1091
        %v1240 = vpack.c.b16 %v1096, %v1092
        %v1241 = vpack.c.b16 %v1097, %v1093
        %v1242 = vpack.c.b16 %v1098, %v1094
        %v1243 = vpack.c.b16 %v1103, %v1099
        %v1244 = vpack.c.b16 %v1104, %v1100
        %v1245 = vpack.c.b16 %v1105, %v1101
        %v1246 = vpack.c.b16 %v1106, %v1102
        %v1247 = vpack.c.b16 %v1111, %v1107
        %v1248 = vpack.c.b16 %v1112, %v1108
        %v1249 = vpack.c.b16 %v1113, %v1109
        %v1250 = vpack.c.b16 %v1114, %v1110
        %v1251 = vpack.c.b16 %v1119, %v1115
        %v1252 = vpack.c.b16 %v1120, %v1116
        %v1253 = vpack.c.b16 %v1121, %v1117
        %v1254 = vpack.c.b16 %v1122, %v1118
        %v1255 = vpack.c.b16 %v1127, %v1123
        %v1256 = vpack.c.b16 %v1128, %v1124
        %v1257 = vpack.c.b16 %v1129, %v1125
        %v1258 = vpack.c.b16 %v1130, %v1126
        %1387 = vmatpush.bf16.msra.mxu0 %v1159
        %1388 = vmatpush.bf16.msra.mxu0 %v1155
        %1389 = vmatpush.bf16.msra.mxu0 %v1151
        %1390 = vmatpush.bf16.msra.mxu0 %v1147
        %1391 = vmatpush.bf16.msra.mxu0 %v1143
        %1392 = vmatpush.bf16.msra.mxu0 %v1139
        %1393 = vmatpush.bf16.msra.mxu0 %v1135
        %1394 = vmatpush.bf16.msra.mxu0 %v1131
        %1395 = vmatmul.bf16.gmra.mxu0 %v605
        %v1396 = vpop.f32.mrf.mxu0
        %v1397 = vadd.f32 %v739, %v1396
        %v1398 = vpop.f32.mrf.mxu0
        %1399 = vdwg.mxu0
        %1400 = vmatpush.bf16.msra.mxu0 %v1191
        %1401 = vmatpush.bf16.msra.mxu0 %v1187
        %1402 = vmatpush.bf16.msra.mxu0 %v1183
        %1403 = vmatpush.bf16.msra.mxu0 %v1179
        %1404 = vmatpush.bf16.msra.mxu0 %v1175
        %1405 = vmatpush.bf16.msra.mxu0 %v1171
        %1406 = vmatpush.bf16.msra.mxu0 %v1167
        %1407 = vmatpush.bf16.msra.mxu0 %v1163
        %1408 = vmatmul.bf16.gmra.mxu0 %v606
        %v1409 = vpop.f32.mrf.mxu0
        %v1410 = vadd.f32 %v1397, %v1409
        %v1411 = vpop.f32.mrf.mxu0
        %1412 = vdwg.mxu0
        %1413 = vmatpush.bf16.msra.mxu0 %v1223
        %1414 = vmatpush.bf16.msra.mxu0 %v1219
        %1415 = vmatpush.bf16.msra.mxu0 %v1215
        %1416 = vmatpush.bf16.msra.mxu0 %v1211
        %1417 = vmatpush.bf16.msra.mxu0 %v1207
        %1418 = vmatpush.bf16.msra.mxu0 %v1203
        %1419 = vmatpush.bf16.msra.mxu0 %v1199
        %1420 = vmatpush.bf16.msra.mxu0 %v1195
        %1421 = vmatmul.bf16.gmra.mxu0 %v607
        %v1422 = vpop.f32.mrf.mxu0
        %v1423 = vadd.f32 %v1410, %v1422
        %v1424 = vpop.f32.mrf.mxu0
        %1425 = vdwg.mxu0
        %1426 = vmatpush.bf16.msra.mxu0 %v1255
        %1427 = vmatpush.bf16.msra.mxu0 %v1251
        %1428 = vmatpush.bf16.msra.mxu0 %v1247
        %1429 = vmatpush.bf16.msra.mxu0 %v1243
        %1430 = vmatpush.bf16.msra.mxu0 %v1239
        %1431 = vmatpush.bf16.msra.mxu0 %v1235
        %1432 = vmatpush.bf16.msra.mxu0 %v1231
        %1433 = vmatpush.bf16.msra.mxu0 %v1227
        %1434 = vmatmul.bf16.gmra.mxu0 %v608
        %v1435 = vpop.f32.mrf.mxu0
        %v1436 = vadd.f32 %v1423, %v1435
        %v1437 = vpop.f32.mrf.mxu0
        %1438 = vdwg.mxu0
        %1439 = vmatpush.bf16.msra.mxu0 %v1160
        %1440 = vmatpush.bf16.msra.mxu0 %v1156
        %1441 = vmatpush.bf16.msra.mxu0 %v1152
        %1442 = vmatpush.bf16.msra.mxu0 %v1148
        %1443 = vmatpush.bf16.msra.mxu0 %v1144
        %1444 = vmatpush.bf16.msra.mxu0 %v1140
        %1445 = vmatpush.bf16.msra.mxu0 %v1136
        %1446 = vmatpush.bf16.msra.mxu0 %v1132
        %1447 = vmatmul.bf16.gmra.mxu0 %v605
        %v1448 = vpop.f32.mrf.mxu0
        %v1449 = vadd.f32 %v740, %v1448
        %v1450 = vpop.f32.mrf.mxu0
        %1451 = vdwg.mxu0
        %1452 = vmatpush.bf16.msra.mxu0 %v1192
        %1453 = vmatpush.bf16.msra.mxu0 %v1188
        %1454 = vmatpush.bf16.msra.mxu0 %v1184
        %1455 = vmatpush.bf16.msra.mxu0 %v1180
        %1456 = vmatpush.bf16.msra.mxu0 %v1176
        %1457 = vmatpush.bf16.msra.mxu0 %v1172
        %1458 = vmatpush.bf16.msra.mxu0 %v1168
        %1459 = vmatpush.bf16.msra.mxu0 %v1164
        %1460 = vmatmul.bf16.gmra.mxu0 %v606
        %v1461 = vpop.f32.mrf.mxu0
        %v1462 = vadd.f32 %v1449, %v1461
        %v1463 = vpop.f32.mrf.mxu0
        %1464 = vdwg.mxu0
        %1465 = vmatpush.bf16.msra.mxu0 %v1224
        %1466 = vmatpush.bf16.msra.mxu0 %v1220
        %1467 = vmatpush.bf16.msra.mxu0 %v1216
        %1468 = vmatpush.bf16.msra.mxu0 %v1212
        %1469 = vmatpush.bf16.msra.mxu0 %v1208
        %1470 = vmatpush.bf16.msra.mxu0 %v1204
        %1471 = vmatpush.bf16.msra.mxu0 %v1200
        %1472 = vmatpush.bf16.msra.mxu0 %v1196
        %1473 = vmatmul.bf16.gmra.mxu0 %v607
        %v1474 = vpop.f32.mrf.mxu0
        %v1475 = vadd.f32 %v1462, %v1474
        %v1476 = vpop.f32.mrf.mxu0
        %1477 = vdwg.mxu0
        %1478 = vmatpush.bf16.msra.mxu0 %v1256
        %1479 = vmatpush.bf16.msra.mxu0 %v1252
        %1480 = vmatpush.bf16.msra.mxu0 %v1248
        %1481 = vmatpush.bf16.msra.mxu0 %v1244
        %1482 = vmatpush.bf16.msra.mxu0 %v1240
        %1483 = vmatpush.bf16.msra.mxu0 %v1236
        %1484 = vmatpush.bf16.msra.mxu0 %v1232
        %1485 = vmatpush.bf16.msra.mxu0 %v1228
        %1486 = vmatmul.bf16.gmra.mxu0 %v608
        %v1487 = vpop.f32.mrf.mxu0
        %v1488 = vadd.f32 %v1475, %v1487
        %v1489 = vpop.f32.mrf.mxu0
        %1490 = vdwg.mxu0
        %1491 = vmatpush.bf16.msra.mxu0 %v1161
        %1492 = vmatpush.bf16.msra.mxu0 %v1157
        %1493 = vmatpush.bf16.msra.mxu0 %v1153
        %1494 = vmatpush.bf16.msra.mxu0 %v1149
        %1495 = vmatpush.bf16.msra.mxu0 %v1145
        %1496 = vmatpush.bf16.msra.mxu0 %v1141
        %1497 = vmatpush.bf16.msra.mxu0 %v1137
        %1498 = vmatpush.bf16.msra.mxu0 %v1133
        %1499 = vmatmul.bf16.gmra.mxu0 %v605
        %v1500 = vpop.f32.mrf.mxu0
        %v1501 = vadd.f32 %v741, %v1500
        %v1502 = vpop.f32.mrf.mxu0
        %1503 = vdwg.mxu0
        %1504 = vmatpush.bf16.msra.mxu0 %v1193
        %1505 = vmatpush.bf16.msra.mxu0 %v1189
        %1506 = vmatpush.bf16.msra.mxu0 %v1185
        %1507 = vmatpush.bf16.msra.mxu0 %v1181
        %1508 = vmatpush.bf16.msra.mxu0 %v1177
        %1509 = vmatpush.bf16.msra.mxu0 %v1173
        %1510 = vmatpush.bf16.msra.mxu0 %v1169
        %1511 = vmatpush.bf16.msra.mxu0 %v1165
        %1512 = vmatmul.bf16.gmra.mxu0 %v606
        %v1513 = vpop.f32.mrf.mxu0
        %v1514 = vadd.f32 %v1501, %v1513
        %v1515 = vpop.f32.mrf.mxu0
        %1516 = vdwg.mxu0
        %1517 = vmatpush.bf16.msra.mxu0 %v1225
        %1518 = vmatpush.bf16.msra.mxu0 %v1221
        %1519 = vmatpush.bf16.msra.mxu0 %v1217
        %1520 = vmatpush.bf16.msra.mxu0 %v1213
        %1521 = vmatpush.bf16.msra.mxu0 %v1209
        %1522 = vmatpush.bf16.msra.mxu0 %v1205
        %1523 = vmatpush.bf16.msra.mxu0 %v1201
        %1524 = vmatpush.bf16.msra.mxu0 %v1197
        %1525 = vmatmul.bf16.gmra.mxu0 %v607
        %v1526 = vpop.f32.mrf.mxu0
        %v1527 = vadd.f32 %v1514, %v1526
        %v1528 = vpop.f32.mrf.mxu0
        %1529 = vdwg.mxu0
        %1530 = vmatpush.bf16.msra.mxu0 %v1257
        %1531 = vmatpush.bf16.msra.mxu0 %v1253
        %1532 = vmatpush.bf16.msra.mxu0 %v1249
        %1533 = vmatpush.bf16.msra.mxu0 %v1245
        %1534 = vmatpush.bf16.msra.mxu0 %v1241
        %1535 = vmatpush.bf16.msra.mxu0 %v1237
        %1536 = vmatpush.bf16.msra.mxu0 %v1233
        %1537 = vmatpush.bf16.msra.mxu0 %v1229
        %1538 = vmatmul.bf16.gmra.mxu0 %v608
        %v1539 = vpop.f32.mrf.mxu0
        %v1540 = vadd.f32 %v1527, %v1539
        %v1541 = vpop.f32.mrf.mxu0
        %1542 = vdwg.mxu0
        %1543 = vmatpush.bf16.msra.mxu0 %v1162
        %1544 = vmatpush.bf16.msra.mxu0 %v1158
        %1545 = vmatpush.bf16.msra.mxu0 %v1154
        %1546 = vmatpush.bf16.msra.mxu0 %v1150
        %1547 = vmatpush.bf16.msra.mxu0 %v1146
        %1548 = vmatpush.bf16.msra.mxu0 %v1142
        %1549 = vmatpush.bf16.msra.mxu0 %v1138
        %1550 = vmatpush.bf16.msra.mxu0 %v1134
        %1551 = vmatmul.bf16.gmra.mxu0 %v605
        %v1552 = vpop.f32.mrf.mxu0
        %v1553 = vadd.f32 %v742, %v1552
        %v1554 = vpop.f32.mrf.mxu0
        %1555 = vdwg.mxu0
        %1556 = vmatpush.bf16.msra.mxu0 %v1194
        %1557 = vmatpush.bf16.msra.mxu0 %v1190
        %1558 = vmatpush.bf16.msra.mxu0 %v1186
        %1559 = vmatpush.bf16.msra.mxu0 %v1182
        %1560 = vmatpush.bf16.msra.mxu0 %v1178
        %1561 = vmatpush.bf16.msra.mxu0 %v1174
        %1562 = vmatpush.bf16.msra.mxu0 %v1170
        %1563 = vmatpush.bf16.msra.mxu0 %v1166
        %1564 = vmatmul.bf16.gmra.mxu0 %v606
        %v1565 = vpop.f32.mrf.mxu0
        %v1566 = vadd.f32 %v1553, %v1565
        %v1567 = vpop.f32.mrf.mxu0
        %1568 = vdwg.mxu0
        %1569 = vmatpush.bf16.msra.mxu0 %v1226
        %1570 = vmatpush.bf16.msra.mxu0 %v1222
        %1571 = vmatpush.bf16.msra.mxu0 %v1218
        %1572 = vmatpush.bf16.msra.mxu0 %v1214
        %1573 = vmatpush.bf16.msra.mxu0 %v1210
        %1574 = vmatpush.bf16.msra.mxu0 %v1206
        %1575 = vmatpush.bf16.msra.mxu0 %v1202
        %1576 = vmatpush.bf16.msra.mxu0 %v1198
        %1577 = vmatmul.bf16.gmra.mxu0 %v607
        %v1578 = vpop.f32.mrf.mxu0
        %v1579 = vadd.f32 %v1566, %v1578
        %v1580 = vpop.f32.mrf.mxu0
        %1581 = vdwg.mxu0
        %1582 = vmatpush.bf16.msra.mxu0 %v1258
        %1583 = vmatpush.bf16.msra.mxu0 %v1254
        %1584 = vmatpush.bf16.msra.mxu0 %v1250
        %1585 = vmatpush.bf16.msra.mxu0 %v1246
        %1586 = vmatpush.bf16.msra.mxu0 %v1242
        %1587 = vmatpush.bf16.msra.mxu0 %v1238
        %1588 = vmatpush.bf16.msra.mxu0 %v1234
        %1589 = vmatpush.bf16.msra.mxu0 %v1230
        %1590 = vmatmul.bf16.gmra.mxu0 %v608
        %v1591 = vpop.f32.mrf.mxu0
        %v1592 = vadd.f32 %v1579, %v1591
        %v1593 = vpop.f32.mrf.mxu0
        %1594 = vdwg.mxu0
        %v1595 = vmax.f32 %v1436, 0.0
        %v1596 = vmax.f32 %v1488, 0.0
        %v1597 = vmax.f32 %v1540, 0.0
        %v1598 = vmax.f32 %v1592, 0.0
        %v1599 = vpack.c.bf16 %v1595, %v1595
        %v1600 = vpack.c.bf16 %v1596, %v1596
        %v1601 = vpack.c.bf16 %v1597, %v1597
        %v1602 = vpack.c.bf16 %v1598, %v1598
        %v1603 = vld [vmem:[%s5] sm:$0xff]
        %v1604 = vld [vmem:[%s5 + $0x8] sm:$0xff]
        %v1605 = vld [vmem:[%s5 + $0x10] sm:$0xff]
        %v1606 = vld [vmem:[%s5 + $0x18] sm:$0xff]
        %v1607 = vld [vmem:[%s5 + $0x20] sm:$0xff]
        %v1608 = vld [vmem:[%s5 + $0x28] sm:$0xff]
        %v1609 = vld [vmem:[%s5 + $0x30] sm:$0xff]
        %v1610 = vld [vmem:[%s5 + $0x38] sm:$0xff]
        %v1611 = vld [vmem:[%s5 + $0x40] sm:$0xff]
        %v1612 = vld [vmem:[%s5 + $0x48] sm:$0xff]
        %v1613 = vld [vmem:[%s5 + $0x50] sm:$0xff]
        %v1614 = vld [vmem:[%s5 + $0x58] sm:$0xff]
        %v1615 = vld [vmem:[%s5 + $0x60] sm:$0xff]
        %v1616 = vld [vmem:[%s5 + $0x68] sm:$0xff]
        %v1617 = vld [vmem:[%s5 + $0x70] sm:$0xff]
        %v1618 = vld [vmem:[%s5 + $0x78] sm:$0xff]
        %v1619 = vld [vmem:[%s5 + $0x80] sm:$0xff]
        %v1620 = vld [vmem:[%s5 + $0x88] sm:$0xff]
        %v1621 = vld [vmem:[%s5 + $0x90] sm:$0xff]
        %v1622 = vld [vmem:[%s5 + $0x98] sm:$0xff]
        %v1623 = vld [vmem:[%s5 + $0xa0] sm:$0xff]
        %v1624 = vld [vmem:[%s5 + $0xa8] sm:$0xff]
        %v1625 = vld [vmem:[%s5 + $0xb0] sm:$0xff]
        %v1626 = vld [vmem:[%s5 + $0xb8] sm:$0xff]
        %v1627 = vld [vmem:[%s5 + $0xc0] sm:$0xff]
        %v1628 = vld [vmem:[%s5 + $0xc8] sm:$0xff]
        %v1629 = vld [vmem:[%s5 + $0xd0] sm:$0xff]
        %v1630 = vld [vmem:[%s5 + $0xd8] sm:$0xff]
        %v1631 = vld [vmem:[%s5 + $0xe0] sm:$0xff]
        %v1632 = vld [vmem:[%s5 + $0xe8] sm:$0xff]
        %v1633 = vld [vmem:[%s5 + $0xf0] sm:$0xff]
        %v1634 = vld [vmem:[%s5 + $0xf8] sm:$0xff]
        %v1635 = vld [vmem:[%s5 + $0x100] sm:$0xff]
        %v1636 = vld [vmem:[%s5 + $0x108] sm:$0xff]
        %v1637 = vld [vmem:[%s5 + $0x110] sm:$0xff]
        %v1638 = vld [vmem:[%s5 + $0x118] sm:$0xff]
        %v1639 = vld [vmem:[%s5 + $0x120] sm:$0xff]
        %v1640 = vld [vmem:[%s5 + $0x128] sm:$0xff]
        %v1641 = vld [vmem:[%s5 + $0x130] sm:$0xff]
        %v1642 = vld [vmem:[%s5 + $0x138] sm:$0xff]
        %v1643 = vld [vmem:[%s5 + $0x140] sm:$0xff]
        %v1644 = vld [vmem:[%s5 + $0x148] sm:$0xff]
        %v1645 = vld [vmem:[%s5 + $0x150] sm:$0xff]
        %v1646 = vld [vmem:[%s5 + $0x158] sm:$0xff]
        %v1647 = vld [vmem:[%s5 + $0x160] sm:$0xff]
        %v1648 = vld [vmem:[%s5 + $0x168] sm:$0xff]
        %v1649 = vld [vmem:[%s5 + $0x170] sm:$0xff]
        %v1650 = vld [vmem:[%s5 + $0x178] sm:$0xff]
        %v1651 = vld [vmem:[%s5 + $0x180] sm:$0xff]
        %v1652 = vld [vmem:[%s5 + $0x188] sm:$0xff]
        %v1653 = vld [vmem:[%s5 + $0x190] sm:$0xff]
        %v1654 = vld [vmem:[%s5 + $0x198] sm:$0xff]
        %v1655 = vld [vmem:[%s5 + $0x1a0] sm:$0xff]
        %v1656 = vld [vmem:[%s5 + $0x1a8] sm:$0xff]
        %v1657 = vld [vmem:[%s5 + $0x1b0] sm:$0xff]
        %v1658 = vld [vmem:[%s5 + $0x1b8] sm:$0xff]
        %v1659 = vld [vmem:[%s5 + $0x1c0] sm:$0xff]
        %v1660 = vld [vmem:[%s5 + $0x1c8] sm:$0xff]
        %v1661 = vld [vmem:[%s5 + $0x1d0] sm:$0xff]
        %v1662 = vld [vmem:[%s5 + $0x1d8] sm:$0xff]
        %v1663 = vld [vmem:[%s5 + $0x1e0] sm:$0xff]
        %v1664 = vld [vmem:[%s5 + $0x1e8] sm:$0xff]
        %v1665 = vld [vmem:[%s5 + $0x1f0] sm:$0xff]
        %v1666 = vld [vmem:[%s5 + $0x1f8] sm:$0xff]
        %v1667 = vld [vmem:[%s5 + $0x200] sm:$0xff]
        %v1668 = vld [vmem:[%s5 + $0x208] sm:$0xff]
        %v1669 = vld [vmem:[%s5 + $0x210] sm:$0xff]
        %v1670 = vld [vmem:[%s5 + $0x218] sm:$0xff]
        %v1671 = vld [vmem:[%s5 + $0x220] sm:$0xff]
        %v1672 = vld [vmem:[%s5 + $0x228] sm:$0xff]
        %v1673 = vld [vmem:[%s5 + $0x230] sm:$0xff]
        %v1674 = vld [vmem:[%s5 + $0x238] sm:$0xff]
        %v1675 = vld [vmem:[%s5 + $0x240] sm:$0xff]
        %v1676 = vld [vmem:[%s5 + $0x248] sm:$0xff]
        %v1677 = vld [vmem:[%s5 + $0x250] sm:$0xff]
        %v1678 = vld [vmem:[%s5 + $0x258] sm:$0xff]
        %v1679 = vld [vmem:[%s5 + $0x260] sm:$0xff]
        %v1680 = vld [vmem:[%s5 + $0x268] sm:$0xff]
        %v1681 = vld [vmem:[%s5 + $0x270] sm:$0xff]
        %v1682 = vld [vmem:[%s5 + $0x278] sm:$0xff]
        %v1683 = vld [vmem:[%s5 + $0x280] sm:$0xff]
        %v1684 = vld [vmem:[%s5 + $0x288] sm:$0xff]
        %v1685 = vld [vmem:[%s5 + $0x290] sm:$0xff]
        %v1686 = vld [vmem:[%s5 + $0x298] sm:$0xff]
        %v1687 = vld [vmem:[%s5 + $0x2a0] sm:$0xff]
        %v1688 = vld [vmem:[%s5 + $0x2a8] sm:$0xff]
        %v1689 = vld [vmem:[%s5 + $0x2b0] sm:$0xff]
        %v1690 = vld [vmem:[%s5 + $0x2b8] sm:$0xff]
        %v1691 = vld [vmem:[%s5 + $0x2c0] sm:$0xff]
        %v1692 = vld [vmem:[%s5 + $0x2c8] sm:$0xff]
        %v1693 = vld [vmem:[%s5 + $0x2d0] sm:$0xff]
        %v1694 = vld [vmem:[%s5 + $0x2d8] sm:$0xff]
        %v1695 = vld [vmem:[%s5 + $0x2e0] sm:$0xff]
        %v1696 = vld [vmem:[%s5 + $0x2e8] sm:$0xff]
        %v1697 = vld [vmem:[%s5 + $0x2f0] sm:$0xff]
        %v1698 = vld [vmem:[%s5 + $0x2f8] sm:$0xff]
        %v1699 = vld [vmem:[%s5 + $0x300] sm:$0xff]
        %v1700 = vld [vmem:[%s5 + $0x308] sm:$0xff]
        %v1701 = vld [vmem:[%s5 + $0x310] sm:$0xff]
        %v1702 = vld [vmem:[%s5 + $0x318] sm:$0xff]
        %v1703 = vld [vmem:[%s5 + $0x320] sm:$0xff]
        %v1704 = vld [vmem:[%s5 + $0x328] sm:$0xff]
        %v1705 = vld [vmem:[%s5 + $0x330] sm:$0xff]
        %v1706 = vld [vmem:[%s5 + $0x338] sm:$0xff]
        %v1707 = vld [vmem:[%s5 + $0x340] sm:$0xff]
        %v1708 = vld [vmem:[%s5 + $0x348] sm:$0xff]
        %v1709 = vld [vmem:[%s5 + $0x350] sm:$0xff]
        %v1710 = vld [vmem:[%s5 + $0x358] sm:$0xff]
        %v1711 = vld [vmem:[%s5 + $0x360] sm:$0xff]
        %v1712 = vld [vmem:[%s5 + $0x368] sm:$0xff]
        %v1713 = vld [vmem:[%s5 + $0x370] sm:$0xff]
        %v1714 = vld [vmem:[%s5 + $0x378] sm:$0xff]
        %v1715 = vld [vmem:[%s5 + $0x380] sm:$0xff]
        %v1716 = vld [vmem:[%s5 + $0x388] sm:$0xff]
        %v1717 = vld [vmem:[%s5 + $0x390] sm:$0xff]
        %v1718 = vld [vmem:[%s5 + $0x398] sm:$0xff]
        %v1719 = vld [vmem:[%s5 + $0x3a0] sm:$0xff]
        %v1720 = vld [vmem:[%s5 + $0x3a8] sm:$0xff]
        %v1721 = vld [vmem:[%s5 + $0x3b0] sm:$0xff]
        %v1722 = vld [vmem:[%s5 + $0x3b8] sm:$0xff]
        %v1723 = vld [vmem:[%s5 + $0x3c0] sm:$0xff]
        %v1724 = vld [vmem:[%s5 + $0x3c8] sm:$0xff]
        %v1725 = vld [vmem:[%s5 + $0x3d0] sm:$0xff]
        %v1726 = vld [vmem:[%s5 + $0x3d8] sm:$0xff]
        %v1727 = vld [vmem:[%s5 + $0x3e0] sm:$0xff]
        %v1728 = vld [vmem:[%s5 + $0x3e8] sm:$0xff]
        %v1729 = vld [vmem:[%s5 + $0x3f0] sm:$0xff]
        %v1730 = vld [vmem:[%s5 + $0x3f8] sm:$0xff]
        %v1731 = vld [vmem:[%s6] sm:$0xf]
        %v1733 = vperm.slane %v1731, 0
        %v1734 = vperm.slane %v1731, 1
        %v1735 = vperm.slane %v1731, 2
        %v1736 = vperm.slane %v1731, 3
        %v1869 = vunpack.c.l.b16 %v1603
        %v1870 = vunpack.c.h.b16 %v1603
        %v1871 = vunpack.c.l.b16 %v1604
        %v1872 = vunpack.c.h.b16 %v1604
        %v1873 = vunpack.c.l.b16 %v1605
        %v1874 = vunpack.c.h.b16 %v1605
        %v1875 = vunpack.c.l.b16 %v1606
        %v1876 = vunpack.c.h.b16 %v1606
        %v1877 = vunpack.c.l.b16 %v1607
        %v1878 = vunpack.c.h.b16 %v1607
        %v1879 = vunpack.c.l.b16 %v1608
        %v1880 = vunpack.c.h.b16 %v1608
        %v1881 = vunpack.c.l.b16 %v1609
        %v1882 = vunpack.c.h.b16 %v1609
        %v1883 = vunpack.c.l.b16 %v1610
        %v1884 = vunpack.c.h.b16 %v1610
        %v1885 = vunpack.c.l.b16 %v1611
        %v1886 = vunpack.c.h.b16 %v1611
        %v1887 = vunpack.c.l.b16 %v1612
        %v1888 = vunpack.c.h.b16 %v1612
        %v1889 = vunpack.c.l.b16 %v1613
        %v1890 = vunpack.c.h.b16 %v1613
        %v1891 = vunpack.c.l.b16 %v1614
        %v1892 = vunpack.c.h.b16 %v1614
        %v1893 = vunpack.c.l.b16 %v1615
        %v1894 = vunpack.c.h.b16 %v1615
        %v1895 = vunpack.c.l.b16 %v1616
        %v1896 = vunpack.c.h.b16 %v1616
        %v1897 = vunpack.c.l.b16 %v1617
        %v1898 = vunpack.c.h.b16 %v1617
        %v1899 = vunpack.c.l.b16 %v1618
        %v1900 = vunpack.c.h.b16 %v1618
        %v1901 = vunpack.c.l.b16 %v1619
        %v1902 = vunpack.c.h.b16 %v1619
        %v1903 = vunpack.c.l.b16 %v1620
        %v1904 = vunpack.c.h.b16 %v1620
        %v1905 = vunpack.c.l.b16 %v1621
        %v1906 = vunpack.c.h.b16 %v1621
        %v1907 = vunpack.c.l.b16 %v1622
        %v1908 = vunpack.c.h.b16 %v1622
        %v1909 = vunpack.c.l.b16 %v1623
        %v1910 = vunpack.c.h.b16 %v1623
        %v1911 = vunpack.c.l.b16 %v1624
        %v1912 = vunpack.c.h.b16 %v1624
        %v1913 = vunpack.c.l.b16 %v1625
        %v1914 = vunpack.c.h.b16 %v1625
        %v1915 = vunpack.c.l.b16 %v1626
        %v1916 = vunpack.c.h.b16 %v1626
        %v1917 = vunpack.c.l.b16 %v1627
        %v1918 = vunpack.c.h.b16 %v1627
        %v1919 = vunpack.c.l.b16 %v1628
        %v1920 = vunpack.c.h.b16 %v1628
        %v1921 = vunpack.c.l.b16 %v1629
        %v1922 = vunpack.c.h.b16 %v1629
        %v1923 = vunpack.c.l.b16 %v1630
        %v1924 = vunpack.c.h.b16 %v1630
        %v1925 = vunpack.c.l.b16 %v1631
        %v1926 = vunpack.c.h.b16 %v1631
        %v1927 = vunpack.c.l.b16 %v1632
        %v1928 = vunpack.c.h.b16 %v1632
        %v1929 = vunpack.c.l.b16 %v1633
        %v1930 = vunpack.c.h.b16 %v1633
        %v1931 = vunpack.c.l.b16 %v1634
        %v1932 = vunpack.c.h.b16 %v1634
        %v1933 = vunpack.c.l.b16 %v1635
        %v1934 = vunpack.c.h.b16 %v1635
        %v1935 = vunpack.c.l.b16 %v1636
        %v1936 = vunpack.c.h.b16 %v1636
        %v1937 = vunpack.c.l.b16 %v1637
        %v1938 = vunpack.c.h.b16 %v1637
        %v1939 = vunpack.c.l.b16 %v1638
        %v1940 = vunpack.c.h.b16 %v1638
        %v1941 = vunpack.c.l.b16 %v1639
        %v1942 = vunpack.c.h.b16 %v1639
        %v1943 = vunpack.c.l.b16 %v1640
        %v1944 = vunpack.c.h.b16 %v1640
        %v1945 = vunpack.c.l.b16 %v1641
        %v1946 = vunpack.c.h.b16 %v1641
        %v1947 = vunpack.c.l.b16 %v1642
        %v1948 = vunpack.c.h.b16 %v1642
        %v1949 = vunpack.c.l.b16 %v1643
        %v1950 = vunpack.c.h.b16 %v1643
        %v1951 = vunpack.c.l.b16 %v1644
        %v1952 = vunpack.c.h.b16 %v1644
        %v1953 = vunpack.c.l.b16 %v1645
        %v1954 = vunpack.c.h.b16 %v1645
        %v1955 = vunpack.c.l.b16 %v1646
        %v1956 = vunpack.c.h.b16 %v1646
        %v1957 = vunpack.c.l.b16 %v1647
        %v1958 = vunpack.c.h.b16 %v1647
        %v1959 = vunpack.c.l.b16 %v1648
        %v1960 = vunpack.c.h.b16 %v1648
        %v1961 = vunpack.c.l.b16 %v1649
        %v1962 = vunpack.c.h.b16 %v1649
        %v1963 = vunpack.c.l.b16 %v1650
        %v1964 = vunpack.c.h.b16 %v1650
        %v1965 = vunpack.c.l.b16 %v1651
        %v1966 = vunpack.c.h.b16 %v1651
        %v1967 = vunpack.c.l.b16 %v1652
        %v1968 = vunpack.c.h.b16 %v1652
        %v1969 = vunpack.c.l.b16 %v1653
        %v1970 = vunpack.c.h.b16 %v1653
        %v1971 = vunpack.c.l.b16 %v1654
        %v1972 = vunpack.c.h.b16 %v1654
        %v1973 = vunpack.c.l.b16 %v1655
        %v1974 = vunpack.c.h.b16 %v1655
        %v1975 = vunpack.c.l.b16 %v1656
        %v1976 = vunpack.c.h.b16 %v1656
        %v1977 = vunpack.c.l.b16 %v1657
        %v1978 = vunpack.c.h.b16 %v1657
        %v1979 = vunpack.c.l.b16 %v1658
        %v1980 = vunpack.c.h.b16 %v1658
        %v1981 = vunpack.c.l.b16 %v1659
        %v1982 = vunpack.c.h.b16 %v1659
        %v1983 = vunpack.c.l.b16 %v1660
        %v1984 = vunpack.c.h.b16 %v1660
        %v1985 = vunpack.c.l.b16 %v1661
        %v1986 = vunpack.c.h.b16 %v1661
        %v1987 = vunpack.c.l.b16 %v1662
        %v1988 = vunpack.c.h.b16 %v1662
        %v1989 = vunpack.c.l.b16 %v1663
        %v1990 = vunpack.c.h.b16 %v1663
        %v1991 = vunpack.c.l.b16 %v1664
        %v1992 = vunpack.c.h.b16 %v1664
        %v1993 = vunpack.c.l.b16 %v1665
        %v1994 = vunpack.c.h.b16 %v1665
        %v1995 = vunpack.c.l.b16 %v1666
        %v1996 = vunpack.c.h.b16 %v1666
        %v1997 = vunpack.c.l.b16 %v1667
        %v1998 = vunpack.c.h.b16 %v1667
        %v1999 = vunpack.c.l.b16 %v1668
        %v2000 = vunpack.c.h.b16 %v1668
        %v2001 = vunpack.c.l.b16 %v1669
        %v2002 = vunpack.c.h.b16 %v1669
        %v2003 = vunpack.c.l.b16 %v1670
        %v2004 = vunpack.c.h.b16 %v1670
        %v2005 = vunpack.c.l.b16 %v1671
        %v2006 = vunpack.c.h.b16 %v1671
        %v2007 = vunpack.c.l.b16 %v1672
        %v2008 = vunpack.c.h.b16 %v1672
        %v2009 = vunpack.c.l.b16 %v1673
        %v2010 = vunpack.c.h.b16 %v1673
        %v2011 = vunpack.c.l.b16 %v1674
        %v2012 = vunpack.c.h.b16 %v1674
        %v2013 = vunpack.c.l.b16 %v1675
        %v2014 = vunpack.c.h.b16 %v1675
        %v2015 = vunpack.c.l.b16 %v1676
        %v2016 = vunpack.c.h.b16 %v1676
        %v2017 = vunpack.c.l.b16 %v1677
        %v2018 = vunpack.c.h.b16 %v1677
        %v2019 = vunpack.c.l.b16 %v1678
        %v2020 = vunpack.c.h.b16 %v1678
        %v2021 = vunpack.c.l.b16 %v1679
        %v2022 = vunpack.c.h.b16 %v1679
        %v2023 = vunpack.c.l.b16 %v1680
        %v2024 = vunpack.c.h.b16 %v1680
        %v2025 = vunpack.c.l.b16 %v1681
        %v2026 = vunpack.c.h.b16 %v1681
        %v2027 = vunpack.c.l.b16 %v1682
        %v2028 = vunpack.c.h.b16 %v1682
        %v2029 = vunpack.c.l.b16 %v1683
        %v2030 = vunpack.c.h.b16 %v1683
        %v2031 = vunpack.c.l.b16 %v1684
        %v2032 = vunpack.c.h.b16 %v1684
        %v2033 = vunpack.c.l.b16 %v1685
        %v2034 = vunpack.c.h.b16 %v1685
        %v2035 = vunpack.c.l.b16 %v1686
        %v2036 = vunpack.c.h.b16 %v1686
        %v2037 = vunpack.c.l.b16 %v1687
        %v2038 = vunpack.c.h.b16 %v1687
        %v2039 = vunpack.c.l.b16 %v1688
        %v2040 = vunpack.c.h.b16 %v1688
        %v2041 = vunpack.c.l.b16 %v1689
        %v2042 = vunpack.c.h.b16 %v1689
        %v2043 = vunpack.c.l.b16 %v1690
        %v2044 = vunpack.c.h.b16 %v1690
        %v2045 = vunpack.c.l.b16 %v1691
        %v2046 = vunpack.c.h.b16 %v1691
        %v2047 = vunpack.c.l.b16 %v1692
        %v2048 = vunpack.c.h.b16 %v1692
        %v2049 = vunpack.c.l.b16 %v1693
        %v2050 = vunpack.c.h.b16 %v1693
        %v2051 = vunpack.c.l.b16 %v1694
        %v2052 = vunpack.c.h.b16 %v1694
        %v2053 = vunpack.c.l.b16 %v1695
        %v2054 = vunpack.c.h.b16 %v1695
        %v2055 = vunpack.c.l.b16 %v1696
        %v2056 = vunpack.c.h.b16 %v1696
        %v2057 = vunpack.c.l.b16 %v1697
        %v2058 = vunpack.c.h.b16 %v1697
        %v2059 = vunpack.c.l.b16 %v1698
        %v2060 = vunpack.c.h.b16 %v1698
        %v2061 = vunpack.c.l.b16 %v1699
        %v2062 = vunpack.c.h.b16 %v1699
        %v2063 = vunpack.c.l.b16 %v1700
        %v2064 = vunpack.c.h.b16 %v1700
        %v2065 = vunpack.c.l.b16 %v1701
        %v2066 = vunpack.c.h.b16 %v1701
        %v2067 = vunpack.c.l.b16 %v1702
        %v2068 = vunpack.c.h.b16 %v1702
        %v2069 = vunpack.c.l.b16 %v1703
        %v2070 = vunpack.c.h.b16 %v1703
        %v2071 = vunpack.c.l.b16 %v1704
        %v2072 = vunpack.c.h.b16 %v1704
        %v2073 = vunpack.c.l.b16 %v1705
        %v2074 = vunpack.c.h.b16 %v1705
        %v2075 = vunpack.c.l.b16 %v1706
        %v2076 = vunpack.c.h.b16 %v1706
        %v2077 = vunpack.c.l.b16 %v1707
        %v2078 = vunpack.c.h.b16 %v1707
        %v2079 = vunpack.c.l.b16 %v1708
        %v2080 = vunpack.c.h.b16 %v1708
        %v2081 = vunpack.c.l.b16 %v1709
        %v2082 = vunpack.c.h.b16 %v1709
        %v2083 = vunpack.c.l.b16 %v1710
        %v2084 = vunpack.c.h.b16 %v1710
        %v2085 = vunpack.c.l.b16 %v1711
        %v2086 = vunpack.c.h.b16 %v1711
        %v2087 = vunpack.c.l.b16 %v1712
        %v2088 = vunpack.c.h.b16 %v1712
        %v2089 = vunpack.c.l.b16 %v1713
        %v2090 = vunpack.c.h.b16 %v1713
        %v2091 = vunpack.c.l.b16 %v1714
        %v2092 = vunpack.c.h.b16 %v1714
        %v2093 = vunpack.c.l.b16 %v1715
        %v2094 = vunpack.c.h.b16 %v1715
        %v2095 = vunpack.c.l.b16 %v1716
        %v2096 = vunpack.c.h.b16 %v1716
        %v2097 = vunpack.c.l.b16 %v1717
        %v2098 = vunpack.c.h.b16 %v1717
        %v2099 = vunpack.c.l.b16 %v1718
        %v2100 = vunpack.c.h.b16 %v1718
        %v2101 = vunpack.c.l.b16 %v1719
        %v2102 = vunpack.c.h.b16 %v1719
        %v2103 = vunpack.c.l.b16 %v1720
        %v2104 = vunpack.c.h.b16 %v1720
        %v2105 = vunpack.c.l.b16 %v1721
        %v2106 = vunpack.c.h.b16 %v1721
        %v2107 = vunpack.c.l.b16 %v1722
        %v2108 = vunpack.c.h.b16 %v1722
        %v2109 = vunpack.c.l.b16 %v1723
        %v2110 = vunpack.c.h.b16 %v1723
        %v2111 = vunpack.c.l.b16 %v1724
        %v2112 = vunpack.c.h.b16 %v1724
        %v2113 = vunpack.c.l.b16 %v1725
        %v2114 = vunpack.c.h.b16 %v1725
        %v2115 = vunpack.c.l.b16 %v1726
        %v2116 = vunpack.c.h.b16 %v1726
        %v2117 = vunpack.c.l.b16 %v1727
        %v2118 = vunpack.c.h.b16 %v1727
        %v2119 = vunpack.c.l.b16 %v1728
        %v2120 = vunpack.c.h.b16 %v1728
        %v2121 = vunpack.c.l.b16 %v1729
        %v2122 = vunpack.c.h.b16 %v1729
        %v2123 = vunpack.c.l.b16 %v1730
        %v2124 = vunpack.c.h.b16 %v1730
        %v2125 = vpack.c.b16 %v1873, %v1869
        %v2126 = vpack.c.b16 %v1874, %v1870
        %v2127 = vpack.c.b16 %v1875, %v1871
        %v2128 = vpack.c.b16 %v1876, %v1872
        %v2129 = vpack.c.b16 %v1881, %v1877
        %v2130 = vpack.c.b16 %v1882, %v1878
        %v2131 = vpack.c.b16 %v1883, %v1879
        %v2132 = vpack.c.b16 %v1884, %v1880
        %v2133 = vpack.c.b16 %v1889, %v1885
        %v2134 = vpack.c.b16 %v1890, %v1886
        %v2135 = vpack.c.b16 %v1891, %v1887
        %v2136 = vpack.c.b16 %v1892, %v1888
        %v2137 = vpack.c.b16 %v1897, %v1893
        %v2138 = vpack.c.b16 %v1898, %v1894
        %v2139 = vpack.c.b16 %v1899, %v1895
        %v2140 = vpack.c.b16 %v1900, %v1896
        %v2141 = vpack.c.b16 %v1905, %v1901
        %v2142 = vpack.c.b16 %v1906, %v1902
        %v2143 = vpack.c.b16 %v1907, %v1903
        %v2144 = vpack.c.b16 %v1908, %v1904
        %v2145 = vpack.c.b16 %v1913, %v1909
        %v2146 = vpack.c.b16 %v1914, %v1910
        %v2147 = vpack.c.b16 %v1915, %v1911
        %v2148 = vpack.c.b16 %v1916, %v1912
        %v2149 = vpack.c.b16 %v1921, %v1917
        %v2150 = vpack.c.b16 %v1922, %v1918
        %v2151 = vpack.c.b16 %v1923, %v1919
        %v2152 = vpack.c.b16 %v1924, %v1920
        %v2153 = vpack.c.b16 %v1929, %v1925
        %v2154 = vpack.c.b16 %v1930, %v1926
        %v2155 = vpack.c.b16 %v1931, %v1927
        %v2156 = vpack.c.b16 %v1932, %v1928
        %v2157 = vpack.c.b16 %v1937, %v1933
        %v2158 = vpack.c.b16 %v1938, %v1934
        %v2159 = vpack.c.b16 %v1939, %v1935
        %v2160 = vpack.c.b16 %v1940, %v1936
        %v2161 = vpack.c.b16 %v1945, %v1941
        %v2162 = vpack.c.b16 %v1946, %v1942
        %v2163 = vpack.c.b16 %v1947, %v1943
        %v2164 = vpack.c.b16 %v1948, %v1944
        %v2165 = vpack.c.b16 %v1953, %v1949
        %v2166 = vpack.c.b16 %v1954, %v1950
        %v2167 = vpack.c.b16 %v1955, %v1951
        %v2168 = vpack.c.b16 %v1956, %v1952
        %v2169 = vpack.c.b16 %v1961, %v1957
        %v2170 = vpack.c.b16 %v1962, %v1958
        %v2171 = vpack.c.b16 %v1963, %v1959
        %v2172 = vpack.c.b16 %v1964, %v1960
        %v2173 = vpack.c.b16 %v1969, %v1965
        %v2174 = vpack.c.b16 %v1970, %v1966
        %v2175 = vpack.c.b16 %v1971, %v1967
        %v2176 = vpack.c.b16 %v1972, %v1968
        %v2177 = vpack.c.b16 %v1977, %v1973
        %v2178 = vpack.c.b16 %v1978, %v1974
        %v2179 = vpack.c.b16 %v1979, %v1975
        %v2180 = vpack.c.b16 %v1980, %v1976
        %v2181 = vpack.c.b16 %v1985, %v1981
        %v2182 = vpack.c.b16 %v1986, %v1982
        %v2183 = vpack.c.b16 %v1987, %v1983
        %v2184 = vpack.c.b16 %v1988, %v1984
        %v2185 = vpack.c.b16 %v1993, %v1989
        %v2186 = vpack.c.b16 %v1994, %v1990
        %v2187 = vpack.c.b16 %v1995, %v1991
        %v2188 = vpack.c.b16 %v1996, %v1992
        %v2189 = vpack.c.b16 %v2001, %v1997
        %v2190 = vpack.c.b16 %v2002, %v1998
        %v2191 = vpack.c.b16 %v2003, %v1999
        %v2192 = vpack.c.b16 %v2004, %v2000
        %v2193 = vpack.c.b16 %v2009, %v2005
        %v2194 = vpack.c.b16 %v2010, %v2006
        %v2195 = vpack.c.b16 %v2011, %v2007
        %v2196 = vpack.c.b16 %v2012, %v2008
        %v2197 = vpack.c.b16 %v2017, %v2013
        %v2198 = vpack.c.b16 %v2018, %v2014
        %v2199 = vpack.c.b16 %v2019, %v2015
        %v2200 = vpack.c.b16 %v2020, %v2016
        %v2201 = vpack.c.b16 %v2025, %v2021
        %v2202 = vpack.c.b16 %v2026, %v2022
        %v2203 = vpack.c.b16 %v2027, %v2023
        %v2204 = vpack.c.b16 %v2028, %v2024
        %v2205 = vpack.c.b16 %v2033, %v2029
        %v2206 = vpack.c.b16 %v2034, %v2030
        %v2207 = vpack.c.b16 %v2035, %v2031
        %v2208 = vpack.c.b16 %v2036, %v2032
        %v2209 = vpack.c.b16 %v2041, %v2037
        %v2210 = vpack.c.b16 %v2042, %v2038
        %v2211 = vpack.c.b16 %v2043, %v2039
        %v2212 = vpack.c.b16 %v2044, %v2040
        %v2213 = vpack.c.b16 %v2049, %v2045
        %v2214 = vpack.c.b16 %v2050, %v2046
        %v2215 = vpack.c.b16 %v2051, %v2047
        %v2216 = vpack.c.b16 %v2052, %v2048
        %v2217 = vpack.c.b16 %v2057, %v2053
        %v2218 = vpack.c.b16 %v2058, %v2054
        %v2219 = vpack.c.b16 %v2059, %v2055
        %v2220 = vpack.c.b16 %v2060, %v2056
        %v2221 = vpack.c.b16 %v2065, %v2061
        %v2222 = vpack.c.b16 %v2066, %v2062
        %v2223 = vpack.c.b16 %v2067, %v2063
        %v2224 = vpack.c.b16 %v2068, %v2064
        %v2225 = vpack.c.b16 %v2073, %v2069
        %v2226 = vpack.c.b16 %v2074, %v2070
        %v2227 = vpack.c.b16 %v2075, %v2071
        %v2228 = vpack.c.b16 %v2076, %v2072
        %v2229 = vpack.c.b16 %v2081, %v2077
        %v2230 = vpack.c.b16 %v2082, %v2078
        %v2231 = vpack.c.b16 %v2083, %v2079
        %v2232 = vpack.c.b16 %v2084, %v2080
        %v2233 = vpack.c.b16 %v2089, %v2085
        %v2234 = vpack.c.b16 %v2090, %v2086
        %v2235 = vpack.c.b16 %v2091, %v2087
        %v2236 = vpack.c.b16 %v2092, %v2088
        %v2237 = vpack.c.b16 %v2097, %v2093
        %v2238 = vpack.c.b16 %v2098, %v2094
        %v2239 = vpack.c.b16 %v2099, %v2095
        %v2240 = vpack.c.b16 %v2100, %v2096
        %v2241 = vpack.c.b16 %v2105, %v2101
        %v2242 = vpack.c.b16 %v2106, %v2102
        %v2243 = vpack.c.b16 %v2107, %v2103
        %v2244 = vpack.c.b16 %v2108, %v2104
        %v2245 = vpack.c.b16 %v2113, %v2109
        %v2246 = vpack.c.b16 %v2114, %v2110
        %v2247 = vpack.c.b16 %v2115, %v2111
        %v2248 = vpack.c.b16 %v2116, %v2112
        %v2249 = vpack.c.b16 %v2121, %v2117
        %v2250 = vpack.c.b16 %v2122, %v2118
        %v2251 = vpack.c.b16 %v2123, %v2119
        %v2252 = vpack.c.b16 %v2124, %v2120
        %2381 = vmatpush.bf16.msra.mxu0 %v2153
        %2382 = vmatpush.bf16.msra.mxu0 %v2149
        %2383 = vmatpush.bf16.msra.mxu0 %v2145
        %2384 = vmatpush.bf16.msra.mxu0 %v2141
        %2385 = vmatpush.bf16.msra.mxu0 %v2137
        %2386 = vmatpush.bf16.msra.mxu0 %v2133
        %2387 = vmatpush.bf16.msra.mxu0 %v2129
        %2388 = vmatpush.bf16.msra.mxu0 %v2125
        %2389 = vmatmul.bf16.gmra.mxu0 %v1599
        %v2390 = vpop.f32.mrf.mxu0
        %v2391 = vadd.f32 %v1733, %v2390
        %v2392 = vpop.f32.mrf.mxu0
        %2393 = vdwg.mxu0
        %2394 = vmatpush.bf16.msra.mxu0 %v2185
        %2395 = vmatpush.bf16.msra.mxu0 %v2181
        %2396 = vmatpush.bf16.msra.mxu0 %v2177
        %2397 = vmatpush.bf16.msra.mxu0 %v2173
        %2398 = vmatpush.bf16.msra.mxu0 %v2169
        %2399 = vmatpush.bf16.msra.mxu0 %v2165
        %2400 = vmatpush.bf16.msra.mxu0 %v2161
        %2401 = vmatpush.bf16.msra.mxu0 %v2157
        %2402 = vmatmul.bf16.gmra.mxu0 %v1600
        %v2403 = vpop.f32.mrf.mxu0
        %v2404 = vadd.f32 %v2391, %v2403
        %v2405 = vpop.f32.mrf.mxu0
        %2406 = vdwg.mxu0
        %2407 = vmatpush.bf16.msra.mxu0 %v2217
        %2408 = vmatpush.bf16.msra.mxu0 %v2213
        %2409 = vmatpush.bf16.msra.mxu0 %v2209
        %2410 = vmatpush.bf16.msra.mxu0 %v2205
        %2411 = vmatpush.bf16.msra.mxu0 %v2201
        %2412 = vmatpush.bf16.msra.mxu0 %v2197
        %2413 = vmatpush.bf16.msra.mxu0 %v2193
        %2414 = vmatpush.bf16.msra.mxu0 %v2189
        %2415 = vmatmul.bf16.gmra.mxu0 %v1601
        %v2416 = vpop.f32.mrf.mxu0
        %v2417 = vadd.f32 %v2404, %v2416
        %v2418 = vpop.f32.mrf.mxu0
        %2419 = vdwg.mxu0
        %2420 = vmatpush.bf16.msra.mxu0 %v2249
        %2421 = vmatpush.bf16.msra.mxu0 %v2245
        %2422 = vmatpush.bf16.msra.mxu0 %v2241
        %2423 = vmatpush.bf16.msra.mxu0 %v2237
        %2424 = vmatpush.bf16.msra.mxu0 %v2233
        %2425 = vmatpush.bf16.msra.mxu0 %v2229
        %2426 = vmatpush.bf16.msra.mxu0 %v2225
        %2427 = vmatpush.bf16.msra.mxu0 %v2221
        %2428 = vmatmul.bf16.gmra.mxu0 %v1602
        %v2429 = vpop.f32.mrf.mxu0
        %v2430 = vadd.f32 %v2417, %v2429
        %v2431 = vpop.f32.mrf.mxu0
        %2432 = vdwg.mxu0
        %2433 = vmatpush.bf16.msra.mxu0 %v2154
        %2434 = vmatpush.bf16.msra.mxu0 %v2150
        %2435 = vmatpush.bf16.msra.mxu0 %v2146
        %2436 = vmatpush.bf16.msra.mxu0 %v2142
        %2437 = vmatpush.bf16.msra.mxu0 %v2138
        %2438 = vmatpush.bf16.msra.mxu0 %v2134
        %2439 = vmatpush.bf16.msra.mxu0 %v2130
        %2440 = vmatpush.bf16.msra.mxu0 %v2126
        %2441 = vmatmul.bf16.gmra.mxu0 %v1599
        %v2442 = vpop.f32.mrf.mxu0
        %v2443 = vadd.f32 %v1734, %v2442
        %v2444 = vpop.f32.mrf.mxu0
        %2445 = vdwg.mxu0
        %2446 = vmatpush.bf16.msra.mxu0 %v2186
        %2447 = vmatpush.bf16.msra.mxu0 %v2182
        %2448 = vmatpush.bf16.msra.mxu0 %v2178
        %2449 = vmatpush.bf16.msra.mxu0 %v2174
        %2450 = vmatpush.bf16.msra.mxu0 %v2170
        %2451 = vmatpush.bf16.msra.mxu0 %v2166
        %2452 = vmatpush.bf16.msra.mxu0 %v2162
        %2453 = vmatpush.bf16.msra.mxu0 %v2158
        %2454 = vmatmul.bf16.gmra.mxu0 %v1600
        %v2455 = vpop.f32.mrf.mxu0
        %v2456 = vadd.f32 %v2443, %v2455
        %v2457 = vpop.f32.mrf.mxu0
        %2458 = vdwg.mxu0
        %2459 = vmatpush.bf16.msra.mxu0 %v2218
        %2460 = vmatpush.bf16.msra.mxu0 %v2214
        %2461 = vmatpush.bf16.msra.mxu0 %v2210
        %2462 = vmatpush.bf16.msra.mxu0 %v2206
        %2463 = vmatpush.bf16.msra.mxu0 %v2202
        %2464 = vmatpush.bf16.msra.mxu0 %v2198
        %2465 = vmatpush.bf16.msra.mxu0 %v2194
        %2466 = vmatpush.bf16.msra.mxu0 %v2190
        %2467 = vmatmul.bf16.gmra.mxu0 %v1601
        %v2468 = vpop.f32.mrf.mxu0
        %v2469 = vadd.f32 %v2456, %v2468
        %v2470 = vpop.f32.mrf.mxu0
        %2471 = vdwg.mxu0
        %2472 = vmatpush.bf16.msra.mxu0 %v2250
        %2473 = vmatpush.bf16.msra.mxu0 %v2246
        %2474 = vmatpush.bf16.msra.mxu0 %v2242
        %2475 = vmatpush.bf16.msra.mxu0 %v2238
        %2476 = vmatpush.bf16.msra.mxu0 %v2234
        %2477 = vmatpush.bf16.msra.mxu0 %v2230
        %2478 = vmatpush.bf16.msra.mxu0 %v2226
        %2479 = vmatpush.bf16.msra.mxu0 %v2222
        %2480 = vmatmul.bf16.gmra.mxu0 %v1602
        %v2481 = vpop.f32.mrf.mxu0
        %v2482 = vadd.f32 %v2469, %v2481
        %v2483 = vpop.f32.mrf.mxu0
        %2484 = vdwg.mxu0
        %2485 = vmatpush.bf16.msra.mxu0 %v2155
        %2486 = vmatpush.bf16.msra.mxu0 %v2151
        %2487 = vmatpush.bf16.msra.mxu0 %v2147
        %2488 = vmatpush.bf16.msra.mxu0 %v2143
        %2489 = vmatpush.bf16.msra.mxu0 %v2139
        %2490 = vmatpush.bf16.msra.mxu0 %v2135
        %2491 = vmatpush.bf16.msra.mxu0 %v2131
        %2492 = vmatpush.bf16.msra.mxu0 %v2127
        %2493 = vmatmul.bf16.gmra.mxu0 %v1599
        %v2494 = vpop.f32.mrf.mxu0
        %v2495 = vadd.f32 %v1735, %v2494
        %v2496 = vpop.f32.mrf.mxu0
        %2497 = vdwg.mxu0
        %2498 = vmatpush.bf16.msra.mxu0 %v2187
        %2499 = vmatpush.bf16.msra.mxu0 %v2183
        %2500 = vmatpush.bf16.msra.mxu0 %v2179
        %2501 = vmatpush.bf16.msra.mxu0 %v2175
        %2502 = vmatpush.bf16.msra.mxu0 %v2171
        %2503 = vmatpush.bf16.msra.mxu0 %v2167
        %2504 = vmatpush.bf16.msra.mxu0 %v2163
        %2505 = vmatpush.bf16.msra.mxu0 %v2159
        %2506 = vmatmul.bf16.gmra.mxu0 %v1600
        %v2507 = vpop.f32.mrf.mxu0
        %v2508 = vadd.f32 %v2495, %v2507
        %v2509 = vpop.f32.mrf.mxu0
        %2510 = vdwg.mxu0
        %2511 = vmatpush.bf16.msra.mxu0 %v2219
        %2512 = vmatpush.bf16.msra.mxu0 %v2215
        %2513 = vmatpush.bf16.msra.mxu0 %v2211
        %2514 = vmatpush.bf16.msra.mxu0 %v2207
        %2515 = vmatpush.bf16.msra.mxu0 %v2203
        %2516 = vmatpush.bf16.msra.mxu0 %v2199
        %2517 = vmatpush.bf16.msra.mxu0 %v2195
        %2518 = vmatpush.bf16.msra.mxu0 %v2191
        %2519 = vmatmul.bf16.gmra.mxu0 %v1601
        %v2520 = vpop.f32.mrf.mxu0
        %v2521 = vadd.f32 %v2508, %v2520
        %v2522 = vpop.f32.mrf.mxu0
        %2523 = vdwg.mxu0
        %2524 = vmatpush.bf16.msra.mxu0 %v2251
        %2525 = vmatpush.bf16.msra.mxu0 %v2247
        %2526 = vmatpush.bf16.msra.mxu0 %v2243
        %2527 = vmatpush.bf16.msra.mxu0 %v2239
        %2528 = vmatpush.bf16.msra.mxu0 %v2235
        %2529 = vmatpush.bf16.msra.mxu0 %v2231
        %2530 = vmatpush.bf16.msra.mxu0 %v2227
        %2531 = vmatpush.bf16.msra.mxu0 %v2223
        %2532 = vmatmul.bf16.gmra.mxu0 %v1602
        %v2533 = vpop.f32.mrf.mxu0
        %v2534 = vadd.f32 %v2521, %v2533
        %v2535 = vpop.f32.mrf.mxu0
        %2536 = vdwg.mxu0
        %2537 = vmatpush.bf16.msra.mxu0 %v2156
        %2538 = vmatpush.bf16.msra.mxu0 %v2152
        %2539 = vmatpush.bf16.msra.mxu0 %v2148
        %2540 = vmatpush.bf16.msra.mxu0 %v2144
        %2541 = vmatpush.bf16.msra.mxu0 %v2140
        %2542 = vmatpush.bf16.msra.mxu0 %v2136
        %2543 = vmatpush.bf16.msra.mxu0 %v2132
        %2544 = vmatpush.bf16.msra.mxu0 %v2128
        %2545 = vmatmul.bf16.gmra.mxu0 %v1599
        %v2546 = vpop.f32.mrf.mxu0
        %v2547 = vadd.f32 %v1736, %v2546
        %v2548 = vpop.f32.mrf.mxu0
        %2549 = vdwg.mxu0
        %2550 = vmatpush.bf16.msra.mxu0 %v2188
        %2551 = vmatpush.bf16.msra.mxu0 %v2184
        %2552 = vmatpush.bf16.msra.mxu0 %v2180
        %2553 = vmatpush.bf16.msra.mxu0 %v2176
        %2554 = vmatpush.bf16.msra.mxu0 %v2172
        %2555 = vmatpush.bf16.msra.mxu0 %v2168
        %2556 = vmatpush.bf16.msra.mxu0 %v2164
        %2557 = vmatpush.bf16.msra.mxu0 %v2160
        %2558 = vmatmul.bf16.gmra.mxu0 %v1600
        %v2559 = vpop.f32.mrf.mxu0
        %v2560 = vadd.f32 %v2547, %v2559
        %v2561 = vpop.f32.mrf.mxu0
        %2562 = vdwg.mxu0
        %2563 = vmatpush.bf16.msra.mxu0 %v2220
        %2564 = vmatpush.bf16.msra.mxu0 %v2216
        %2565 = vmatpush.bf16.msra.mxu0 %v2212
        %2566 = vmatpush.bf16.msra.mxu0 %v2208
        %2567 = vmatpush.bf16.msra.mxu0 %v2204
        %2568 = vmatpush.bf16.msra.mxu0 %v2200
        %2569 = vmatpush.bf16.msra.mxu0 %v2196
        %2570 = vmatpush.bf16.msra.mxu0 %v2192
        %2571 = vmatmul.bf16.gmra.mxu0 %v1601
        %v2572 = vpop.f32.mrf.mxu0
        %v2573 = vadd.f32 %v2560, %v2572
        %v2574 = vpop.f32.mrf.mxu0
        %2575 = vdwg.mxu0
        %2576 = vmatpush.bf16.msra.mxu0 %v2252
        %2577 = vmatpush.bf16.msra.mxu0 %v2248
        %2578 = vmatpush.bf16.msra.mxu0 %v2244
        %2579 = vmatpush.bf16.msra.mxu0 %v2240
        %2580 = vmatpush.bf16.msra.mxu0 %v2236
        %2581 = vmatpush.bf16.msra.mxu0 %v2232
        %2582 = vmatpush.bf16.msra.mxu0 %v2228
        %2583 = vmatpush.bf16.msra.mxu0 %v2224
        %2584 = vmatmul.bf16.gmra.mxu0 %v1602
        %v2585 = vpop.f32.mrf.mxu0
        %v2586 = vadd.f32 %v2573, %v2585
        %v2587 = vpop.f32.mrf.mxu0
        %2588 = vdwg.mxu0
        %v2589 = vmax.f32 %v2430, 0.0
        %v2590 = vmax.f32 %v2482, 0.0
        %v2591 = vmax.f32 %v2534, 0.0
        %v2592 = vmax.f32 %v2586, 0.0
        %v2593 = vpack.c.bf16 %v2589, %v2589
        %v2594 = vpack.c.bf16 %v2590, %v2590
        %v2595 = vpack.c.bf16 %v2591, %v2591
        %v2596 = vpack.c.bf16 %v2592, %v2592
        %v2597 = vld [vmem:[%s7] sm:$0xff]
        %v2598 = vld [vmem:[%s7 + $0x8] sm:$0xff]
        %v2599 = vld [vmem:[%s7 + $0x10] sm:$0xff]
        %v2600 = vld [vmem:[%s7 + $0x18] sm:$0xff]
        %v2601 = vld [vmem:[%s7 + $0x20] sm:$0xff]
        %v2602 = vld [vmem:[%s7 + $0x28] sm:$0xff]
        %v2603 = vld [vmem:[%s7 + $0x30] sm:$0xff]
        %v2604 = vld [vmem:[%s7 + $0x38] sm:$0xff]
        %v2605 = vld [vmem:[%s7 + $0x40] sm:$0xff]
        %v2606 = vld [vmem:[%s7 + $0x48] sm:$0xff]
        %v2607 = vld [vmem:[%s7 + $0x50] sm:$0xff]
        %v2608 = vld [vmem:[%s7 + $0x58] sm:$0xff]
        %v2609 = vld [vmem:[%s7 + $0x60] sm:$0xff]
        %v2610 = vld [vmem:[%s7 + $0x68] sm:$0xff]
        %v2611 = vld [vmem:[%s7 + $0x70] sm:$0xff]
        %v2612 = vld [vmem:[%s7 + $0x78] sm:$0xff]
        %v2613 = vld [vmem:[%s7 + $0x80] sm:$0xff]
        %v2614 = vld [vmem:[%s7 + $0x88] sm:$0xff]
        %v2615 = vld [vmem:[%s7 + $0x90] sm:$0xff]
        %v2616 = vld [vmem:[%s7 + $0x98] sm:$0xff]
        %v2617 = vld [vmem:[%s7 + $0xa0] sm:$0xff]
        %v2618 = vld [vmem:[%s7 + $0xa8] sm:$0xff]
        %v2619 = vld [vmem:[%s7 + $0xb0] sm:$0xff]
        %v2620 = vld [vmem:[%s7 + $0xb8] sm:$0xff]
        %v2621 = vld [vmem:[%s7 + $0xc0] sm:$0xff]
        %v2622 = vld [vmem:[%s7 + $0xc8] sm:$0xff]
        %v2623 = vld [vmem:[%s7 + $0xd0] sm:$0xff]
        %v2624 = vld [vmem:[%s7 + $0xd8] sm:$0xff]
        %v2625 = vld [vmem:[%s7 + $0xe0] sm:$0xff]
        %v2626 = vld [vmem:[%s7 + $0xe8] sm:$0xff]
        %v2627 = vld [vmem:[%s7 + $0xf0] sm:$0xff]
        %v2628 = vld [vmem:[%s7 + $0xf8] sm:$0xff]
        %v2629 = vld [vmem:[%s7 + $0x100] sm:$0xff]
        %v2630 = vld [vmem:[%s7 + $0x108] sm:$0xff]
        %v2631 = vld [vmem:[%s7 + $0x110] sm:$0xff]
        %v2632 = vld [vmem:[%s7 + $0x118] sm:$0xff]
        %v2633 = vld [vmem:[%s7 + $0x120] sm:$0xff]
        %v2634 = vld [vmem:[%s7 + $0x128] sm:$0xff]
        %v2635 = vld [vmem:[%s7 + $0x130] sm:$0xff]
        %v2636 = vld [vmem:[%s7 + $0x138] sm:$0xff]
        %v2637 = vld [vmem:[%s7 + $0x140] sm:$0xff]
        %v2638 = vld [vmem:[%s7 + $0x148] sm:$0xff]
        %v2639 = vld [vmem:[%s7 + $0x150] sm:$0xff]
        %v2640 = vld [vmem:[%s7 + $0x158] sm:$0xff]
        %v2641 = vld [vmem:[%s7 + $0x160] sm:$0xff]
        %v2642 = vld [vmem:[%s7 + $0x168] sm:$0xff]
        %v2643 = vld [vmem:[%s7 + $0x170] sm:$0xff]
        %v2644 = vld [vmem:[%s7 + $0x178] sm:$0xff]
        %v2645 = vld [vmem:[%s7 + $0x180] sm:$0xff]
        %v2646 = vld [vmem:[%s7 + $0x188] sm:$0xff]
        %v2647 = vld [vmem:[%s7 + $0x190] sm:$0xff]
        %v2648 = vld [vmem:[%s7 + $0x198] sm:$0xff]
        %v2649 = vld [vmem:[%s7 + $0x1a0] sm:$0xff]
        %v2650 = vld [vmem:[%s7 + $0x1a8] sm:$0xff]
        %v2651 = vld [vmem:[%s7 + $0x1b0] sm:$0xff]
        %v2652 = vld [vmem:[%s7 + $0x1b8] sm:$0xff]
        %v2653 = vld [vmem:[%s7 + $0x1c0] sm:$0xff]
        %v2654 = vld [vmem:[%s7 + $0x1c8] sm:$0xff]
        %v2655 = vld [vmem:[%s7 + $0x1d0] sm:$0xff]
        %v2656 = vld [vmem:[%s7 + $0x1d8] sm:$0xff]
        %v2657 = vld [vmem:[%s7 + $0x1e0] sm:$0xff]
        %v2658 = vld [vmem:[%s7 + $0x1e8] sm:$0xff]
        %v2659 = vld [vmem:[%s7 + $0x1f0] sm:$0xff]
        %v2660 = vld [vmem:[%s7 + $0x1f8] sm:$0xff]
        %v2661 = vld [vmem:[%s7 + $0x200] sm:$0xff]
        %v2662 = vld [vmem:[%s7 + $0x208] sm:$0xff]
        %v2663 = vld [vmem:[%s7 + $0x210] sm:$0xff]
        %v2664 = vld [vmem:[%s7 + $0x218] sm:$0xff]
        %v2665 = vld [vmem:[%s7 + $0x220] sm:$0xff]
        %v2666 = vld [vmem:[%s7 + $0x228] sm:$0xff]
        %v2667 = vld [vmem:[%s7 + $0x230] sm:$0xff]
        %v2668 = vld [vmem:[%s7 + $0x238] sm:$0xff]
        %v2669 = vld [vmem:[%s7 + $0x240] sm:$0xff]
        %v2670 = vld [vmem:[%s7 + $0x248] sm:$0xff]
        %v2671 = vld [vmem:[%s7 + $0x250] sm:$0xff]
        %v2672 = vld [vmem:[%s7 + $0x258] sm:$0xff]
        %v2673 = vld [vmem:[%s7 + $0x260] sm:$0xff]
        %v2674 = vld [vmem:[%s7 + $0x268] sm:$0xff]
        %v2675 = vld [vmem:[%s7 + $0x270] sm:$0xff]
        %v2676 = vld [vmem:[%s7 + $0x278] sm:$0xff]
        %v2677 = vld [vmem:[%s7 + $0x280] sm:$0xff]
        %v2678 = vld [vmem:[%s7 + $0x288] sm:$0xff]
        %v2679 = vld [vmem:[%s7 + $0x290] sm:$0xff]
        %v2680 = vld [vmem:[%s7 + $0x298] sm:$0xff]
        %v2681 = vld [vmem:[%s7 + $0x2a0] sm:$0xff]
        %v2682 = vld [vmem:[%s7 + $0x2a8] sm:$0xff]
        %v2683 = vld [vmem:[%s7 + $0x2b0] sm:$0xff]
        %v2684 = vld [vmem:[%s7 + $0x2b8] sm:$0xff]
        %v2685 = vld [vmem:[%s7 + $0x2c0] sm:$0xff]
        %v2686 = vld [vmem:[%s7 + $0x2c8] sm:$0xff]
        %v2687 = vld [vmem:[%s7 + $0x2d0] sm:$0xff]
        %v2688 = vld [vmem:[%s7 + $0x2d8] sm:$0xff]
        %v2689 = vld [vmem:[%s7 + $0x2e0] sm:$0xff]
        %v2690 = vld [vmem:[%s7 + $0x2e8] sm:$0xff]
        %v2691 = vld [vmem:[%s7 + $0x2f0] sm:$0xff]
        %v2692 = vld [vmem:[%s7 + $0x2f8] sm:$0xff]
        %v2693 = vld [vmem:[%s7 + $0x300] sm:$0xff]
        %v2694 = vld [vmem:[%s7 + $0x308] sm:$0xff]
        %v2695 = vld [vmem:[%s7 + $0x310] sm:$0xff]
        %v2696 = vld [vmem:[%s7 + $0x318] sm:$0xff]
        %v2697 = vld [vmem:[%s7 + $0x320] sm:$0xff]
        %v2698 = vld [vmem:[%s7 + $0x328] sm:$0xff]
        %v2699 = vld [vmem:[%s7 + $0x330] sm:$0xff]
        %v2700 = vld [vmem:[%s7 + $0x338] sm:$0xff]
        %v2701 = vld [vmem:[%s7 + $0x340] sm:$0xff]
        %v2702 = vld [vmem:[%s7 + $0x348] sm:$0xff]
        %v2703 = vld [vmem:[%s7 + $0x350] sm:$0xff]
        %v2704 = vld [vmem:[%s7 + $0x358] sm:$0xff]
        %v2705 = vld [vmem:[%s7 + $0x360] sm:$0xff]
        %v2706 = vld [vmem:[%s7 + $0x368] sm:$0xff]
        %v2707 = vld [vmem:[%s7 + $0x370] sm:$0xff]
        %v2708 = vld [vmem:[%s7 + $0x378] sm:$0xff]
        %v2709 = vld [vmem:[%s7 + $0x380] sm:$0xff]
        %v2710 = vld [vmem:[%s7 + $0x388] sm:$0xff]
        %v2711 = vld [vmem:[%s7 + $0x390] sm:$0xff]
        %v2712 = vld [vmem:[%s7 + $0x398] sm:$0xff]
        %v2713 = vld [vmem:[%s7 + $0x3a0] sm:$0xff]
        %v2714 = vld [vmem:[%s7 + $0x3a8] sm:$0xff]
        %v2715 = vld [vmem:[%s7 + $0x3b0] sm:$0xff]
        %v2716 = vld [vmem:[%s7 + $0x3b8] sm:$0xff]
        %v2717 = vld [vmem:[%s7 + $0x3c0] sm:$0xff]
        %v2718 = vld [vmem:[%s7 + $0x3c8] sm:$0xff]
        %v2719 = vld [vmem:[%s7 + $0x3d0] sm:$0xff]
        %v2720 = vld [vmem:[%s7 + $0x3d8] sm:$0xff]
        %v2721 = vld [vmem:[%s7 + $0x3e0] sm:$0xff]
        %v2722 = vld [vmem:[%s7 + $0x3e8] sm:$0xff]
        %v2723 = vld [vmem:[%s7 + $0x3f0] sm:$0xff]
        %v2724 = vld [vmem:[%s7 + $0x3f8] sm:$0xff]
        %v2725 = vld [vmem:[%s8] sm:$0xf]
        %v2727 = vperm.slane %v2725, 0
        %v2728 = vperm.slane %v2725, 1
        %v2729 = vperm.slane %v2725, 2
        %v2730 = vperm.slane %v2725, 3
        %v2863 = vunpack.c.l.b16 %v2597
        %v2864 = vunpack.c.h.b16 %v2597
        %v2865 = vunpack.c.l.b16 %v2598
        %v2866 = vunpack.c.h.b16 %v2598
        %v2867 = vunpack.c.l.b16 %v2599
        %v2868 = vunpack.c.h.b16 %v2599
        %v2869 = vunpack.c.l.b16 %v2600
        %v2870 = vunpack.c.h.b16 %v2600
        %v2871 = vunpack.c.l.b16 %v2601
        %v2872 = vunpack.c.h.b16 %v2601
        %v2873 = vunpack.c.l.b16 %v2602
        %v2874 = vunpack.c.h.b16 %v2602
        %v2875 = vunpack.c.l.b16 %v2603
        %v2876 = vunpack.c.h.b16 %v2603
        %v2877 = vunpack.c.l.b16 %v2604
        %v2878 = vunpack.c.h.b16 %v2604
        %v2879 = vunpack.c.l.b16 %v2605
        %v2880 = vunpack.c.h.b16 %v2605
        %v2881 = vunpack.c.l.b16 %v2606
        %v2882 = vunpack.c.h.b16 %v2606
        %v2883 = vunpack.c.l.b16 %v2607
        %v2884 = vunpack.c.h.b16 %v2607
        %v2885 = vunpack.c.l.b16 %v2608
        %v2886 = vunpack.c.h.b16 %v2608
        %v2887 = vunpack.c.l.b16 %v2609
        %v2888 = vunpack.c.h.b16 %v2609
        %v2889 = vunpack.c.l.b16 %v2610
        %v2890 = vunpack.c.h.b16 %v2610
        %v2891 = vunpack.c.l.b16 %v2611
        %v2892 = vunpack.c.h.b16 %v2611
        %v2893 = vunpack.c.l.b16 %v2612
        %v2894 = vunpack.c.h.b16 %v2612
        %v2895 = vunpack.c.l.b16 %v2613
        %v2896 = vunpack.c.h.b16 %v2613
        %v2897 = vunpack.c.l.b16 %v2614
        %v2898 = vunpack.c.h.b16 %v2614
        %v2899 = vunpack.c.l.b16 %v2615
        %v2900 = vunpack.c.h.b16 %v2615
        %v2901 = vunpack.c.l.b16 %v2616
        %v2902 = vunpack.c.h.b16 %v2616
        %v2903 = vunpack.c.l.b16 %v2617
        %v2904 = vunpack.c.h.b16 %v2617
        %v2905 = vunpack.c.l.b16 %v2618
        %v2906 = vunpack.c.h.b16 %v2618
        %v2907 = vunpack.c.l.b16 %v2619
        %v2908 = vunpack.c.h.b16 %v2619
        %v2909 = vunpack.c.l.b16 %v2620
        %v2910 = vunpack.c.h.b16 %v2620
        %v2911 = vunpack.c.l.b16 %v2621
        %v2912 = vunpack.c.h.b16 %v2621
        %v2913 = vunpack.c.l.b16 %v2622
        %v2914 = vunpack.c.h.b16 %v2622
        %v2915 = vunpack.c.l.b16 %v2623
        %v2916 = vunpack.c.h.b16 %v2623
        %v2917 = vunpack.c.l.b16 %v2624
        %v2918 = vunpack.c.h.b16 %v2624
        %v2919 = vunpack.c.l.b16 %v2625
        %v2920 = vunpack.c.h.b16 %v2625
        %v2921 = vunpack.c.l.b16 %v2626
        %v2922 = vunpack.c.h.b16 %v2626
        %v2923 = vunpack.c.l.b16 %v2627
        %v2924 = vunpack.c.h.b16 %v2627
        %v2925 = vunpack.c.l.b16 %v2628
        %v2926 = vunpack.c.h.b16 %v2628
        %v2927 = vunpack.c.l.b16 %v2629
        %v2928 = vunpack.c.h.b16 %v2629
        %v2929 = vunpack.c.l.b16 %v2630
        %v2930 = vunpack.c.h.b16 %v2630
        %v2931 = vunpack.c.l.b16 %v2631
        %v2932 = vunpack.c.h.b16 %v2631
        %v2933 = vunpack.c.l.b16 %v2632
        %v2934 = vunpack.c.h.b16 %v2632
        %v2935 = vunpack.c.l.b16 %v2633
        %v2936 = vunpack.c.h.b16 %v2633
        %v2937 = vunpack.c.l.b16 %v2634
        %v2938 = vunpack.c.h.b16 %v2634
        %v2939 = vunpack.c.l.b16 %v2635
        %v2940 = vunpack.c.h.b16 %v2635
        %v2941 = vunpack.c.l.b16 %v2636
        %v2942 = vunpack.c.h.b16 %v2636
        %v2943 = vunpack.c.l.b16 %v2637
        %v2944 = vunpack.c.h.b16 %v2637
        %v2945 = vunpack.c.l.b16 %v2638
        %v2946 = vunpack.c.h.b16 %v2638
        %v2947 = vunpack.c.l.b16 %v2639
        %v2948 = vunpack.c.h.b16 %v2639
        %v2949 = vunpack.c.l.b16 %v2640
        %v2950 = vunpack.c.h.b16 %v2640
        %v2951 = vunpack.c.l.b16 %v2641
        %v2952 = vunpack.c.h.b16 %v2641
        %v2953 = vunpack.c.l.b16 %v2642
        %v2954 = vunpack.c.h.b16 %v2642
        %v2955 = vunpack.c.l.b16 %v2643
        %v2956 = vunpack.c.h.b16 %v2643
        %v2957 = vunpack.c.l.b16 %v2644
        %v2958 = vunpack.c.h.b16 %v2644
        %v2959 = vunpack.c.l.b16 %v2645
        %v2960 = vunpack.c.h.b16 %v2645
        %v2961 = vunpack.c.l.b16 %v2646
        %v2962 = vunpack.c.h.b16 %v2646
        %v2963 = vunpack.c.l.b16 %v2647
        %v2964 = vunpack.c.h.b16 %v2647
        %v2965 = vunpack.c.l.b16 %v2648
        %v2966 = vunpack.c.h.b16 %v2648
        %v2967 = vunpack.c.l.b16 %v2649
        %v2968 = vunpack.c.h.b16 %v2649
        %v2969 = vunpack.c.l.b16 %v2650
        %v2970 = vunpack.c.h.b16 %v2650
        %v2971 = vunpack.c.l.b16 %v2651
        %v2972 = vunpack.c.h.b16 %v2651
        %v2973 = vunpack.c.l.b16 %v2652
        %v2974 = vunpack.c.h.b16 %v2652
        %v2975 = vunpack.c.l.b16 %v2653
        %v2976 = vunpack.c.h.b16 %v2653
        %v2977 = vunpack.c.l.b16 %v2654
        %v2978 = vunpack.c.h.b16 %v2654
        %v2979 = vunpack.c.l.b16 %v2655
        %v2980 = vunpack.c.h.b16 %v2655
        %v2981 = vunpack.c.l.b16 %v2656
        %v2982 = vunpack.c.h.b16 %v2656
        %v2983 = vunpack.c.l.b16 %v2657
        %v2984 = vunpack.c.h.b16 %v2657
        %v2985 = vunpack.c.l.b16 %v2658
        %v2986 = vunpack.c.h.b16 %v2658
        %v2987 = vunpack.c.l.b16 %v2659
        %v2988 = vunpack.c.h.b16 %v2659
        %v2989 = vunpack.c.l.b16 %v2660
        %v2990 = vunpack.c.h.b16 %v2660
        %v2991 = vunpack.c.l.b16 %v2661
        %v2992 = vunpack.c.h.b16 %v2661
        %v2993 = vunpack.c.l.b16 %v2662
        %v2994 = vunpack.c.h.b16 %v2662
        %v2995 = vunpack.c.l.b16 %v2663
        %v2996 = vunpack.c.h.b16 %v2663
        %v2997 = vunpack.c.l.b16 %v2664
        %v2998 = vunpack.c.h.b16 %v2664
        %v2999 = vunpack.c.l.b16 %v2665
        %v3000 = vunpack.c.h.b16 %v2665
        %v3001 = vunpack.c.l.b16 %v2666
        %v3002 = vunpack.c.h.b16 %v2666
        %v3003 = vunpack.c.l.b16 %v2667
        %v3004 = vunpack.c.h.b16 %v2667
        %v3005 = vunpack.c.l.b16 %v2668
        %v3006 = vunpack.c.h.b16 %v2668
        %v3007 = vunpack.c.l.b16 %v2669
        %v3008 = vunpack.c.h.b16 %v2669
        %v3009 = vunpack.c.l.b16 %v2670
        %v3010 = vunpack.c.h.b16 %v2670
        %v3011 = vunpack.c.l.b16 %v2671
        %v3012 = vunpack.c.h.b16 %v2671
        %v3013 = vunpack.c.l.b16 %v2672
        %v3014 = vunpack.c.h.b16 %v2672
        %v3015 = vunpack.c.l.b16 %v2673
        %v3016 = vunpack.c.h.b16 %v2673
        %v3017 = vunpack.c.l.b16 %v2674
        %v3018 = vunpack.c.h.b16 %v2674
        %v3019 = vunpack.c.l.b16 %v2675
        %v3020 = vunpack.c.h.b16 %v2675
        %v3021 = vunpack.c.l.b16 %v2676
        %v3022 = vunpack.c.h.b16 %v2676
        %v3023 = vunpack.c.l.b16 %v2677
        %v3024 = vunpack.c.h.b16 %v2677
        %v3025 = vunpack.c.l.b16 %v2678
        %v3026 = vunpack.c.h.b16 %v2678
        %v3027 = vunpack.c.l.b16 %v2679
        %v3028 = vunpack.c.h.b16 %v2679
        %v3029 = vunpack.c.l.b16 %v2680
        %v3030 = vunpack.c.h.b16 %v2680
        %v3031 = vunpack.c.l.b16 %v2681
        %v3032 = vunpack.c.h.b16 %v2681
        %v3033 = vunpack.c.l.b16 %v2682
        %v3034 = vunpack.c.h.b16 %v2682
        %v3035 = vunpack.c.l.b16 %v2683
        %v3036 = vunpack.c.h.b16 %v2683
        %v3037 = vunpack.c.l.b16 %v2684
        %v3038 = vunpack.c.h.b16 %v2684
        %v3039 = vunpack.c.l.b16 %v2685
        %v3040 = vunpack.c.h.b16 %v2685
        %v3041 = vunpack.c.l.b16 %v2686
        %v3042 = vunpack.c.h.b16 %v2686
        %v3043 = vunpack.c.l.b16 %v2687
        %v3044 = vunpack.c.h.b16 %v2687
        %v3045 = vunpack.c.l.b16 %v2688
        %v3046 = vunpack.c.h.b16 %v2688
        %v3047 = vunpack.c.l.b16 %v2689
        %v3048 = vunpack.c.h.b16 %v2689
        %v3049 = vunpack.c.l.b16 %v2690
        %v3050 = vunpack.c.h.b16 %v2690
        %v3051 = vunpack.c.l.b16 %v2691
        %v3052 = vunpack.c.h.b16 %v2691
        %v3053 = vunpack.c.l.b16 %v2692
        %v3054 = vunpack.c.h.b16 %v2692
        %v3055 = vunpack.c.l.b16 %v2693
        %v3056 = vunpack.c.h.b16 %v2693
        %v3057 = vunpack.c.l.b16 %v2694
        %v3058 = vunpack.c.h.b16 %v2694
        %v3059 = vunpack.c.l.b16 %v2695
        %v3060 = vunpack.c.h.b16 %v2695
        %v3061 = vunpack.c.l.b16 %v2696
        %v3062 = vunpack.c.h.b16 %v2696
        %v3063 = vunpack.c.l.b16 %v2697
        %v3064 = vunpack.c.h.b16 %v2697
        %v3065 = vunpack.c.l.b16 %v2698
        %v3066 = vunpack.c.h.b16 %v2698
        %v3067 = vunpack.c.l.b16 %v2699
        %v3068 = vunpack.c.h.b16 %v2699
        %v3069 = vunpack.c.l.b16 %v2700
        %v3070 = vunpack.c.h.b16 %v2700
        %v3071 = vunpack.c.l.b16 %v2701
        %v3072 = vunpack.c.h.b16 %v2701
        %v3073 = vunpack.c.l.b16 %v2702
        %v3074 = vunpack.c.h.b16 %v2702
        %v3075 = vunpack.c.l.b16 %v2703
        %v3076 = vunpack.c.h.b16 %v2703
        %v3077 = vunpack.c.l.b16 %v2704
        %v3078 = vunpack.c.h.b16 %v2704
        %v3079 = vunpack.c.l.b16 %v2705
        %v3080 = vunpack.c.h.b16 %v2705
        %v3081 = vunpack.c.l.b16 %v2706
        %v3082 = vunpack.c.h.b16 %v2706
        %v3083 = vunpack.c.l.b16 %v2707
        %v3084 = vunpack.c.h.b16 %v2707
        %v3085 = vunpack.c.l.b16 %v2708
        %v3086 = vunpack.c.h.b16 %v2708
        %v3087 = vunpack.c.l.b16 %v2709
        %v3088 = vunpack.c.h.b16 %v2709
        %v3089 = vunpack.c.l.b16 %v2710
        %v3090 = vunpack.c.h.b16 %v2710
        %v3091 = vunpack.c.l.b16 %v2711
        %v3092 = vunpack.c.h.b16 %v2711
        %v3093 = vunpack.c.l.b16 %v2712
        %v3094 = vunpack.c.h.b16 %v2712
        %v3095 = vunpack.c.l.b16 %v2713
        %v3096 = vunpack.c.h.b16 %v2713
        %v3097 = vunpack.c.l.b16 %v2714
        %v3098 = vunpack.c.h.b16 %v2714
        %v3099 = vunpack.c.l.b16 %v2715
        %v3100 = vunpack.c.h.b16 %v2715
        %v3101 = vunpack.c.l.b16 %v2716
        %v3102 = vunpack.c.h.b16 %v2716
        %v3103 = vunpack.c.l.b16 %v2717
        %v3104 = vunpack.c.h.b16 %v2717
        %v3105 = vunpack.c.l.b16 %v2718
        %v3106 = vunpack.c.h.b16 %v2718
        %v3107 = vunpack.c.l.b16 %v2719
        %v3108 = vunpack.c.h.b16 %v2719
        %v3109 = vunpack.c.l.b16 %v2720
        %v3110 = vunpack.c.h.b16 %v2720
        %v3111 = vunpack.c.l.b16 %v2721
        %v3112 = vunpack.c.h.b16 %v2721
        %v3113 = vunpack.c.l.b16 %v2722
        %v3114 = vunpack.c.h.b16 %v2722
        %v3115 = vunpack.c.l.b16 %v2723
        %v3116 = vunpack.c.h.b16 %v2723
        %v3117 = vunpack.c.l.b16 %v2724
        %v3118 = vunpack.c.h.b16 %v2724
        %v3119 = vpack.c.b16 %v2867, %v2863
        %v3120 = vpack.c.b16 %v2868, %v2864
        %v3121 = vpack.c.b16 %v2869, %v2865
        %v3122 = vpack.c.b16 %v2870, %v2866
        %v3123 = vpack.c.b16 %v2875, %v2871
        %v3124 = vpack.c.b16 %v2876, %v2872
        %v3125 = vpack.c.b16 %v2877, %v2873
        %v3126 = vpack.c.b16 %v2878, %v2874
        %v3127 = vpack.c.b16 %v2883, %v2879
        %v3128 = vpack.c.b16 %v2884, %v2880
        %v3129 = vpack.c.b16 %v2885, %v2881
        %v3130 = vpack.c.b16 %v2886, %v2882
        %v3131 = vpack.c.b16 %v2891, %v2887
        %v3132 = vpack.c.b16 %v2892, %v2888
        %v3133 = vpack.c.b16 %v2893, %v2889
        %v3134 = vpack.c.b16 %v2894, %v2890
        %v3135 = vpack.c.b16 %v2899, %v2895
        %v3136 = vpack.c.b16 %v2900, %v2896
        %v3137 = vpack.c.b16 %v2901, %v2897
        %v3138 = vpack.c.b16 %v2902, %v2898
        %v3139 = vpack.c.b16 %v2907, %v2903
        %v3140 = vpack.c.b16 %v2908, %v2904
        %v3141 = vpack.c.b16 %v2909, %v2905
        %v3142 = vpack.c.b16 %v2910, %v2906
        %v3143 = vpack.c.b16 %v2915, %v2911
        %v3144 = vpack.c.b16 %v2916, %v2912
        %v3145 = vpack.c.b16 %v2917, %v2913
        %v3146 = vpack.c.b16 %v2918, %v2914
        %v3147 = vpack.c.b16 %v2923, %v2919
        %v3148 = vpack.c.b16 %v2924, %v2920
        %v3149 = vpack.c.b16 %v2925, %v2921
        %v3150 = vpack.c.b16 %v2926, %v2922
        %v3151 = vpack.c.b16 %v2931, %v2927
        %v3152 = vpack.c.b16 %v2932, %v2928
        %v3153 = vpack.c.b16 %v2933, %v2929
        %v3154 = vpack.c.b16 %v2934, %v2930
        %v3155 = vpack.c.b16 %v2939, %v2935
        %v3156 = vpack.c.b16 %v2940, %v2936
        %v3157 = vpack.c.b16 %v2941, %v2937
        %v3158 = vpack.c.b16 %v2942, %v2938
        %v3159 = vpack.c.b16 %v2947, %v2943
        %v3160 = vpack.c.b16 %v2948, %v2944
        %v3161 = vpack.c.b16 %v2949, %v2945
        %v3162 = vpack.c.b16 %v2950, %v2946
        %v3163 = vpack.c.b16 %v2955, %v2951
        %v3164 = vpack.c.b16 %v2956, %v2952
        %v3165 = vpack.c.b16 %v2957, %v2953
        %v3166 = vpack.c.b16 %v2958, %v2954
        %v3167 = vpack.c.b16 %v2963, %v2959
        %v3168 = vpack.c.b16 %v2964, %v2960
        %v3169 = vpack.c.b16 %v2965, %v2961
        %v3170 = vpack.c.b16 %v2966, %v2962
        %v3171 = vpack.c.b16 %v2971, %v2967
        %v3172 = vpack.c.b16 %v2972, %v2968
        %v3173 = vpack.c.b16 %v2973, %v2969
        %v3174 = vpack.c.b16 %v2974, %v2970
        %v3175 = vpack.c.b16 %v2979, %v2975
        %v3176 = vpack.c.b16 %v2980, %v2976
        %v3177 = vpack.c.b16 %v2981, %v2977
        %v3178 = vpack.c.b16 %v2982, %v2978
        %v3179 = vpack.c.b16 %v2987, %v2983
        %v3180 = vpack.c.b16 %v2988, %v2984
        %v3181 = vpack.c.b16 %v2989, %v2985
        %v3182 = vpack.c.b16 %v2990, %v2986
        %v3183 = vpack.c.b16 %v2995, %v2991
        %v3184 = vpack.c.b16 %v2996, %v2992
        %v3185 = vpack.c.b16 %v2997, %v2993
        %v3186 = vpack.c.b16 %v2998, %v2994
        %v3187 = vpack.c.b16 %v3003, %v2999
        %v3188 = vpack.c.b16 %v3004, %v3000
        %v3189 = vpack.c.b16 %v3005, %v3001
        %v3190 = vpack.c.b16 %v3006, %v3002
        %v3191 = vpack.c.b16 %v3011, %v3007
        %v3192 = vpack.c.b16 %v3012, %v3008
        %v3193 = vpack.c.b16 %v3013, %v3009
        %v3194 = vpack.c.b16 %v3014, %v3010
        %v3195 = vpack.c.b16 %v3019, %v3015
        %v3196 = vpack.c.b16 %v3020, %v3016
        %v3197 = vpack.c.b16 %v3021, %v3017
        %v3198 = vpack.c.b16 %v3022, %v3018
        %v3199 = vpack.c.b16 %v3027, %v3023
        %v3200 = vpack.c.b16 %v3028, %v3024
        %v3201 = vpack.c.b16 %v3029, %v3025
        %v3202 = vpack.c.b16 %v3030, %v3026
        %v3203 = vpack.c.b16 %v3035, %v3031
        %v3204 = vpack.c.b16 %v3036, %v3032
        %v3205 = vpack.c.b16 %v3037, %v3033
        %v3206 = vpack.c.b16 %v3038, %v3034
        %v3207 = vpack.c.b16 %v3043, %v3039
        %v3208 = vpack.c.b16 %v3044, %v3040
        %v3209 = vpack.c.b16 %v3045, %v3041
        %v3210 = vpack.c.b16 %v3046, %v3042
        %v3211 = vpack.c.b16 %v3051, %v3047
        %v3212 = vpack.c.b16 %v3052, %v3048
        %v3213 = vpack.c.b16 %v3053, %v3049
        %v3214 = vpack.c.b16 %v3054, %v3050
        %v3215 = vpack.c.b16 %v3059, %v3055
        %v3216 = vpack.c.b16 %v3060, %v3056
        %v3217 = vpack.c.b16 %v3061, %v3057
        %v3218 = vpack.c.b16 %v3062, %v3058
        %v3219 = vpack.c.b16 %v3067, %v3063
        %v3220 = vpack.c.b16 %v3068, %v3064
        %v3221 = vpack.c.b16 %v3069, %v3065
        %v3222 = vpack.c.b16 %v3070, %v3066
        %v3223 = vpack.c.b16 %v3075, %v3071
        %v3224 = vpack.c.b16 %v3076, %v3072
        %v3225 = vpack.c.b16 %v3077, %v3073
        %v3226 = vpack.c.b16 %v3078, %v3074
        %v3227 = vpack.c.b16 %v3083, %v3079
        %v3228 = vpack.c.b16 %v3084, %v3080
        %v3229 = vpack.c.b16 %v3085, %v3081
        %v3230 = vpack.c.b16 %v3086, %v3082
        %v3231 = vpack.c.b16 %v3091, %v3087
        %v3232 = vpack.c.b16 %v3092, %v3088
        %v3233 = vpack.c.b16 %v3093, %v3089
        %v3234 = vpack.c.b16 %v3094, %v3090
        %v3235 = vpack.c.b16 %v3099, %v3095
        %v3236 = vpack.c.b16 %v3100, %v3096
        %v3237 = vpack.c.b16 %v3101, %v3097
        %v3238 = vpack.c.b16 %v3102, %v3098
        %v3239 = vpack.c.b16 %v3107, %v3103
        %v3240 = vpack.c.b16 %v3108, %v3104
        %v3241 = vpack.c.b16 %v3109, %v3105
        %v3242 = vpack.c.b16 %v3110, %v3106
        %v3243 = vpack.c.b16 %v3115, %v3111
        %v3244 = vpack.c.b16 %v3116, %v3112
        %v3245 = vpack.c.b16 %v3117, %v3113
        %v3246 = vpack.c.b16 %v3118, %v3114
        %3375 = vmatpush.bf16.msra.mxu0 %v3147
        %3376 = vmatpush.bf16.msra.mxu0 %v3143
        %3377 = vmatpush.bf16.msra.mxu0 %v3139
        %3378 = vmatpush.bf16.msra.mxu0 %v3135
        %3379 = vmatpush.bf16.msra.mxu0 %v3131
        %3380 = vmatpush.bf16.msra.mxu0 %v3127
        %3381 = vmatpush.bf16.msra.mxu0 %v3123
        %3382 = vmatpush.bf16.msra.mxu0 %v3119
        %3383 = vmatmul.bf16.gmra.mxu0 %v2593
        %v3384 = vpop.f32.mrf.mxu0
        %v3385 = vadd.f32 %v2727, %v3384
        %v3386 = vpop.f32.mrf.mxu0
        %3387 = vdwg.mxu0
        %3388 = vmatpush.bf16.msra.mxu0 %v3179
        %3389 = vmatpush.bf16.msra.mxu0 %v3175
        %3390 = vmatpush.bf16.msra.mxu0 %v3171
        %3391 = vmatpush.bf16.msra.mxu0 %v3167
        %3392 = vmatpush.bf16.msra.mxu0 %v3163
        %3393 = vmatpush.bf16.msra.mxu0 %v3159
        %3394 = vmatpush.bf16.msra.mxu0 %v3155
        %3395 = vmatpush.bf16.msra.mxu0 %v3151
        %3396 = vmatmul.bf16.gmra.mxu0 %v2594
        %v3397 = vpop.f32.mrf.mxu0
        %v3398 = vadd.f32 %v3385, %v3397
        %v3399 = vpop.f32.mrf.mxu0
        %3400 = vdwg.mxu0
        %3401 = vmatpush.bf16.msra.mxu0 %v3211
        %3402 = vmatpush.bf16.msra.mxu0 %v3207
        %3403 = vmatpush.bf16.msra.mxu0 %v3203
        %3404 = vmatpush.bf16.msra.mxu0 %v3199
        %3405 = vmatpush.bf16.msra.mxu0 %v3195
        %3406 = vmatpush.bf16.msra.mxu0 %v3191
        %3407 = vmatpush.bf16.msra.mxu0 %v3187
        %3408 = vmatpush.bf16.msra.mxu0 %v3183
        %3409 = vmatmul.bf16.gmra.mxu0 %v2595
        %v3410 = vpop.f32.mrf.mxu0
        %v3411 = vadd.f32 %v3398, %v3410
        %v3412 = vpop.f32.mrf.mxu0
        %3413 = vdwg.mxu0
        %3414 = vmatpush.bf16.msra.mxu0 %v3243
        %3415 = vmatpush.bf16.msra.mxu0 %v3239
        %3416 = vmatpush.bf16.msra.mxu0 %v3235
        %3417 = vmatpush.bf16.msra.mxu0 %v3231
        %3418 = vmatpush.bf16.msra.mxu0 %v3227
        %3419 = vmatpush.bf16.msra.mxu0 %v3223
        %3420 = vmatpush.bf16.msra.mxu0 %v3219
        %3421 = vmatpush.bf16.msra.mxu0 %v3215
        %3422 = vmatmul.bf16.gmra.mxu0 %v2596
        %v3423 = vpop.f32.mrf.mxu0
        %v3424 = vadd.f32 %v3411, %v3423
        %v3425 = vpop.f32.mrf.mxu0
        %3426 = vdwg.mxu0
        %3427 = vmatpush.bf16.msra.mxu0 %v3148
        %3428 = vmatpush.bf16.msra.mxu0 %v3144
        %3429 = vmatpush.bf16.msra.mxu0 %v3140
        %3430 = vmatpush.bf16.msra.mxu0 %v3136
        %3431 = vmatpush.bf16.msra.mxu0 %v3132
        %3432 = vmatpush.bf16.msra.mxu0 %v3128
        %3433 = vmatpush.bf16.msra.mxu0 %v3124
        %3434 = vmatpush.bf16.msra.mxu0 %v3120
        %3435 = vmatmul.bf16.gmra.mxu0 %v2593
        %v3436 = vpop.f32.mrf.mxu0
        %v3437 = vadd.f32 %v2728, %v3436
        %v3438 = vpop.f32.mrf.mxu0
        %3439 = vdwg.mxu0
        %3440 = vmatpush.bf16.msra.mxu0 %v3180
        %3441 = vmatpush.bf16.msra.mxu0 %v3176
        %3442 = vmatpush.bf16.msra.mxu0 %v3172
        %3443 = vmatpush.bf16.msra.mxu0 %v3168
        %3444 = vmatpush.bf16.msra.mxu0 %v3164
        %3445 = vmatpush.bf16.msra.mxu0 %v3160
        %3446 = vmatpush.bf16.msra.mxu0 %v3156
        %3447 = vmatpush.bf16.msra.mxu0 %v3152
        %3448 = vmatmul.bf16.gmra.mxu0 %v2594
        %v3449 = vpop.f32.mrf.mxu0
        %v3450 = vadd.f32 %v3437, %v3449
        %v3451 = vpop.f32.mrf.mxu0
        %3452 = vdwg.mxu0
        %3453 = vmatpush.bf16.msra.mxu0 %v3212
        %3454 = vmatpush.bf16.msra.mxu0 %v3208
        %3455 = vmatpush.bf16.msra.mxu0 %v3204
        %3456 = vmatpush.bf16.msra.mxu0 %v3200
        %3457 = vmatpush.bf16.msra.mxu0 %v3196
        %3458 = vmatpush.bf16.msra.mxu0 %v3192
        %3459 = vmatpush.bf16.msra.mxu0 %v3188
        %3460 = vmatpush.bf16.msra.mxu0 %v3184
        %3461 = vmatmul.bf16.gmra.mxu0 %v2595
        %v3462 = vpop.f32.mrf.mxu0
        %v3463 = vadd.f32 %v3450, %v3462
        %v3464 = vpop.f32.mrf.mxu0
        %3465 = vdwg.mxu0
        %3466 = vmatpush.bf16.msra.mxu0 %v3244
        %3467 = vmatpush.bf16.msra.mxu0 %v3240
        %3468 = vmatpush.bf16.msra.mxu0 %v3236
        %3469 = vmatpush.bf16.msra.mxu0 %v3232
        %3470 = vmatpush.bf16.msra.mxu0 %v3228
        %3471 = vmatpush.bf16.msra.mxu0 %v3224
        %3472 = vmatpush.bf16.msra.mxu0 %v3220
        %3473 = vmatpush.bf16.msra.mxu0 %v3216
        %3474 = vmatmul.bf16.gmra.mxu0 %v2596
        %v3475 = vpop.f32.mrf.mxu0
        %v3476 = vadd.f32 %v3463, %v3475
        %v3477 = vpop.f32.mrf.mxu0
        %3478 = vdwg.mxu0
        %3479 = vmatpush.bf16.msra.mxu0 %v3149
        %3480 = vmatpush.bf16.msra.mxu0 %v3145
        %3481 = vmatpush.bf16.msra.mxu0 %v3141
        %3482 = vmatpush.bf16.msra.mxu0 %v3137
        %3483 = vmatpush.bf16.msra.mxu0 %v3133
        %3484 = vmatpush.bf16.msra.mxu0 %v3129
        %3485 = vmatpush.bf16.msra.mxu0 %v3125
        %3486 = vmatpush.bf16.msra.mxu0 %v3121
        %3487 = vmatmul.bf16.gmra.mxu0 %v2593
        %v3488 = vpop.f32.mrf.mxu0
        %v3489 = vadd.f32 %v2729, %v3488
        %v3490 = vpop.f32.mrf.mxu0
        %3491 = vdwg.mxu0
        %3492 = vmatpush.bf16.msra.mxu0 %v3181
        %3493 = vmatpush.bf16.msra.mxu0 %v3177
        %3494 = vmatpush.bf16.msra.mxu0 %v3173
        %3495 = vmatpush.bf16.msra.mxu0 %v3169
        %3496 = vmatpush.bf16.msra.mxu0 %v3165
        %3497 = vmatpush.bf16.msra.mxu0 %v3161
        %3498 = vmatpush.bf16.msra.mxu0 %v3157
        %3499 = vmatpush.bf16.msra.mxu0 %v3153
        %3500 = vmatmul.bf16.gmra.mxu0 %v2594
        %v3501 = vpop.f32.mrf.mxu0
        %v3502 = vadd.f32 %v3489, %v3501
        %v3503 = vpop.f32.mrf.mxu0
        %3504 = vdwg.mxu0
        %3505 = vmatpush.bf16.msra.mxu0 %v3213
        %3506 = vmatpush.bf16.msra.mxu0 %v3209
        %3507 = vmatpush.bf16.msra.mxu0 %v3205
        %3508 = vmatpush.bf16.msra.mxu0 %v3201
        %3509 = vmatpush.bf16.msra.mxu0 %v3197
        %3510 = vmatpush.bf16.msra.mxu0 %v3193
        %3511 = vmatpush.bf16.msra.mxu0 %v3189
        %3512 = vmatpush.bf16.msra.mxu0 %v3185
        %3513 = vmatmul.bf16.gmra.mxu0 %v2595
        %v3514 = vpop.f32.mrf.mxu0
        %v3515 = vadd.f32 %v3502, %v3514
        %v3516 = vpop.f32.mrf.mxu0
        %3517 = vdwg.mxu0
        %3518 = vmatpush.bf16.msra.mxu0 %v3245
        %3519 = vmatpush.bf16.msra.mxu0 %v3241
        %3520 = vmatpush.bf16.msra.mxu0 %v3237
        %3521 = vmatpush.bf16.msra.mxu0 %v3233
        %3522 = vmatpush.bf16.msra.mxu0 %v3229
        %3523 = vmatpush.bf16.msra.mxu0 %v3225
        %3524 = vmatpush.bf16.msra.mxu0 %v3221
        %3525 = vmatpush.bf16.msra.mxu0 %v3217
        %3526 = vmatmul.bf16.gmra.mxu0 %v2596
        %v3527 = vpop.f32.mrf.mxu0
        %v3528 = vadd.f32 %v3515, %v3527
        %v3529 = vpop.f32.mrf.mxu0
        %3530 = vdwg.mxu0
        %3531 = vmatpush.bf16.msra.mxu0 %v3150
        %3532 = vmatpush.bf16.msra.mxu0 %v3146
        %3533 = vmatpush.bf16.msra.mxu0 %v3142
        %3534 = vmatpush.bf16.msra.mxu0 %v3138
        %3535 = vmatpush.bf16.msra.mxu0 %v3134
        %3536 = vmatpush.bf16.msra.mxu0 %v3130
        %3537 = vmatpush.bf16.msra.mxu0 %v3126
        %3538 = vmatpush.bf16.msra.mxu0 %v3122
        %3539 = vmatmul.bf16.gmra.mxu0 %v2593
        %v3540 = vpop.f32.mrf.mxu0
        %v3541 = vadd.f32 %v2730, %v3540
        %v3542 = vpop.f32.mrf.mxu0
        %3543 = vdwg.mxu0
        %3544 = vmatpush.bf16.msra.mxu0 %v3182
        %3545 = vmatpush.bf16.msra.mxu0 %v3178
        %3546 = vmatpush.bf16.msra.mxu0 %v3174
        %3547 = vmatpush.bf16.msra.mxu0 %v3170
        %3548 = vmatpush.bf16.msra.mxu0 %v3166
        %3549 = vmatpush.bf16.msra.mxu0 %v3162
        %3550 = vmatpush.bf16.msra.mxu0 %v3158
        %3551 = vmatpush.bf16.msra.mxu0 %v3154
        %3552 = vmatmul.bf16.gmra.mxu0 %v2594
        %v3553 = vpop.f32.mrf.mxu0
        %v3554 = vadd.f32 %v3541, %v3553
        %v3555 = vpop.f32.mrf.mxu0
        %3556 = vdwg.mxu0
        %3557 = vmatpush.bf16.msra.mxu0 %v3214
        %3558 = vmatpush.bf16.msra.mxu0 %v3210
        %3559 = vmatpush.bf16.msra.mxu0 %v3206
        %3560 = vmatpush.bf16.msra.mxu0 %v3202
        %3561 = vmatpush.bf16.msra.mxu0 %v3198
        %3562 = vmatpush.bf16.msra.mxu0 %v3194
        %3563 = vmatpush.bf16.msra.mxu0 %v3190
        %3564 = vmatpush.bf16.msra.mxu0 %v3186
        %3565 = vmatmul.bf16.gmra.mxu0 %v2595
        %v3566 = vpop.f32.mrf.mxu0
        %v3567 = vadd.f32 %v3554, %v3566
        %v3568 = vpop.f32.mrf.mxu0
        %3569 = vdwg.mxu0
        %3570 = vmatpush.bf16.msra.mxu0 %v3246
        %3571 = vmatpush.bf16.msra.mxu0 %v3242
        %3572 = vmatpush.bf16.msra.mxu0 %v3238
        %3573 = vmatpush.bf16.msra.mxu0 %v3234
        %3574 = vmatpush.bf16.msra.mxu0 %v3230
        %3575 = vmatpush.bf16.msra.mxu0 %v3226
        %3576 = vmatpush.bf16.msra.mxu0 %v3222
        %3577 = vmatpush.bf16.msra.mxu0 %v3218
        %3578 = vmatmul.bf16.gmra.mxu0 %v2596
        %v3579 = vpop.f32.mrf.mxu0
        %v3580 = vadd.f32 %v3567, %v3579
        %v3581 = vpop.f32.mrf.mxu0
        %3582 = vdwg.mxu0
        %v3583 = vmax.f32 %v3424, 0.0
        %v3584 = vmax.f32 %v3476, 0.0
        %v3585 = vmax.f32 %v3528, 0.0
        %v3586 = vmax.f32 %v3580, 0.0
        %v3587 = vpack.c.bf16 %v3583, %v3583
        %v3588 = vpack.c.bf16 %v3584, %v3584
        %v3589 = vpack.c.bf16 %v3585, %v3585
        %v3590 = vpack.c.bf16 %v3586, %v3586
        %v3591 = vld [vmem:[%s9] sm:$0xff]
        %v3592 = vld [vmem:[%s9 + $0x8] sm:$0xff]
        %v3593 = vld [vmem:[%s9 + $0x10] sm:$0xff]
        %v3594 = vld [vmem:[%s9 + $0x18] sm:$0xff]
        %v3595 = vld [vmem:[%s9 + $0x20] sm:$0xff]
        %v3596 = vld [vmem:[%s9 + $0x28] sm:$0xff]
        %v3597 = vld [vmem:[%s9 + $0x30] sm:$0xff]
        %v3598 = vld [vmem:[%s9 + $0x38] sm:$0xff]
        %v3599 = vld [vmem:[%s9 + $0x40] sm:$0xff]
        %v3600 = vld [vmem:[%s9 + $0x48] sm:$0xff]
        %v3601 = vld [vmem:[%s9 + $0x50] sm:$0xff]
        %v3602 = vld [vmem:[%s9 + $0x58] sm:$0xff]
        %v3603 = vld [vmem:[%s9 + $0x60] sm:$0xff]
        %v3604 = vld [vmem:[%s9 + $0x68] sm:$0xff]
        %v3605 = vld [vmem:[%s9 + $0x70] sm:$0xff]
        %v3606 = vld [vmem:[%s9 + $0x78] sm:$0xff]
        %v3607 = vld [vmem:[%s9 + $0x80] sm:$0xff]
        %v3608 = vld [vmem:[%s9 + $0x88] sm:$0xff]
        %v3609 = vld [vmem:[%s9 + $0x90] sm:$0xff]
        %v3610 = vld [vmem:[%s9 + $0x98] sm:$0xff]
        %v3611 = vld [vmem:[%s9 + $0xa0] sm:$0xff]
        %v3612 = vld [vmem:[%s9 + $0xa8] sm:$0xff]
        %v3613 = vld [vmem:[%s9 + $0xb0] sm:$0xff]
        %v3614 = vld [vmem:[%s9 + $0xb8] sm:$0xff]
        %v3615 = vld [vmem:[%s9 + $0xc0] sm:$0xff]
        %v3616 = vld [vmem:[%s9 + $0xc8] sm:$0xff]
        %v3617 = vld [vmem:[%s9 + $0xd0] sm:$0xff]
        %v3618 = vld [vmem:[%s9 + $0xd8] sm:$0xff]
        %v3619 = vld [vmem:[%s9 + $0xe0] sm:$0xff]
        %v3620 = vld [vmem:[%s9 + $0xe8] sm:$0xff]
        %v3621 = vld [vmem:[%s9 + $0xf0] sm:$0xff]
        %v3622 = vld [vmem:[%s9 + $0xf8] sm:$0xff]
        %v3623 = vld [vmem:[%s9 + $0x100] sm:$0xff]
        %v3624 = vld [vmem:[%s9 + $0x108] sm:$0xff]
        %v3625 = vld [vmem:[%s9 + $0x110] sm:$0xff]
        %v3626 = vld [vmem:[%s9 + $0x118] sm:$0xff]
        %v3627 = vld [vmem:[%s9 + $0x120] sm:$0xff]
        %v3628 = vld [vmem:[%s9 + $0x128] sm:$0xff]
        %v3629 = vld [vmem:[%s9 + $0x130] sm:$0xff]
        %v3630 = vld [vmem:[%s9 + $0x138] sm:$0xff]
        %v3631 = vld [vmem:[%s9 + $0x140] sm:$0xff]
        %v3632 = vld [vmem:[%s9 + $0x148] sm:$0xff]
        %v3633 = vld [vmem:[%s9 + $0x150] sm:$0xff]
        %v3634 = vld [vmem:[%s9 + $0x158] sm:$0xff]
        %v3635 = vld [vmem:[%s9 + $0x160] sm:$0xff]
        %v3636 = vld [vmem:[%s9 + $0x168] sm:$0xff]
        %v3637 = vld [vmem:[%s9 + $0x170] sm:$0xff]
        %v3638 = vld [vmem:[%s9 + $0x178] sm:$0xff]
        %v3639 = vld [vmem:[%s9 + $0x180] sm:$0xff]
        %v3640 = vld [vmem:[%s9 + $0x188] sm:$0xff]
        %v3641 = vld [vmem:[%s9 + $0x190] sm:$0xff]
        %v3642 = vld [vmem:[%s9 + $0x198] sm:$0xff]
        %v3643 = vld [vmem:[%s9 + $0x1a0] sm:$0xff]
        %v3644 = vld [vmem:[%s9 + $0x1a8] sm:$0xff]
        %v3645 = vld [vmem:[%s9 + $0x1b0] sm:$0xff]
        %v3646 = vld [vmem:[%s9 + $0x1b8] sm:$0xff]
        %v3647 = vld [vmem:[%s9 + $0x1c0] sm:$0xff]
        %v3648 = vld [vmem:[%s9 + $0x1c8] sm:$0xff]
        %v3649 = vld [vmem:[%s9 + $0x1d0] sm:$0xff]
        %v3650 = vld [vmem:[%s9 + $0x1d8] sm:$0xff]
        %v3651 = vld [vmem:[%s9 + $0x1e0] sm:$0xff]
        %v3652 = vld [vmem:[%s9 + $0x1e8] sm:$0xff]
        %v3653 = vld [vmem:[%s9 + $0x1f0] sm:$0xff]
        %v3654 = vld [vmem:[%s9 + $0x1f8] sm:$0xff]
        %v3655 = vld [vmem:[%s9 + $0x200] sm:$0xff]
        %v3656 = vld [vmem:[%s9 + $0x208] sm:$0xff]
        %v3657 = vld [vmem:[%s9 + $0x210] sm:$0xff]
        %v3658 = vld [vmem:[%s9 + $0x218] sm:$0xff]
        %v3659 = vld [vmem:[%s9 + $0x220] sm:$0xff]
        %v3660 = vld [vmem:[%s9 + $0x228] sm:$0xff]
        %v3661 = vld [vmem:[%s9 + $0x230] sm:$0xff]
        %v3662 = vld [vmem:[%s9 + $0x238] sm:$0xff]
        %v3663 = vld [vmem:[%s9 + $0x240] sm:$0xff]
        %v3664 = vld [vmem:[%s9 + $0x248] sm:$0xff]
        %v3665 = vld [vmem:[%s9 + $0x250] sm:$0xff]
        %v3666 = vld [vmem:[%s9 + $0x258] sm:$0xff]
        %v3667 = vld [vmem:[%s9 + $0x260] sm:$0xff]
        %v3668 = vld [vmem:[%s9 + $0x268] sm:$0xff]
        %v3669 = vld [vmem:[%s9 + $0x270] sm:$0xff]
        %v3670 = vld [vmem:[%s9 + $0x278] sm:$0xff]
        %v3671 = vld [vmem:[%s9 + $0x280] sm:$0xff]
        %v3672 = vld [vmem:[%s9 + $0x288] sm:$0xff]
        %v3673 = vld [vmem:[%s9 + $0x290] sm:$0xff]
        %v3674 = vld [vmem:[%s9 + $0x298] sm:$0xff]
        %v3675 = vld [vmem:[%s9 + $0x2a0] sm:$0xff]
        %v3676 = vld [vmem:[%s9 + $0x2a8] sm:$0xff]
        %v3677 = vld [vmem:[%s9 + $0x2b0] sm:$0xff]
        %v3678 = vld [vmem:[%s9 + $0x2b8] sm:$0xff]
        %v3679 = vld [vmem:[%s9 + $0x2c0] sm:$0xff]
        %v3680 = vld [vmem:[%s9 + $0x2c8] sm:$0xff]
        %v3681 = vld [vmem:[%s9 + $0x2d0] sm:$0xff]
        %v3682 = vld [vmem:[%s9 + $0x2d8] sm:$0xff]
        %v3683 = vld [vmem:[%s9 + $0x2e0] sm:$0xff]
        %v3684 = vld [vmem:[%s9 + $0x2e8] sm:$0xff]
        %v3685 = vld [vmem:[%s9 + $0x2f0] sm:$0xff]
        %v3686 = vld [vmem:[%s9 + $0x2f8] sm:$0xff]
        %v3687 = vld [vmem:[%s9 + $0x300] sm:$0xff]
        %v3688 = vld [vmem:[%s9 + $0x308] sm:$0xff]
        %v3689 = vld [vmem:[%s9 + $0x310] sm:$0xff]
        %v3690 = vld [vmem:[%s9 + $0x318] sm:$0xff]
        %v3691 = vld [vmem:[%s9 + $0x320] sm:$0xff]
        %v3692 = vld [vmem:[%s9 + $0x328] sm:$0xff]
        %v3693 = vld [vmem:[%s9 + $0x330] sm:$0xff]
        %v3694 = vld [vmem:[%s9 + $0x338] sm:$0xff]
        %v3695 = vld [vmem:[%s9 + $0x340] sm:$0xff]
        %v3696 = vld [vmem:[%s9 + $0x348] sm:$0xff]
        %v3697 = vld [vmem:[%s9 + $0x350] sm:$0xff]
        %v3698 = vld [vmem:[%s9 + $0x358] sm:$0xff]
        %v3699 = vld [vmem:[%s9 + $0x360] sm:$0xff]
        %v3700 = vld [vmem:[%s9 + $0x368] sm:$0xff]
        %v3701 = vld [vmem:[%s9 + $0x370] sm:$0xff]
        %v3702 = vld [vmem:[%s9 + $0x378] sm:$0xff]
        %v3703 = vld [vmem:[%s9 + $0x380] sm:$0xff]
        %v3704 = vld [vmem:[%s9 + $0x388] sm:$0xff]
        %v3705 = vld [vmem:[%s9 + $0x390] sm:$0xff]
        %v3706 = vld [vmem:[%s9 + $0x398] sm:$0xff]
        %v3707 = vld [vmem:[%s9 + $0x3a0] sm:$0xff]
        %v3708 = vld [vmem:[%s9 + $0x3a8] sm:$0xff]
        %v3709 = vld [vmem:[%s9 + $0x3b0] sm:$0xff]
        %v3710 = vld [vmem:[%s9 + $0x3b8] sm:$0xff]
        %v3711 = vld [vmem:[%s9 + $0x3c0] sm:$0xff]
        %v3712 = vld [vmem:[%s9 + $0x3c8] sm:$0xff]
        %v3713 = vld [vmem:[%s9 + $0x3d0] sm:$0xff]
        %v3714 = vld [vmem:[%s9 + $0x3d8] sm:$0xff]
        %v3715 = vld [vmem:[%s9 + $0x3e0] sm:$0xff]
        %v3716 = vld [vmem:[%s9 + $0x3e8] sm:$0xff]
        %v3717 = vld [vmem:[%s9 + $0x3f0] sm:$0xff]
        %v3718 = vld [vmem:[%s9 + $0x3f8] sm:$0xff]
        %v3719 = vld [vmem:[%s10] sm:$0xf]
        %v3721 = vperm.slane %v3719, 0
        %v3722 = vperm.slane %v3719, 1
        %v3723 = vperm.slane %v3719, 2
        %v3724 = vperm.slane %v3719, 3
        %v3857 = vunpack.c.l.b16 %v3591
        %v3858 = vunpack.c.h.b16 %v3591
        %v3859 = vunpack.c.l.b16 %v3592
        %v3860 = vunpack.c.h.b16 %v3592
        %v3861 = vunpack.c.l.b16 %v3593
        %v3862 = vunpack.c.h.b16 %v3593
        %v3863 = vunpack.c.l.b16 %v3594
        %v3864 = vunpack.c.h.b16 %v3594
        %v3865 = vunpack.c.l.b16 %v3595
        %v3866 = vunpack.c.h.b16 %v3595
        %v3867 = vunpack.c.l.b16 %v3596
        %v3868 = vunpack.c.h.b16 %v3596
        %v3869 = vunpack.c.l.b16 %v3597
        %v3870 = vunpack.c.h.b16 %v3597
        %v3871 = vunpack.c.l.b16 %v3598
        %v3872 = vunpack.c.h.b16 %v3598
        %v3873 = vunpack.c.l.b16 %v3599
        %v3874 = vunpack.c.h.b16 %v3599
        %v3875 = vunpack.c.l.b16 %v3600
        %v3876 = vunpack.c.h.b16 %v3600
        %v3877 = vunpack.c.l.b16 %v3601
        %v3878 = vunpack.c.h.b16 %v3601
        %v3879 = vunpack.c.l.b16 %v3602
        %v3880 = vunpack.c.h.b16 %v3602
        %v3881 = vunpack.c.l.b16 %v3603
        %v3882 = vunpack.c.h.b16 %v3603
        %v3883 = vunpack.c.l.b16 %v3604
        %v3884 = vunpack.c.h.b16 %v3604
        %v3885 = vunpack.c.l.b16 %v3605
        %v3886 = vunpack.c.h.b16 %v3605
        %v3887 = vunpack.c.l.b16 %v3606
        %v3888 = vunpack.c.h.b16 %v3606
        %v3889 = vunpack.c.l.b16 %v3607
        %v3890 = vunpack.c.h.b16 %v3607
        %v3891 = vunpack.c.l.b16 %v3608
        %v3892 = vunpack.c.h.b16 %v3608
        %v3893 = vunpack.c.l.b16 %v3609
        %v3894 = vunpack.c.h.b16 %v3609
        %v3895 = vunpack.c.l.b16 %v3610
        %v3896 = vunpack.c.h.b16 %v3610
        %v3897 = vunpack.c.l.b16 %v3611
        %v3898 = vunpack.c.h.b16 %v3611
        %v3899 = vunpack.c.l.b16 %v3612
        %v3900 = vunpack.c.h.b16 %v3612
        %v3901 = vunpack.c.l.b16 %v3613
        %v3902 = vunpack.c.h.b16 %v3613
        %v3903 = vunpack.c.l.b16 %v3614
        %v3904 = vunpack.c.h.b16 %v3614
        %v3905 = vunpack.c.l.b16 %v3615
        %v3906 = vunpack.c.h.b16 %v3615
        %v3907 = vunpack.c.l.b16 %v3616
        %v3908 = vunpack.c.h.b16 %v3616
        %v3909 = vunpack.c.l.b16 %v3617
        %v3910 = vunpack.c.h.b16 %v3617
        %v3911 = vunpack.c.l.b16 %v3618
        %v3912 = vunpack.c.h.b16 %v3618
        %v3913 = vunpack.c.l.b16 %v3619
        %v3914 = vunpack.c.h.b16 %v3619
        %v3915 = vunpack.c.l.b16 %v3620
        %v3916 = vunpack.c.h.b16 %v3620
        %v3917 = vunpack.c.l.b16 %v3621
        %v3918 = vunpack.c.h.b16 %v3621
        %v3919 = vunpack.c.l.b16 %v3622
        %v3920 = vunpack.c.h.b16 %v3622
        %v3921 = vunpack.c.l.b16 %v3623
        %v3922 = vunpack.c.h.b16 %v3623
        %v3923 = vunpack.c.l.b16 %v3624
        %v3924 = vunpack.c.h.b16 %v3624
        %v3925 = vunpack.c.l.b16 %v3625
        %v3926 = vunpack.c.h.b16 %v3625
        %v3927 = vunpack.c.l.b16 %v3626
        %v3928 = vunpack.c.h.b16 %v3626
        %v3929 = vunpack.c.l.b16 %v3627
        %v3930 = vunpack.c.h.b16 %v3627
        %v3931 = vunpack.c.l.b16 %v3628
        %v3932 = vunpack.c.h.b16 %v3628
        %v3933 = vunpack.c.l.b16 %v3629
        %v3934 = vunpack.c.h.b16 %v3629
        %v3935 = vunpack.c.l.b16 %v3630
        %v3936 = vunpack.c.h.b16 %v3630
        %v3937 = vunpack.c.l.b16 %v3631
        %v3938 = vunpack.c.h.b16 %v3631
        %v3939 = vunpack.c.l.b16 %v3632
        %v3940 = vunpack.c.h.b16 %v3632
        %v3941 = vunpack.c.l.b16 %v3633
        %v3942 = vunpack.c.h.b16 %v3633
        %v3943 = vunpack.c.l.b16 %v3634
        %v3944 = vunpack.c.h.b16 %v3634
        %v3945 = vunpack.c.l.b16 %v3635
        %v3946 = vunpack.c.h.b16 %v3635
        %v3947 = vunpack.c.l.b16 %v3636
        %v3948 = vunpack.c.h.b16 %v3636
        %v3949 = vunpack.c.l.b16 %v3637
        %v3950 = vunpack.c.h.b16 %v3637
        %v3951 = vunpack.c.l.b16 %v3638
        %v3952 = vunpack.c.h.b16 %v3638
        %v3953 = vunpack.c.l.b16 %v3639
        %v3954 = vunpack.c.h.b16 %v3639
        %v3955 = vunpack.c.l.b16 %v3640
        %v3956 = vunpack.c.h.b16 %v3640
        %v3957 = vunpack.c.l.b16 %v3641
        %v3958 = vunpack.c.h.b16 %v3641
        %v3959 = vunpack.c.l.b16 %v3642
        %v3960 = vunpack.c.h.b16 %v3642
        %v3961 = vunpack.c.l.b16 %v3643
        %v3962 = vunpack.c.h.b16 %v3643
        %v3963 = vunpack.c.l.b16 %v3644
        %v3964 = vunpack.c.h.b16 %v3644
        %v3965 = vunpack.c.l.b16 %v3645
        %v3966 = vunpack.c.h.b16 %v3645
        %v3967 = vunpack.c.l.b16 %v3646
        %v3968 = vunpack.c.h.b16 %v3646
        %v3969 = vunpack.c.l.b16 %v3647
        %v3970 = vunpack.c.h.b16 %v3647
        %v3971 = vunpack.c.l.b16 %v3648
        %v3972 = vunpack.c.h.b16 %v3648
        %v3973 = vunpack.c.l.b16 %v3649
        %v3974 = vunpack.c.h.b16 %v3649
        %v3975 = vunpack.c.l.b16 %v3650
        %v3976 = vunpack.c.h.b16 %v3650
        %v3977 = vunpack.c.l.b16 %v3651
        %v3978 = vunpack.c.h.b16 %v3651
        %v3979 = vunpack.c.l.b16 %v3652
        %v3980 = vunpack.c.h.b16 %v3652
        %v3981 = vunpack.c.l.b16 %v3653
        %v3982 = vunpack.c.h.b16 %v3653
        %v3983 = vunpack.c.l.b16 %v3654
        %v3984 = vunpack.c.h.b16 %v3654
        %v3985 = vunpack.c.l.b16 %v3655
        %v3986 = vunpack.c.h.b16 %v3655
        %v3987 = vunpack.c.l.b16 %v3656
        %v3988 = vunpack.c.h.b16 %v3656
        %v3989 = vunpack.c.l.b16 %v3657
        %v3990 = vunpack.c.h.b16 %v3657
        %v3991 = vunpack.c.l.b16 %v3658
        %v3992 = vunpack.c.h.b16 %v3658
        %v3993 = vunpack.c.l.b16 %v3659
        %v3994 = vunpack.c.h.b16 %v3659
        %v3995 = vunpack.c.l.b16 %v3660
        %v3996 = vunpack.c.h.b16 %v3660
        %v3997 = vunpack.c.l.b16 %v3661
        %v3998 = vunpack.c.h.b16 %v3661
        %v3999 = vunpack.c.l.b16 %v3662
        %v4000 = vunpack.c.h.b16 %v3662
        %v4001 = vunpack.c.l.b16 %v3663
        %v4002 = vunpack.c.h.b16 %v3663
        %v4003 = vunpack.c.l.b16 %v3664
        %v4004 = vunpack.c.h.b16 %v3664
        %v4005 = vunpack.c.l.b16 %v3665
        %v4006 = vunpack.c.h.b16 %v3665
        %v4007 = vunpack.c.l.b16 %v3666
        %v4008 = vunpack.c.h.b16 %v3666
        %v4009 = vunpack.c.l.b16 %v3667
        %v4010 = vunpack.c.h.b16 %v3667
        %v4011 = vunpack.c.l.b16 %v3668
        %v4012 = vunpack.c.h.b16 %v3668
        %v4013 = vunpack.c.l.b16 %v3669
        %v4014 = vunpack.c.h.b16 %v3669
        %v4015 = vunpack.c.l.b16 %v3670
        %v4016 = vunpack.c.h.b16 %v3670
        %v4017 = vunpack.c.l.b16 %v3671
        %v4018 = vunpack.c.h.b16 %v3671
        %v4019 = vunpack.c.l.b16 %v3672
        %v4020 = vunpack.c.h.b16 %v3672
        %v4021 = vunpack.c.l.b16 %v3673
        %v4022 = vunpack.c.h.b16 %v3673
        %v4023 = vunpack.c.l.b16 %v3674
        %v4024 = vunpack.c.h.b16 %v3674
        %v4025 = vunpack.c.l.b16 %v3675
        %v4026 = vunpack.c.h.b16 %v3675
        %v4027 = vunpack.c.l.b16 %v3676
        %v4028 = vunpack.c.h.b16 %v3676
        %v4029 = vunpack.c.l.b16 %v3677
        %v4030 = vunpack.c.h.b16 %v3677
        %v4031 = vunpack.c.l.b16 %v3678
        %v4032 = vunpack.c.h.b16 %v3678
        %v4033 = vunpack.c.l.b16 %v3679
        %v4034 = vunpack.c.h.b16 %v3679
        %v4035 = vunpack.c.l.b16 %v3680
        %v4036 = vunpack.c.h.b16 %v3680
        %v4037 = vunpack.c.l.b16 %v3681
        %v4038 = vunpack.c.h.b16 %v3681
        %v4039 = vunpack.c.l.b16 %v3682
        %v4040 = vunpack.c.h.b16 %v3682
        %v4041 = vunpack.c.l.b16 %v3683
        %v4042 = vunpack.c.h.b16 %v3683
        %v4043 = vunpack.c.l.b16 %v3684
        %v4044 = vunpack.c.h.b16 %v3684
        %v4045 = vunpack.c.l.b16 %v3685
        %v4046 = vunpack.c.h.b16 %v3685
        %v4047 = vunpack.c.l.b16 %v3686
        %v4048 = vunpack.c.h.b16 %v3686
        %v4049 = vunpack.c.l.b16 %v3687
        %v4050 = vunpack.c.h.b16 %v3687
        %v4051 = vunpack.c.l.b16 %v3688
        %v4052 = vunpack.c.h.b16 %v3688
        %v4053 = vunpack.c.l.b16 %v3689
        %v4054 = vunpack.c.h.b16 %v3689
        %v4055 = vunpack.c.l.b16 %v3690
        %v4056 = vunpack.c.h.b16 %v3690
        %v4057 = vunpack.c.l.b16 %v3691
        %v4058 = vunpack.c.h.b16 %v3691
        %v4059 = vunpack.c.l.b16 %v3692
        %v4060 = vunpack.c.h.b16 %v3692
        %v4061 = vunpack.c.l.b16 %v3693
        %v4062 = vunpack.c.h.b16 %v3693
        %v4063 = vunpack.c.l.b16 %v3694
        %v4064 = vunpack.c.h.b16 %v3694
        %v4065 = vunpack.c.l.b16 %v3695
        %v4066 = vunpack.c.h.b16 %v3695
        %v4067 = vunpack.c.l.b16 %v3696
        %v4068 = vunpack.c.h.b16 %v3696
        %v4069 = vunpack.c.l.b16 %v3697
        %v4070 = vunpack.c.h.b16 %v3697
        %v4071 = vunpack.c.l.b16 %v3698
        %v4072 = vunpack.c.h.b16 %v3698
        %v4073 = vunpack.c.l.b16 %v3699
        %v4074 = vunpack.c.h.b16 %v3699
        %v4075 = vunpack.c.l.b16 %v3700
        %v4076 = vunpack.c.h.b16 %v3700
        %v4077 = vunpack.c.l.b16 %v3701
        %v4078 = vunpack.c.h.b16 %v3701
        %v4079 = vunpack.c.l.b16 %v3702
        %v4080 = vunpack.c.h.b16 %v3702
        %v4081 = vunpack.c.l.b16 %v3703
        %v4082 = vunpack.c.h.b16 %v3703
        %v4083 = vunpack.c.l.b16 %v3704
        %v4084 = vunpack.c.h.b16 %v3704
        %v4085 = vunpack.c.l.b16 %v3705
        %v4086 = vunpack.c.h.b16 %v3705
        %v4087 = vunpack.c.l.b16 %v3706
        %v4088 = vunpack.c.h.b16 %v3706
        %v4089 = vunpack.c.l.b16 %v3707
        %v4090 = vunpack.c.h.b16 %v3707
        %v4091 = vunpack.c.l.b16 %v3708
        %v4092 = vunpack.c.h.b16 %v3708
        %v4093 = vunpack.c.l.b16 %v3709
        %v4094 = vunpack.c.h.b16 %v3709
        %v4095 = vunpack.c.l.b16 %v3710
        %v4096 = vunpack.c.h.b16 %v3710
        %v4097 = vunpack.c.l.b16 %v3711
        %v4098 = vunpack.c.h.b16 %v3711
        %v4099 = vunpack.c.l.b16 %v3712
        %v4100 = vunpack.c.h.b16 %v3712
        %v4101 = vunpack.c.l.b16 %v3713
        %v4102 = vunpack.c.h.b16 %v3713
        %v4103 = vunpack.c.l.b16 %v3714
        %v4104 = vunpack.c.h.b16 %v3714
        %v4105 = vunpack.c.l.b16 %v3715
        %v4106 = vunpack.c.h.b16 %v3715
        %v4107 = vunpack.c.l.b16 %v3716
        %v4108 = vunpack.c.h.b16 %v3716
        %v4109 = vunpack.c.l.b16 %v3717
        %v4110 = vunpack.c.h.b16 %v3717
        %v4111 = vunpack.c.l.b16 %v3718
        %v4112 = vunpack.c.h.b16 %v3718
        %v4113 = vpack.c.b16 %v3861, %v3857
        %v4114 = vpack.c.b16 %v3862, %v3858
        %v4115 = vpack.c.b16 %v3863, %v3859
        %v4116 = vpack.c.b16 %v3864, %v3860
        %v4117 = vpack.c.b16 %v3869, %v3865
        %v4118 = vpack.c.b16 %v3870, %v3866
        %v4119 = vpack.c.b16 %v3871, %v3867
        %v4120 = vpack.c.b16 %v3872, %v3868
        %v4121 = vpack.c.b16 %v3877, %v3873
        %v4122 = vpack.c.b16 %v3878, %v3874
        %v4123 = vpack.c.b16 %v3879, %v3875
        %v4124 = vpack.c.b16 %v3880, %v3876
        %v4125 = vpack.c.b16 %v3885, %v3881
        %v4126 = vpack.c.b16 %v3886, %v3882
        %v4127 = vpack.c.b16 %v3887, %v3883
        %v4128 = vpack.c.b16 %v3888, %v3884
        %v4129 = vpack.c.b16 %v3893, %v3889
        %v4130 = vpack.c.b16 %v3894, %v3890
        %v4131 = vpack.c.b16 %v3895, %v3891
        %v4132 = vpack.c.b16 %v3896, %v3892
        %v4133 = vpack.c.b16 %v3901, %v3897
        %v4134 = vpack.c.b16 %v3902, %v3898
        %v4135 = vpack.c.b16 %v3903, %v3899
        %v4136 = vpack.c.b16 %v3904, %v3900
        %v4137 = vpack.c.b16 %v3909, %v3905
        %v4138 = vpack.c.b16 %v3910, %v3906
        %v4139 = vpack.c.b16 %v3911, %v3907
        %v4140 = vpack.c.b16 %v3912, %v3908
        %v4141 = vpack.c.b16 %v3917, %v3913
        %v4142 = vpack.c.b16 %v3918, %v3914
        %v4143 = vpack.c.b16 %v3919, %v3915
        %v4144 = vpack.c.b16 %v3920, %v3916
        %v4145 = vpack.c.b16 %v3925, %v3921
        %v4146 = vpack.c.b16 %v3926, %v3922
        %v4147 = vpack.c.b16 %v3927, %v3923
        %v4148 = vpack.c.b16 %v3928, %v3924
        %v4149 = vpack.c.b16 %v3933, %v3929
        %v4150 = vpack.c.b16 %v3934, %v3930
        %v4151 = vpack.c.b16 %v3935, %v3931
        %v4152 = vpack.c.b16 %v3936, %v3932
        %v4153 = vpack.c.b16 %v3941, %v3937
        %v4154 = vpack.c.b16 %v3942, %v3938
        %v4155 = vpack.c.b16 %v3943, %v3939
        %v4156 = vpack.c.b16 %v3944, %v3940
        %v4157 = vpack.c.b16 %v3949, %v3945
        %v4158 = vpack.c.b16 %v3950, %v3946
        %v4159 = vpack.c.b16 %v3951, %v3947
        %v4160 = vpack.c.b16 %v3952, %v3948
        %v4161 = vpack.c.b16 %v3957, %v3953
        %v4162 = vpack.c.b16 %v3958, %v3954
        %v4163 = vpack.c.b16 %v3959, %v3955
        %v4164 = vpack.c.b16 %v3960, %v3956
        %v4165 = vpack.c.b16 %v3965, %v3961
        %v4166 = vpack.c.b16 %v3966, %v3962
        %v4167 = vpack.c.b16 %v3967, %v3963
        %v4168 = vpack.c.b16 %v3968, %v3964
        %v4169 = vpack.c.b16 %v3973, %v3969
        %v4170 = vpack.c.b16 %v3974, %v3970
        %v4171 = vpack.c.b16 %v3975, %v3971
        %v4172 = vpack.c.b16 %v3976, %v3972
        %v4173 = vpack.c.b16 %v3981, %v3977
        %v4174 = vpack.c.b16 %v3982, %v3978
        %v4175 = vpack.c.b16 %v3983, %v3979
        %v4176 = vpack.c.b16 %v3984, %v3980
        %v4177 = vpack.c.b16 %v3989, %v3985
        %v4178 = vpack.c.b16 %v3990, %v3986
        %v4179 = vpack.c.b16 %v3991, %v3987
        %v4180 = vpack.c.b16 %v3992, %v3988
        %v4181 = vpack.c.b16 %v3997, %v3993
        %v4182 = vpack.c.b16 %v3998, %v3994
        %v4183 = vpack.c.b16 %v3999, %v3995
        %v4184 = vpack.c.b16 %v4000, %v3996
        %v4185 = vpack.c.b16 %v4005, %v4001
        %v4186 = vpack.c.b16 %v4006, %v4002
        %v4187 = vpack.c.b16 %v4007, %v4003
        %v4188 = vpack.c.b16 %v4008, %v4004
        %v4189 = vpack.c.b16 %v4013, %v4009
        %v4190 = vpack.c.b16 %v4014, %v4010
        %v4191 = vpack.c.b16 %v4015, %v4011
        %v4192 = vpack.c.b16 %v4016, %v4012
        %v4193 = vpack.c.b16 %v4021, %v4017
        %v4194 = vpack.c.b16 %v4022, %v4018
        %v4195 = vpack.c.b16 %v4023, %v4019
        %v4196 = vpack.c.b16 %v4024, %v4020
        %v4197 = vpack.c.b16 %v4029, %v4025
        %v4198 = vpack.c.b16 %v4030, %v4026
        %v4199 = vpack.c.b16 %v4031, %v4027
        %v4200 = vpack.c.b16 %v4032, %v4028
        %v4201 = vpack.c.b16 %v4037, %v4033
        %v4202 = vpack.c.b16 %v4038, %v4034
        %v4203 = vpack.c.b16 %v4039, %v4035
        %v4204 = vpack.c.b16 %v4040, %v4036
        %v4205 = vpack.c.b16 %v4045, %v4041
        %v4206 = vpack.c.b16 %v4046, %v4042
        %v4207 = vpack.c.b16 %v4047, %v4043
        %v4208 = vpack.c.b16 %v4048, %v4044
        %v4209 = vpack.c.b16 %v4053, %v4049
        %v4210 = vpack.c.b16 %v4054, %v4050
        %v4211 = vpack.c.b16 %v4055, %v4051
        %v4212 = vpack.c.b16 %v4056, %v4052
        %v4213 = vpack.c.b16 %v4061, %v4057
        %v4214 = vpack.c.b16 %v4062, %v4058
        %v4215 = vpack.c.b16 %v4063, %v4059
        %v4216 = vpack.c.b16 %v4064, %v4060
        %v4217 = vpack.c.b16 %v4069, %v4065
        %v4218 = vpack.c.b16 %v4070, %v4066
        %v4219 = vpack.c.b16 %v4071, %v4067
        %v4220 = vpack.c.b16 %v4072, %v4068
        %v4221 = vpack.c.b16 %v4077, %v4073
        %v4222 = vpack.c.b16 %v4078, %v4074
        %v4223 = vpack.c.b16 %v4079, %v4075
        %v4224 = vpack.c.b16 %v4080, %v4076
        %v4225 = vpack.c.b16 %v4085, %v4081
        %v4226 = vpack.c.b16 %v4086, %v4082
        %v4227 = vpack.c.b16 %v4087, %v4083
        %v4228 = vpack.c.b16 %v4088, %v4084
        %v4229 = vpack.c.b16 %v4093, %v4089
        %v4230 = vpack.c.b16 %v4094, %v4090
        %v4231 = vpack.c.b16 %v4095, %v4091
        %v4232 = vpack.c.b16 %v4096, %v4092
        %v4233 = vpack.c.b16 %v4101, %v4097
        %v4234 = vpack.c.b16 %v4102, %v4098
        %v4235 = vpack.c.b16 %v4103, %v4099
        %v4236 = vpack.c.b16 %v4104, %v4100
        %v4237 = vpack.c.b16 %v4109, %v4105
        %v4238 = vpack.c.b16 %v4110, %v4106
        %v4239 = vpack.c.b16 %v4111, %v4107
        %v4240 = vpack.c.b16 %v4112, %v4108
        %4369 = vmatpush.bf16.msra.mxu0 %v4141
        %4370 = vmatpush.bf16.msra.mxu0 %v4137
        %4371 = vmatpush.bf16.msra.mxu0 %v4133
        %4372 = vmatpush.bf16.msra.mxu0 %v4129
        %4373 = vmatpush.bf16.msra.mxu0 %v4125
        %4374 = vmatpush.bf16.msra.mxu0 %v4121
        %4375 = vmatpush.bf16.msra.mxu0 %v4117
        %4376 = vmatpush.bf16.msra.mxu0 %v4113
        %4377 = vmatmul.bf16.gmra.mxu0 %v3587
        %v4378 = vpop.f32.mrf.mxu0
        %v4379 = vadd.f32 %v3721, %v4378
        %v4380 = vpop.f32.mrf.mxu0
        %4381 = vdwg.mxu0
        %4382 = vmatpush.bf16.msra.mxu0 %v4173
        %4383 = vmatpush.bf16.msra.mxu0 %v4169
        %4384 = vmatpush.bf16.msra.mxu0 %v4165
        %4385 = vmatpush.bf16.msra.mxu0 %v4161
        %4386 = vmatpush.bf16.msra.mxu0 %v4157
        %4387 = vmatpush.bf16.msra.mxu0 %v4153
        %4388 = vmatpush.bf16.msra.mxu0 %v4149
        %4389 = vmatpush.bf16.msra.mxu0 %v4145
        %4390 = vmatmul.bf16.gmra.mxu0 %v3588
        %v4391 = vpop.f32.mrf.mxu0
        %v4392 = vadd.f32 %v4379, %v4391
        %v4393 = vpop.f32.mrf.mxu0
        %4394 = vdwg.mxu0
        %4395 = vmatpush.bf16.msra.mxu0 %v4205
        %4396 = vmatpush.bf16.msra.mxu0 %v4201
        %4397 = vmatpush.bf16.msra.mxu0 %v4197
        %4398 = vmatpush.bf16.msra.mxu0 %v4193
        %4399 = vmatpush.bf16.msra.mxu0 %v4189
        %4400 = vmatpush.bf16.msra.mxu0 %v4185
        %4401 = vmatpush.bf16.msra.mxu0 %v4181
        %4402 = vmatpush.bf16.msra.mxu0 %v4177
        %4403 = vmatmul.bf16.gmra.mxu0 %v3589
        %v4404 = vpop.f32.mrf.mxu0
        %v4405 = vadd.f32 %v4392, %v4404
        %v4406 = vpop.f32.mrf.mxu0
        %4407 = vdwg.mxu0
        %4408 = vmatpush.bf16.msra.mxu0 %v4237
        %4409 = vmatpush.bf16.msra.mxu0 %v4233
        %4410 = vmatpush.bf16.msra.mxu0 %v4229
        %4411 = vmatpush.bf16.msra.mxu0 %v4225
        %4412 = vmatpush.bf16.msra.mxu0 %v4221
        %4413 = vmatpush.bf16.msra.mxu0 %v4217
        %4414 = vmatpush.bf16.msra.mxu0 %v4213
        %4415 = vmatpush.bf16.msra.mxu0 %v4209
        %4416 = vmatmul.bf16.gmra.mxu0 %v3590
        %v4417 = vpop.f32.mrf.mxu0
        %v4418 = vadd.f32 %v4405, %v4417
        %v4419 = vpop.f32.mrf.mxu0
        %4420 = vdwg.mxu0
        %4421 = vmatpush.bf16.msra.mxu0 %v4142
        %4422 = vmatpush.bf16.msra.mxu0 %v4138
        %4423 = vmatpush.bf16.msra.mxu0 %v4134
        %4424 = vmatpush.bf16.msra.mxu0 %v4130
        %4425 = vmatpush.bf16.msra.mxu0 %v4126
        %4426 = vmatpush.bf16.msra.mxu0 %v4122
        %4427 = vmatpush.bf16.msra.mxu0 %v4118
        %4428 = vmatpush.bf16.msra.mxu0 %v4114
        %4429 = vmatmul.bf16.gmra.mxu0 %v3587
        %v4430 = vpop.f32.mrf.mxu0
        %v4431 = vadd.f32 %v3722, %v4430
        %v4432 = vpop.f32.mrf.mxu0
        %4433 = vdwg.mxu0
        %4434 = vmatpush.bf16.msra.mxu0 %v4174
        %4435 = vmatpush.bf16.msra.mxu0 %v4170
        %4436 = vmatpush.bf16.msra.mxu0 %v4166
        %4437 = vmatpush.bf16.msra.mxu0 %v4162
        %4438 = vmatpush.bf16.msra.mxu0 %v4158
        %4439 = vmatpush.bf16.msra.mxu0 %v4154
        %4440 = vmatpush.bf16.msra.mxu0 %v4150
        %4441 = vmatpush.bf16.msra.mxu0 %v4146
        %4442 = vmatmul.bf16.gmra.mxu0 %v3588
        %v4443 = vpop.f32.mrf.mxu0
        %v4444 = vadd.f32 %v4431, %v4443
        %v4445 = vpop.f32.mrf.mxu0
        %4446 = vdwg.mxu0
        %4447 = vmatpush.bf16.msra.mxu0 %v4206
        %4448 = vmatpush.bf16.msra.mxu0 %v4202
        %4449 = vmatpush.bf16.msra.mxu0 %v4198
        %4450 = vmatpush.bf16.msra.mxu0 %v4194
        %4451 = vmatpush.bf16.msra.mxu0 %v4190
        %4452 = vmatpush.bf16.msra.mxu0 %v4186
        %4453 = vmatpush.bf16.msra.mxu0 %v4182
        %4454 = vmatpush.bf16.msra.mxu0 %v4178
        %4455 = vmatmul.bf16.gmra.mxu0 %v3589
        %v4456 = vpop.f32.mrf.mxu0
        %v4457 = vadd.f32 %v4444, %v4456
        %v4458 = vpop.f32.mrf.mxu0
        %4459 = vdwg.mxu0
        %4460 = vmatpush.bf16.msra.mxu0 %v4238
        %4461 = vmatpush.bf16.msra.mxu0 %v4234
        %4462 = vmatpush.bf16.msra.mxu0 %v4230
        %4463 = vmatpush.bf16.msra.mxu0 %v4226
        %4464 = vmatpush.bf16.msra.mxu0 %v4222
        %4465 = vmatpush.bf16.msra.mxu0 %v4218
        %4466 = vmatpush.bf16.msra.mxu0 %v4214
        %4467 = vmatpush.bf16.msra.mxu0 %v4210
        %4468 = vmatmul.bf16.gmra.mxu0 %v3590
        %v4469 = vpop.f32.mrf.mxu0
        %v4470 = vadd.f32 %v4457, %v4469
        %v4471 = vpop.f32.mrf.mxu0
        %4472 = vdwg.mxu0
        %4473 = vmatpush.bf16.msra.mxu0 %v4143
        %4474 = vmatpush.bf16.msra.mxu0 %v4139
        %4475 = vmatpush.bf16.msra.mxu0 %v4135
        %4476 = vmatpush.bf16.msra.mxu0 %v4131
        %4477 = vmatpush.bf16.msra.mxu0 %v4127
        %4478 = vmatpush.bf16.msra.mxu0 %v4123
        %4479 = vmatpush.bf16.msra.mxu0 %v4119
        %4480 = vmatpush.bf16.msra.mxu0 %v4115
        %4481 = vmatmul.bf16.gmra.mxu0 %v3587
        %v4482 = vpop.f32.mrf.mxu0
        %v4483 = vadd.f32 %v3723, %v4482
        %v4484 = vpop.f32.mrf.mxu0
        %4485 = vdwg.mxu0
        %4486 = vmatpush.bf16.msra.mxu0 %v4175
        %4487 = vmatpush.bf16.msra.mxu0 %v4171
        %4488 = vmatpush.bf16.msra.mxu0 %v4167
        %4489 = vmatpush.bf16.msra.mxu0 %v4163
        %4490 = vmatpush.bf16.msra.mxu0 %v4159
        %4491 = vmatpush.bf16.msra.mxu0 %v4155
        %4492 = vmatpush.bf16.msra.mxu0 %v4151
        %4493 = vmatpush.bf16.msra.mxu0 %v4147
        %4494 = vmatmul.bf16.gmra.mxu0 %v3588
        %v4495 = vpop.f32.mrf.mxu0
        %v4496 = vadd.f32 %v4483, %v4495
        %v4497 = vpop.f32.mrf.mxu0
        %4498 = vdwg.mxu0
        %4499 = vmatpush.bf16.msra.mxu0 %v4207
        %4500 = vmatpush.bf16.msra.mxu0 %v4203
        %4501 = vmatpush.bf16.msra.mxu0 %v4199
        %4502 = vmatpush.bf16.msra.mxu0 %v4195
        %4503 = vmatpush.bf16.msra.mxu0 %v4191
        %4504 = vmatpush.bf16.msra.mxu0 %v4187
        %4505 = vmatpush.bf16.msra.mxu0 %v4183
        %4506 = vmatpush.bf16.msra.mxu0 %v4179
        %4507 = vmatmul.bf16.gmra.mxu0 %v3589
        %v4508 = vpop.f32.mrf.mxu0
        %v4509 = vadd.f32 %v4496, %v4508
        %v4510 = vpop.f32.mrf.mxu0
        %4511 = vdwg.mxu0
        %4512 = vmatpush.bf16.msra.mxu0 %v4239
        %4513 = vmatpush.bf16.msra.mxu0 %v4235
        %4514 = vmatpush.bf16.msra.mxu0 %v4231
        %4515 = vmatpush.bf16.msra.mxu0 %v4227
        %4516 = vmatpush.bf16.msra.mxu0 %v4223
        %4517 = vmatpush.bf16.msra.mxu0 %v4219
        %4518 = vmatpush.bf16.msra.mxu0 %v4215
        %4519 = vmatpush.bf16.msra.mxu0 %v4211
        %4520 = vmatmul.bf16.gmra.mxu0 %v3590
        %v4521 = vpop.f32.mrf.mxu0
        %v4522 = vadd.f32 %v4509, %v4521
        %v4523 = vpop.f32.mrf.mxu0
        %4524 = vdwg.mxu0
        %4525 = vmatpush.bf16.msra.mxu0 %v4144
        %4526 = vmatpush.bf16.msra.mxu0 %v4140
        %4527 = vmatpush.bf16.msra.mxu0 %v4136
        %4528 = vmatpush.bf16.msra.mxu0 %v4132
        %4529 = vmatpush.bf16.msra.mxu0 %v4128
        %4530 = vmatpush.bf16.msra.mxu0 %v4124
        %4531 = vmatpush.bf16.msra.mxu0 %v4120
        %4532 = vmatpush.bf16.msra.mxu0 %v4116
        %4533 = vmatmul.bf16.gmra.mxu0 %v3587
        %v4534 = vpop.f32.mrf.mxu0
        %v4535 = vadd.f32 %v3724, %v4534
        %v4536 = vpop.f32.mrf.mxu0
        %4537 = vdwg.mxu0
        %4538 = vmatpush.bf16.msra.mxu0 %v4176
        %4539 = vmatpush.bf16.msra.mxu0 %v4172
        %4540 = vmatpush.bf16.msra.mxu0 %v4168
        %4541 = vmatpush.bf16.msra.mxu0 %v4164
        %4542 = vmatpush.bf16.msra.mxu0 %v4160
        %4543 = vmatpush.bf16.msra.mxu0 %v4156
        %4544 = vmatpush.bf16.msra.mxu0 %v4152
        %4545 = vmatpush.bf16.msra.mxu0 %v4148
        %4546 = vmatmul.bf16.gmra.mxu0 %v3588
        %v4547 = vpop.f32.mrf.mxu0
        %v4548 = vadd.f32 %v4535, %v4547
        %v4549 = vpop.f32.mrf.mxu0
        %4550 = vdwg.mxu0
        %4551 = vmatpush.bf16.msra.mxu0 %v4208
        %4552 = vmatpush.bf16.msra.mxu0 %v4204
        %4553 = vmatpush.bf16.msra.mxu0 %v4200
        %4554 = vmatpush.bf16.msra.mxu0 %v4196
        %4555 = vmatpush.bf16.msra.mxu0 %v4192
        %4556 = vmatpush.bf16.msra.mxu0 %v4188
        %4557 = vmatpush.bf16.msra.mxu0 %v4184
        %4558 = vmatpush.bf16.msra.mxu0 %v4180
        %4559 = vmatmul.bf16.gmra.mxu0 %v3589
        %v4560 = vpop.f32.mrf.mxu0
        %v4561 = vadd.f32 %v4548, %v4560
        %v4562 = vpop.f32.mrf.mxu0
        %4563 = vdwg.mxu0
        %4564 = vmatpush.bf16.msra.mxu0 %v4240
        %4565 = vmatpush.bf16.msra.mxu0 %v4236
        %4566 = vmatpush.bf16.msra.mxu0 %v4232
        %4567 = vmatpush.bf16.msra.mxu0 %v4228
        %4568 = vmatpush.bf16.msra.mxu0 %v4224
        %4569 = vmatpush.bf16.msra.mxu0 %v4220
        %4570 = vmatpush.bf16.msra.mxu0 %v4216
        %4571 = vmatpush.bf16.msra.mxu0 %v4212
        %4572 = vmatmul.bf16.gmra.mxu0 %v3590
        %v4573 = vpop.f32.mrf.mxu0
        %v4574 = vadd.f32 %v4561, %v4573
        %v4575 = vpop.f32.mrf.mxu0
        %4576 = vdwg.mxu0
        %v4577 = vmax.f32 %v4418, 0.0
        %v4578 = vmax.f32 %v4470, 0.0
        %v4579 = vmax.f32 %v4522, 0.0
        %v4580 = vmax.f32 %v4574, 0.0
        %v4581 = vpack.c.bf16 %v4577, %v4577
        %v4582 = vpack.c.bf16 %v4578, %v4578
        %v4583 = vpack.c.bf16 %v4579, %v4579
        %v4584 = vpack.c.bf16 %v4580, %v4580
        %v4585 = vld [vmem:[%s11] sm:$0xf]
        %v4586 = vld [vmem:[%s11 + $0x4] sm:$0xf]
        %v4587 = vld [vmem:[%s11 + $0x8] sm:$0xf]
        %v4588 = vld [vmem:[%s11 + $0xc] sm:$0xf]
        %v4589 = vld [vmem:[%s11 + $0x10] sm:$0xf]
        %v4590 = vld [vmem:[%s11 + $0x14] sm:$0xf]
        %v4591 = vld [vmem:[%s11 + $0x18] sm:$0xf]
        %v4592 = vld [vmem:[%s11 + $0x1c] sm:$0xf]
        %v4593 = vld [vmem:[%s11 + $0x20] sm:$0xf]
        %v4594 = vld [vmem:[%s11 + $0x24] sm:$0xf]
        %v4595 = vld [vmem:[%s11 + $0x28] sm:$0xf]
        %v4596 = vld [vmem:[%s11 + $0x2c] sm:$0xf]
        %v4597 = vld [vmem:[%s11 + $0x30] sm:$0xf]
        %v4598 = vld [vmem:[%s11 + $0x34] sm:$0xf]
        %v4599 = vld [vmem:[%s11 + $0x38] sm:$0xf]
        %v4600 = vld [vmem:[%s11 + $0x3c] sm:$0xf]
        %v4601 = vld [vmem:[%s11 + $0x40] sm:$0xf]
        %v4602 = vld [vmem:[%s11 + $0x44] sm:$0xf]
        %v4603 = vld [vmem:[%s11 + $0x48] sm:$0xf]
        %v4604 = vld [vmem:[%s11 + $0x4c] sm:$0xf]
        %v4605 = vld [vmem:[%s11 + $0x50] sm:$0xf]
        %v4606 = vld [vmem:[%s11 + $0x54] sm:$0xf]
        %v4607 = vld [vmem:[%s11 + $0x58] sm:$0xf]
        %v4608 = vld [vmem:[%s11 + $0x5c] sm:$0xf]
        %v4609 = vld [vmem:[%s11 + $0x60] sm:$0xf]
        %v4610 = vld [vmem:[%s11 + $0x64] sm:$0xf]
        %v4611 = vld [vmem:[%s11 + $0x68] sm:$0xf]
        %v4612 = vld [vmem:[%s11 + $0x6c] sm:$0xf]
        %v4613 = vld [vmem:[%s11 + $0x70] sm:$0xf]
        %v4614 = vld [vmem:[%s11 + $0x74] sm:$0xf]
        %v4615 = vld [vmem:[%s11 + $0x78] sm:$0xf]
        %v4616 = vld [vmem:[%s11 + $0x7c] sm:$0xf]
        %v4617 = vld [vmem:[%s11 + $0x80] sm:$0xf]
        %v4618 = vld [vmem:[%s11 + $0x84] sm:$0xf]
        %v4619 = vld [vmem:[%s11 + $0x88] sm:$0xf]
        %v4620 = vld [vmem:[%s11 + $0x8c] sm:$0xf]
        %v4621 = vld [vmem:[%s11 + $0x90] sm:$0xf]
        %v4622 = vld [vmem:[%s11 + $0x94] sm:$0xf]
        %v4623 = vld [vmem:[%s11 + $0x98] sm:$0xf]
        %v4624 = vld [vmem:[%s11 + $0x9c] sm:$0xf]
        %v4625 = vld [vmem:[%s11 + $0xa0] sm:$0xf]
        %v4626 = vld [vmem:[%s11 + $0xa4] sm:$0xf]
        %v4627 = vld [vmem:[%s11 + $0xa8] sm:$0xf]
        %v4628 = vld [vmem:[%s11 + $0xac] sm:$0xf]
        %v4629 = vld [vmem:[%s11 + $0xb0] sm:$0xf]
        %v4630 = vld [vmem:[%s11 + $0xb4] sm:$0xf]
        %v4631 = vld [vmem:[%s11 + $0xb8] sm:$0xf]
        %v4632 = vld [vmem:[%s11 + $0xbc] sm:$0xf]
        %v4633 = vld [vmem:[%s11 + $0xc0] sm:$0xf]
        %v4634 = vld [vmem:[%s11 + $0xc4] sm:$0xf]
        %v4635 = vld [vmem:[%s11 + $0xc8] sm:$0xf]
        %v4636 = vld [vmem:[%s11 + $0xcc] sm:$0xf]
        %v4637 = vld [vmem:[%s11 + $0xd0] sm:$0xf]
        %v4638 = vld [vmem:[%s11 + $0xd4] sm:$0xf]
        %v4639 = vld [vmem:[%s11 + $0xd8] sm:$0xf]
        %v4640 = vld [vmem:[%s11 + $0xdc] sm:$0xf]
        %v4641 = vld [vmem:[%s11 + $0xe0] sm:$0xf]
        %v4642 = vld [vmem:[%s11 + $0xe4] sm:$0xf]
        %v4643 = vld [vmem:[%s11 + $0xe8] sm:$0xf]
        %v4644 = vld [vmem:[%s11 + $0xec] sm:$0xf]
        %v4645 = vld [vmem:[%s11 + $0xf0] sm:$0xf]
        %v4646 = vld [vmem:[%s11 + $0xf4] sm:$0xf]
        %v4647 = vld [vmem:[%s11 + $0xf8] sm:$0xf]
        %v4648 = vld [vmem:[%s11 + $0xfc] sm:$0xf]
        %v4649 = vld [vmem:[%s12] sm:$0x1]
        %v4651 = vperm.slane %v4649, 0
        %v4717 = vunpack.c.l.b16 %v4585
        %v4718 = vunpack.c.l.b16 %v4586
        %v4719 = vunpack.c.l.b16 %v4587
        %v4720 = vunpack.c.l.b16 %v4588
        %v4721 = vunpack.c.l.b16 %v4589
        %v4722 = vunpack.c.l.b16 %v4590
        %v4723 = vunpack.c.l.b16 %v4591
        %v4724 = vunpack.c.l.b16 %v4592
        %v4725 = vunpack.c.l.b16 %v4593
        %v4726 = vunpack.c.l.b16 %v4594
        %v4727 = vunpack.c.l.b16 %v4595
        %v4728 = vunpack.c.l.b16 %v4596
        %v4729 = vunpack.c.l.b16 %v4597
        %v4730 = vunpack.c.l.b16 %v4598
        %v4731 = vunpack.c.l.b16 %v4599
        %v4732 = vunpack.c.l.b16 %v4600
        %v4733 = vunpack.c.l.b16 %v4601
        %v4734 = vunpack.c.l.b16 %v4602
        %v4735 = vunpack.c.l.b16 %v4603
        %v4736 = vunpack.c.l.b16 %v4604
        %v4737 = vunpack.c.l.b16 %v4605
        %v4738 = vunpack.c.l.b16 %v4606
        %v4739 = vunpack.c.l.b16 %v4607
        %v4740 = vunpack.c.l.b16 %v4608
        %v4741 = vunpack.c.l.b16 %v4609
        %v4742 = vunpack.c.l.b16 %v4610
        %v4743 = vunpack.c.l.b16 %v4611
        %v4744 = vunpack.c.l.b16 %v4612
        %v4745 = vunpack.c.l.b16 %v4613
        %v4746 = vunpack.c.l.b16 %v4614
        %v4747 = vunpack.c.l.b16 %v4615
        %v4748 = vunpack.c.l.b16 %v4616
        %v4749 = vunpack.c.l.b16 %v4617
        %v4750 = vunpack.c.l.b16 %v4618
        %v4751 = vunpack.c.l.b16 %v4619
        %v4752 = vunpack.c.l.b16 %v4620
        %v4753 = vunpack.c.l.b16 %v4621
        %v4754 = vunpack.c.l.b16 %v4622
        %v4755 = vunpack.c.l.b16 %v4623
        %v4756 = vunpack.c.l.b16 %v4624
        %v4757 = vunpack.c.l.b16 %v4625
        %v4758 = vunpack.c.l.b16 %v4626
        %v4759 = vunpack.c.l.b16 %v4627
        %v4760 = vunpack.c.l.b16 %v4628
        %v4761 = vunpack.c.l.b16 %v4629
        %v4762 = vunpack.c.l.b16 %v4630
        %v4763 = vunpack.c.l.b16 %v4631
        %v4764 = vunpack.c.l.b16 %v4632
        %v4765 = vunpack.c.l.b16 %v4633
        %v4766 = vunpack.c.l.b16 %v4634
        %v4767 = vunpack.c.l.b16 %v4635
        %v4768 = vunpack.c.l.b16 %v4636
        %v4769 = vunpack.c.l.b16 %v4637
        %v4770 = vunpack.c.l.b16 %v4638
        %v4771 = vunpack.c.l.b16 %v4639
        %v4772 = vunpack.c.l.b16 %v4640
        %v4773 = vunpack.c.l.b16 %v4641
        %v4774 = vunpack.c.l.b16 %v4642
        %v4775 = vunpack.c.l.b16 %v4643
        %v4776 = vunpack.c.l.b16 %v4644
        %v4777 = vunpack.c.l.b16 %v4645
        %v4778 = vunpack.c.l.b16 %v4646
        %v4779 = vunpack.c.l.b16 %v4647
        %v4780 = vunpack.c.l.b16 %v4648
        %v4781 = vpack.c.b16 %v4718, %v4717
        %v4782 = vpack.c.b16 %v4720, %v4719
        %v4783 = vpack.c.b16 %v4722, %v4721
        %v4784 = vpack.c.b16 %v4724, %v4723
        %v4785 = vpack.c.b16 %v4726, %v4725
        %v4786 = vpack.c.b16 %v4728, %v4727
        %v4787 = vpack.c.b16 %v4730, %v4729
        %v4788 = vpack.c.b16 %v4732, %v4731
        %v4789 = vpack.c.b16 %v4734, %v4733
        %v4790 = vpack.c.b16 %v4736, %v4735
        %v4791 = vpack.c.b16 %v4738, %v4737
        %v4792 = vpack.c.b16 %v4740, %v4739
        %v4793 = vpack.c.b16 %v4742, %v4741
        %v4794 = vpack.c.b16 %v4744, %v4743
        %v4795 = vpack.c.b16 %v4746, %v4745
        %v4796 = vpack.c.b16 %v4748, %v4747
        %v4797 = vpack.c.b16 %v4750, %v4749
        %v4798 = vpack.c.b16 %v4752, %v4751
        %v4799 = vpack.c.b16 %v4754, %v4753
        %v4800 = vpack.c.b16 %v4756, %v4755
        %v4801 = vpack.c.b16 %v4758, %v4757
        %v4802 = vpack.c.b16 %v4760, %v4759
        %v4803 = vpack.c.b16 %v4762, %v4761
        %v4804 = vpack.c.b16 %v4764, %v4763
        %v4805 = vpack.c.b16 %v4766, %v4765
        %v4806 = vpack.c.b16 %v4768, %v4767
        %v4807 = vpack.c.b16 %v4770, %v4769
        %v4808 = vpack.c.b16 %v4772, %v4771
        %v4809 = vpack.c.b16 %v4774, %v4773
        %v4810 = vpack.c.b16 %v4776, %v4775
        %v4811 = vpack.c.b16 %v4778, %v4777
        %v4812 = vpack.c.b16 %v4780, %v4779
        %4845 = vmatpush.bf16.msra.mxu0 %v4788
        %4846 = vmatpush.bf16.msra.mxu0 %v4787
        %4847 = vmatpush.bf16.msra.mxu0 %v4786
        %4848 = vmatpush.bf16.msra.mxu0 %v4785
        %4849 = vmatpush.bf16.msra.mxu0 %v4784
        %4850 = vmatpush.bf16.msra.mxu0 %v4783
        %4851 = vmatpush.bf16.msra.mxu0 %v4782
        %4852 = vmatpush.bf16.msra.mxu0 %v4781
        %4853 = vmatmul.bf16.gmra.mxu0 %v4581
        %v4854 = vpop.f32.mrf.mxu0
        %v4855 = vadd.f32 %v4651, %v4854
        %v4856 = vpop.f32.mrf.mxu0
        %4857 = vdwg.mxu0
        %4858 = vmatpush.bf16.msra.mxu0 %v4796
        %4859 = vmatpush.bf16.msra.mxu0 %v4795
        %4860 = vmatpush.bf16.msra.mxu0 %v4794
        %4861 = vmatpush.bf16.msra.mxu0 %v4793
        %4862 = vmatpush.bf16.msra.mxu0 %v4792
        %4863 = vmatpush.bf16.msra.mxu0 %v4791
        %4864 = vmatpush.bf16.msra.mxu0 %v4790
        %4865 = vmatpush.bf16.msra.mxu0 %v4789
        %4866 = vmatmul.bf16.gmra.mxu0 %v4582
        %v4867 = vpop.f32.mrf.mxu0
        %v4868 = vadd.f32 %v4855, %v4867
        %v4869 = vpop.f32.mrf.mxu0
        %4870 = vdwg.mxu0
        %4871 = vmatpush.bf16.msra.mxu0 %v4804
        %4872 = vmatpush.bf16.msra.mxu0 %v4803
        %4873 = vmatpush.bf16.msra.mxu0 %v4802
        %4874 = vmatpush.bf16.msra.mxu0 %v4801
        %4875 = vmatpush.bf16.msra.mxu0 %v4800
        %4876 = vmatpush.bf16.msra.mxu0 %v4799
        %4877 = vmatpush.bf16.msra.mxu0 %v4798
        %4878 = vmatpush.bf16.msra.mxu0 %v4797
        %4879 = vmatmul.bf16.gmra.mxu0 %v4583
        %v4880 = vpop.f32.mrf.mxu0
        %v4881 = vadd.f32 %v4868, %v4880
        %v4882 = vpop.f32.mrf.mxu0
        %4883 = vdwg.mxu0
        %4884 = vmatpush.bf16.msra.mxu0 %v4812
        %4885 = vmatpush.bf16.msra.mxu0 %v4811
        %4886 = vmatpush.bf16.msra.mxu0 %v4810
        %4887 = vmatpush.bf16.msra.mxu0 %v4809
        %4888 = vmatpush.bf16.msra.mxu0 %v4808
        %4889 = vmatpush.bf16.msra.mxu0 %v4807
        %4890 = vmatpush.bf16.msra.mxu0 %v4806
        %4891 = vmatpush.bf16.msra.mxu0 %v4805
        %4892 = vmatmul.bf16.gmra.mxu0 %v4584
        %v4893 = vpop.f32.mrf.mxu0
        %v4894 = vadd.f32 %v4881, %v4893
        %v4895 = vpop.f32.mrf.mxu0
        %4896 = vdwg.mxu0
        %v4897 = vtanh.pop %v4894
        %4898 = vst.msk [vmem:[%s431] sm:$0xff] %vm545, %v4897
        %s4899 = sand.u32 %s313, 1
        %s4900 = scalar_lea.sflag [#allocation3], %s4899
        %s4901 = sand.u32 %s313, 1
        %s4902 = smul.addr %s4901, 8
        %s4903 = scalar_lea.vmem [#allocation2], %s4902
        // Predicated region
        $region73: #{autoencoder_forward.1} parent=71 // pred_check
          %p4904 = pneg %p323
        $region74: #{autoencoder_forward.1} parent=71 // pred_check_branch
          %4906 = sbr.rel (%p4904) target = $region76
        $region75: #{autoencoder_forward.1} parent=71 // pred_region
          %4908 = vsyncadd %s4900, 0
          %s4909 = smul.addr %s27, 8
          %s4910 = scalar_lea.hbm %s13, %s4909
          %s4912 = sshll.u32 %s4903, 4
          %s4913 = int_to_ptr.vmem [resolvable:$true] %s4912
          %s4914 = sshll.u32 %s4910, 4
          %s4915 = int_to_ptr.hbm [resolvable:$true] %s4914
          %4917 = dma.vmem_to_hbm [thread:$0]  %s4913, 128, %s4915, %s4900
        $region76: #{autoencoder_forward.1} parent=71 // pred_fallthru
          _
      $region72: #{autoencoder_forward.1} parent=5 // pred_fallthru
        _
      %p4918 = scmp.le.s32.totalorder 2, %s22
      // Predicated region
      $region77: #{autoencoder_forward.1} parent=5 // pred_check
        %p4919 = pneg %p4918
      $region78: #{autoencoder_forward.1} parent=5 // pred_check_branch
        %4921 = sbr.rel (%p4919) target = $region80
      $region79: #{autoencoder_forward.1} parent=5 // pred_region
        %s4922 = ssub.s32 %s22, 2
        // Predicated region
        $region81: #{autoencoder_forward.1} parent=79 // pred_check
          %p4923 = pneg %p329
        $region82: #{autoencoder_forward.1} parent=79 // pred_check_branch
          %4925 = sbr.rel (%p4923) target = $region84
        $region83: #{autoencoder_forward.1} parent=79 // pred_region
          %s4926 = sand.u32 %s314, 1
          %s4927 = scalar_lea.sflag [#allocation3], %s4926
          %s4928 = sand.u32 %s314, 1
          %s4929 = smul.addr %s4928, 8
          %s4930 = scalar_lea.vmem [#allocation2], %s4929
          %4932 = dma.done %s4927, 128
        $region84: #{autoencoder_forward.1} parent=79 // pred_fallthru
          _
      $region80: #{autoencoder_forward.1} parent=5 // pred_fallthru
        _
    $region6: #{autoencoder_forward.1} parent=1 // loop_footer
      %s26 = sadd.s32 1, %s22
    $region7: #{autoencoder_forward.1} parent=1 // loop_footer_branch
      %21 = sbr.rel target = $region3
    $region8: #{autoencoder_forward.1} parent=1 // loop_exit
      _
    %4933 = vsyncpa [#allocation3], 1
    %s4934 = scalar_lea.sflag [#allocation3], 1
    %4935 = vsyncpa %s4934, 1

</llo_original>
